<compile_context>
chip_gen: v6e
topology: v6e:2x2x1
jax: 0.10.0
libtpu: 0.0.40
codegen_flags: <defaults>
</compile_context>

<pallas_src>
import jax
import jax.numpy as jnp
from jax import lax
from jax.experimental import pallas as pl
from jax.experimental.pallas import tpu as pltpu

EPS = 1e-5
LANE = 128        # channel dims are padded to multiples of the TPU lane width
HALO_ROWS = 8     # halo block row count (only 2 rows used; 8 keeps it aligned)
VMEM_BUDGET = 20 * 1024 * 1024


def _round_up(x, m):
    return (x + m - 1) // m * m


# ---------------------------------------------------------------------------
# Kernel 1: 3x3 conv (padding handled via zero rows/cols provided by caller)
# fused with per-tile BatchNorm partial statistics.
# ---------------------------------------------------------------------------
def _conv3x3_stats_kernel(x_ref, halo_ref, w_ref, y_ref, stats_ref, p_ref):
    # x_ref    : (TH, Wp, Cp_in)       bf16  padded rows [b*TH, b*TH+TH)
    # halo_ref : (8,  Wp, Cp_in)       bf16  padded rows [b*TH+TH, ...+8) (2 used)
    # w_ref    : (3, 3*Cp_in, Cout_p)  bf16  (dh, dw*Cp_in + ci, co)
    # y_ref    : (TH, W, Cout_p)       f32   conv output (pre-BN)
    # stats_ref: (2, Cout_p)           f32   per-tile [sum, sum of squares]
    # p_ref    : (TH+2, W, 3*Cp_in)    bf16  W-direction im2col scratch
    TH, Wp, Cp = x_ref.shape
    W = Wp - 2
    Cout = y_ref.shape[-1]

    # Stage the dw-im2col once per tile (3 shifted copies instead of 9).
    for dw in range(3):
        p_ref[0:TH, :, dw * Cp:(dw + 1) * Cp] = x_ref[:, dw:dw + W, :]
        p_ref[TH:TH + 2, :, dw * Cp:(dw + 1) * Cp] = halo_ref[0:2, dw:dw + W, :]

    # 3 MXU matmuls: M = TH*W, K = 3*Cp_in (>=384), N = Cout_p (lane dense).
    acc = jnp.zeros((TH * W, Cout), jnp.float32)
    for dh in range(3):
        lhs = p_ref[dh:dh + TH, :, :].reshape(TH * W, 3 * Cp)
        acc = acc + jnp.dot(lhs, w_ref[dh], preferred_element_type=jnp.float32)

    y_ref[...] = acc.reshape(TH, W, Cout)
    # BatchNorm partials (finalized outside; keeps every grid axis "parallel").
    stats_ref[0:1, :] = jnp.sum(acc, axis=0, keepdims=True)
    stats_ref[1:2, :] = jnp.sum(acc * acc, axis=0, keepdims=True)


# ---------------------------------------------------------------------------
# Kernel 2: elementwise BatchNorm apply (scale/shift) + ReLU.
# ---------------------------------------------------------------------------
def _bn_relu_kernel(y_ref, sc_ref, sh_ref, o_ref):
    y = y_ref[...]                            # (TH, W, Cp) f32
    sc = sc_ref[...].reshape(1, 1, -1)
    sh = sh_ref[...].reshape(1, 1, -1)
    o_ref[...] = jnp.maximum(y * sc + sh, 0.0).astype(o_ref.dtype)


# ---------------------------------------------------------------------------
# Wrappers
# ---------------------------------------------------------------------------
def _pick_tile_h(H, W, cin_p, cout_p, budget_bytes=VMEM_BUDGET):
    assert H % 8 == 0 and W % 8 == 0, (
        "This kernel requires H and W to be multiples of 8 (TPU sublane tiling).")
    wp = W + 2
    best = 8
    for th in range(8, H + 8, 8):
        if H % th:
            continue
        est = (2 * th * wp * cin_p * 2            # input tile, double-buffered
               + 2 * HALO_ROWS * wp * cin_p * 2   # halo block, double-buffered
               + (th + 2) * W * 3 * cin_p * 2     # im2col scratch (bf16)
               + 2 * th * W * cout_p * 4          # f32 accumulator temporaries
               + 2 * th * W * cout_p * 4          # f32 output tile, double-buffered
               + 3 * 3 * cin_p * cout_p * 2)      # resident weights
        if est <= budget_bytes:
            best = th
    return best


def _prep_weights(w_hwio, cin_p, cout_p):
    # (3, 3, Cin, Cout) HWIO -> zero-padded (3, 3*Cp_in, Cout_p) bf16 with the
    # K index ordered (dw, ci) to match the in-kernel im2col layout.
    kh, kw, cin, cout = w_hwio.shape
    w = jnp.pad(w_hwio, ((0, 0), (0, 0), (0, cin_p - cin), (0, cout_p - cout)))
    return w.reshape(3, 3 * cin_p, cout_p).astype(jnp.bfloat16)


def _conv3x3_stats_call(x_p, wk, tile_h):
    # x_p: (N, H, W, Cp_in) bf16, channel padded.  wk: (3, 3*Cp_in, Cout_p) bf16.
    N, H, W, cin_p = x_p.shape
    cout_p = wk.shape[-1]
    TH = tile_h
    nb = H // TH
    th8 = TH // 8
    Wp = W + 2

    # Spatial pad: 1 row/col each side for the 3x3 window, plus 6 extra zero
    # rows at the bottom so the last band's 8-row halo block stays in bounds.
    # TODO(synk): fold this pad into the kernel with border masks to save one
    # HBM round trip of the activation.
    xp = jnp.pad(x_p, ((0, 0), (1, 7), (1, 1), (0, 0)))

    flops = 2 * N * H * W * 9 * cin_p * cout_p
    bytes_accessed = (xp.size * 2 + wk.size * 2
                      + N * H * W * cout_p * 4 + N * nb * 2 * cout_p * 4)

    y, stats = pl.pallas_call(
        _conv3x3_stats_kernel,
        grid=(N, nb),
        in_specs=[
            pl.BlockSpec((None, TH, Wp, cin_p), lambda n, b: (n, b, 0, 0)),
            pl.BlockSpec((None, HALO_ROWS, Wp, cin_p),
                         lambda n, b: (n, (b + 1) * th8, 0, 0)),
            pl.BlockSpec((3, 3 * cin_p, cout_p), lambda n, b: (0, 0, 0)),
        ],
        out_specs=(
            pl.BlockSpec((None, TH, W, cout_p), lambda n, b: (n, b, 0, 0)),
            pl.BlockSpec((None, None, 2, cout_p), lambda n, b: (n, b, 0, 0)),
        ),
        out_shape=(
            jax.ShapeDtypeStruct((N, H, W, cout_p), jnp.float32),
            jax.ShapeDtypeStruct((N, nb, 2, cout_p), jnp.float32),
        ),
        scratch_shapes=[pltpu.VMEM((TH + 2, W, 3 * cin_p), jnp.bfloat16)],
        compiler_params=pltpu.CompilerParams(
            dimension_semantics=("parallel", "parallel"),
            vmem_limit_bytes=32 * 1024 * 1024,
        ),
        cost_estimate=pl.CostEstimate(
            flops=flops, transcendentals=0, bytes_accessed=bytes_accessed),
    )(xp, xp, wk)
    return y, stats


def _bn_relu_call(y, scale, shift, tile_h, out_dtype):
    N, H, W, cp = y.shape
    TH = tile_h
    nb = H // TH
    return pl.pallas_call(
        _bn_relu_kernel,
        grid=(N, nb),
        in_specs=[
            pl.BlockSpec((None, TH, W, cp), lambda n, b: (n, b, 0, 0)),
            pl.BlockSpec((1, cp), lambda n, b: (0, 0)),
            pl.BlockSpec((1, cp), lambda n, b: (0, 0)),
        ],
        out_specs=pl.BlockSpec((None, TH, W, cp), lambda n, b: (n, b, 0, 0)),
        out_shape=jax.ShapeDtypeStruct((N, H, W, cp), out_dtype),
        compiler_params=pltpu.CompilerParams(
            dimension_semantics=("parallel", "parallel"),
            vmem_limit_bytes=32 * 1024 * 1024,
        ),
    )(y, scale.reshape(1, cp), shift.reshape(1, cp))


def _bn_scale_shift(stats, gamma_p, beta_p, count):
    # Finalize BatchNorm batch statistics from the per-tile partials (tiny).
    s = stats.sum(axis=(0, 1))                        # (2, Cp)
    mean = s[0] / count
    var = jnp.maximum(s[1] / count - mean * mean, 0.0)   # biased variance
    scale = gamma_p * lax.rsqrt(var + EPS)
    shift = beta_p - mean * scale
    return scale, shift


def _conv_bn_relu(x_p, w_hwio, gamma, beta, *, out_dtype):
    # x_p: (N, H, W, Cp_in) bf16, channel padded NHWC activations.
    # NOTE: the Conv2d bias is intentionally not added (cancelled by BN mean).
    N, H, W, cin_p = x_p.shape
    cout = w_hwio.shape[-1]
    cout_p = _round_up(cout, LANE)
    TH = _pick_tile_h(H, W, cin_p, cout_p)

    wk = _prep_weights(w_hwio, cin_p, cout_p)
    y, stats = _conv3x3_stats_call(x_p, wk, TH)

    gamma_p = jnp.pad(gamma.astype(jnp.float32), (0, cout_p - cout))
    beta_p = jnp.pad(beta.astype(jnp.float32), (0, cout_p - cout))
    scale, shift = _bn_scale_shift(stats, gamma_p, beta_p, float(N * H * W))
    return _bn_relu_call(y, scale, shift, TH, out_dtype)


def double_conv_forward(x_nchw, params):
    """DoubleConv.forward: NCHW in, NCHW out (layout glue is plain JAX)."""
    x = jnp.transpose(x_nchw, (0, 2, 3, 1))                     # NCHW -> NHWC
    N, H, W, cin = x.shape
    cin_p = _round_up(cin, LANE)
    x_p = jnp.pad(x.astype(jnp.bfloat16), ((0, 0), (0, 0), (0, 0), (0, cin_p - cin)))

    a1 = _conv_bn_relu(x_p, params["c1_w"], params["bn1_g"], params["bn1_b"],
                       out_dtype=jnp.bfloat16)                  # feeds conv2 directly
    a2 = _conv_bn_relu(a1, params["c2_w"], params["bn2_g"], params["bn2_b"],
                       out_dtype=jnp.float32)

    out_ch = params["c2_w"].shape[-1]
    return jnp.transpose(a2[..., :out_ch], (0, 3, 1, 2))        # NHWC -> NCHW


# ---------------------------------------------------------------------------
# Pure-JAX f32 reference (for a loose sanity check against the bf16 kernels).
# ---------------------------------------------------------------------------
def _reference(x_nchw, params):
    x = jnp.transpose(x_nchw, (0, 2, 3, 1)).astype(jnp.float32)

    def layer(h, w, b, g, be):
        y = lax.conv_general_dilated(h, w, (1, 1), "SAME",
                                     dimension_numbers=("NHWC", "HWIO", "NHWC"))
        y = y + b
        mean = y.mean(axis=(0, 1, 2))
        var = ((y - mean) ** 2).mean(axis=(0, 1, 2))
        y = (y - mean) * lax.rsqrt(var + EPS) * g + be
        return jnp.maximum(y, 0.0)

    x = layer(x, params["c1_w"], params["c1_b"], params["bn1_g"], params["bn1_b"])
    x = layer(x, params["c2_w"], params["c2_b"], params["bn2_g"], params["bn2_b"])
    return jnp.transpose(x, (0, 3, 1, 2))


# ---------------------------------------------------------------------------
if __name__ == "__main__":
    N, in_ch, out_ch, H, W = 2, 4, 8, 16, 16

    key = jax.random.PRNGKey(0)
    ks = jax.random.split(key, 9)
    x = jax.random.normal(ks[0], (N, in_ch, H, W), jnp.float32)
    params = {
        # Conv weights stored HWIO; biases kept for interface parity (BN cancels them).
        "c1_w": jax.random.normal(ks[1], (3, 3, in_ch, out_ch), jnp.float32) * 0.2,
        "c1_b": jax.random.normal(ks[2], (out_ch,), jnp.float32) * 0.1,
        "bn1_g": 1.0 + 0.1 * jax.random.normal(ks[3], (out_ch,), jnp.float32),
        "bn1_b": 0.1 * jax.random.normal(ks[4], (out_ch,), jnp.float32),
        "c2_w": jax.random.normal(ks[5], (3, 3, out_ch, out_ch), jnp.float32) * 0.2,
        "c2_b": jax.random.normal(ks[6], (out_ch,), jnp.float32) * 0.1,
        "bn2_g": 1.0 + 0.1 * jax.random.normal(ks[7], (out_ch,), jnp.float32),
        "bn2_b": 0.1 * jax.random.normal(ks[8], (out_ch,), jnp.float32),
    }

    out = jax.jit(double_conv_forward)(x, params)
    jax.block_until_ready(out)

    assert out.shape == (N, out_ch, H, W), out.shape
    assert bool(jnp.all(out >= 0.0))                  # ReLU output

    ref = _reference(x, params)
    scaled_err = float(jnp.max(jnp.abs(out - ref) / (jnp.abs(ref) + 1.0)))
    assert scaled_err < 0.2, f"mismatch vs f32 reference: {scaled_err}"

    print("KERNEL_OK")
</pallas_src>

<mosaic_0001>
module attributes {stable_mosaic.version = 11 : i64} {
  func.func @_conv3x3_stats_kernel(%arg0: i32, %arg1: i32, %arg2: memref<1x16x18x128xbf16, #tpu.memory_space<vmem>>, %arg3: memref<1x8x18x128xbf16, #tpu.memory_space<vmem>>, %arg4: memref<3x384x128xbf16, #tpu.memory_space<vmem>>, %arg5: memref<1x16x16x128xf32, #tpu.memory_space<vmem>>, %arg6: memref<1x1x2x128xf32, #tpu.memory_space<vmem>>, %arg7: memref<18x16x384xbf16, #tpu.memory_space<vmem>>) attributes {dimension_semantics = [#tpu.dimension_semantics<parallel>, #tpu.dimension_semantics<parallel>], iteration_bounds = array<i64: 2, 1>, scalar_prefetch = 0 : i64, scratch_operands = 1 : i64, tpu.core_type = #tpu.core_type<tc>, window_params = [{transform_indices = @transform_0, window_bounds = array<i64: 1, 16, 18, 128>}, {transform_indices = @transform_1, window_bounds = array<i64: 1, 8, 18, 128>}, {pipeline_mode = #tpu.pipeline_mode<synchronous>, transform_indices = @transform_2, window_bounds = array<i64: 3, 384, 128>}, {transform_indices = @transform_3, window_bounds = array<i64: 1, 16, 16, 128>}, {transform_indices = @transform_4, window_bounds = array<i64: 1, 1, 2, 128>}]} {
    %c0 = arith.constant 0 : index
    %c0_0 = arith.constant 0 : index
    %c0_1 = arith.constant 0 : index
    %c0_2 = arith.constant 0 : index
    %0 = vector.load %arg2[%c0, %c0_0, %c0_1, %c0_2] : memref<1x16x18x128xbf16, #tpu.memory_space<vmem>>, vector<1x16x16x128xbf16>
    %1 = vector.shape_cast %0 : vector<1x16x16x128xbf16> to vector<16x16x128xbf16>
    %c0_3 = arith.constant 0 : index
    %c0_4 = arith.constant 0 : index
    %c0_5 = arith.constant 0 : index
    %2 = vector.load %arg7[%c0_3, %c0_4, %c0_5] : memref<18x16x384xbf16, #tpu.memory_space<vmem>>, vector<16x16x128xbf16>
    tpu.vector_store %arg7[%c0_3, %c0_4, %c0_5], %1 {strides = array<i32>} : memref<18x16x384xbf16, #tpu.memory_space<vmem>>, vector<16x16x128xbf16>,
    %c0_6 = arith.constant 0 : index
    %c0_7 = arith.constant 0 : index
    %c0_8 = arith.constant 0 : index
    %c0_9 = arith.constant 0 : index
    %3 = vector.load %arg3[%c0_6, %c0_7, %c0_8, %c0_9] : memref<1x8x18x128xbf16, #tpu.memory_space<vmem>>, vector<1x2x16x128xbf16>
    %4 = vector.shape_cast %3 : vector<1x2x16x128xbf16> to vector<2x16x128xbf16>
    %c16 = arith.constant 16 : index
    %c0_10 = arith.constant 0 : index
    %c0_11 = arith.constant 0 : index
    %5 = vector.load %arg7[%c16, %c0_10, %c0_11] : memref<18x16x384xbf16, #tpu.memory_space<vmem>>, vector<2x16x128xbf16>
    tpu.vector_store %arg7[%c16, %c0_10, %c0_11], %4 {strides = array<i32>} : memref<18x16x384xbf16, #tpu.memory_space<vmem>>, vector<2x16x128xbf16>,
    %c0_12 = arith.constant 0 : index
    %c0_13 = arith.constant 0 : index
    %c1 = arith.constant 1 : index
    %c0_14 = arith.constant 0 : index
    %6 = vector.load %arg2[%c0_12, %c0_13, %c1, %c0_14] : memref<1x16x18x128xbf16, #tpu.memory_space<vmem>>, vector<1x16x16x128xbf16>
    %7 = vector.shape_cast %6 : vector<1x16x16x128xbf16> to vector<16x16x128xbf16>
    %c0_15 = arith.constant 0 : index
    %c0_16 = arith.constant 0 : index
    %c128 = arith.constant 128 : index
    %8 = vector.load %arg7[%c0_15, %c0_16, %c128] : memref<18x16x384xbf16, #tpu.memory_space<vmem>>, vector<16x16x128xbf16>
    tpu.vector_store %arg7[%c0_15, %c0_16, %c128], %7 {strides = array<i32>} : memref<18x16x384xbf16, #tpu.memory_space<vmem>>, vector<16x16x128xbf16>,
    %c0_17 = arith.constant 0 : index
    %c0_18 = arith.constant 0 : index
    %c1_19 = arith.constant 1 : index
    %c0_20 = arith.constant 0 : index
    %9 = vector.load %arg3[%c0_17, %c0_18, %c1_19, %c0_20] : memref<1x8x18x128xbf16, #tpu.memory_space<vmem>>, vector<1x2x16x128xbf16>
    %10 = vector.shape_cast %9 : vector<1x2x16x128xbf16> to vector<2x16x128xbf16>
    %c16_21 = arith.constant 16 : index
    %c0_22 = arith.constant 0 : index
    %c128_23 = arith.constant 128 : index
    %11 = vector.load %arg7[%c16_21, %c0_22, %c128_23] : memref<18x16x384xbf16, #tpu.memory_space<vmem>>, vector<2x16x128xbf16>
    tpu.vector_store %arg7[%c16_21, %c0_22, %c128_23], %10 {strides = array<i32>} : memref<18x16x384xbf16, #tpu.memory_space<vmem>>, vector<2x16x128xbf16>,
    %c0_24 = arith.constant 0 : index
    %c0_25 = arith.constant 0 : index
    %c2 = arith.constant 2 : index
    %c0_26 = arith.constant 0 : index
    %12 = vector.load %arg2[%c0_24, %c0_25, %c2, %c0_26] : memref<1x16x18x128xbf16, #tpu.memory_space<vmem>>, vector<1x16x16x128xbf16>
    %13 = vector.shape_cast %12 : vector<1x16x16x128xbf16> to vector<16x16x128xbf16>
    %c0_27 = arith.constant 0 : index
    %c0_28 = arith.constant 0 : index
    %c256 = arith.constant 256 : index
    %14 = vector.load %arg7[%c0_27, %c0_28, %c256] : memref<18x16x384xbf16, #tpu.memory_space<vmem>>, vector<16x16x128xbf16>
    tpu.vector_store %arg7[%c0_27, %c0_28, %c256], %13 {strides = array<i32>} : memref<18x16x384xbf16, #tpu.memory_space<vmem>>, vector<16x16x128xbf16>,
    %c0_29 = arith.constant 0 : index
    %c0_30 = arith.constant 0 : index
    %c2_31 = arith.constant 2 : index
    %c0_32 = arith.constant 0 : index
    %15 = vector.load %arg3[%c0_29, %c0_30, %c2_31, %c0_32] : memref<1x8x18x128xbf16, #tpu.memory_space<vmem>>, vector<1x2x16x128xbf16>
    %16 = vector.shape_cast %15 : vector<1x2x16x128xbf16> to vector<2x16x128xbf16>
    %c16_33 = arith.constant 16 : index
    %c0_34 = arith.constant 0 : index
    %c256_35 = arith.constant 256 : index
    %17 = vector.load %arg7[%c16_33, %c0_34, %c256_35] : memref<18x16x384xbf16, #tpu.memory_space<vmem>>, vector<2x16x128xbf16>
    tpu.vector_store %arg7[%c16_33, %c0_34, %c256_35], %16 {strides = array<i32>} : memref<18x16x384xbf16, #tpu.memory_space<vmem>>, vector<2x16x128xbf16>,
    %cst = arith.constant 0.000000e+00 : f32
    %18 = vector.broadcast %cst : f32 to vector<256x128xf32>
    %c0_36 = arith.constant 0 : index
    %c0_37 = arith.constant 0 : index
    %c0_38 = arith.constant 0 : index
    %19 = vector.load %arg7[%c0_36, %c0_37, %c0_38] : memref<18x16x384xbf16, #tpu.memory_space<vmem>>, vector<16x16x384xbf16>
    %20 = vector.shape_cast %19 : vector<16x16x384xbf16> to vector<256x384xbf16>
    %c0_39 = arith.constant 0 : index
    %c0_40 = arith.constant 0 : index
    %c0_41 = arith.constant 0 : index
    %21 = vector.load %arg4[%c0_39, %c0_40, %c0_41] : memref<3x384x128xbf16, #tpu.memory_space<vmem>>, vector<1x384x128xbf16>
    %22 = vector.shape_cast %21 : vector<1x384x128xbf16> to vector<384x128xbf16>
    %cst_42 = arith.constant dense<0.000000e+00> : vector<256x128xf32>
    %23 = tpu.matmul %20, %22, %cst_42 {dimension_numbers = #tpu.dot_dimension_numbers<[1], [0], [0], [1], [0, 0, 1, 1], [], []>} : vector<256x384xbf16>, vector<384x128xbf16>, vector<256x128xf32> -> vector<256x128xf32>
    %24 = arith.addf %18, %23 : vector<256x128xf32>
    %c1_43 = arith.constant 1 : index
    %c0_44 = arith.constant 0 : index
    %c0_45 = arith.constant 0 : index
    %25 = vector.load %arg7[%c1_43, %c0_44, %c0_45] : memref<18x16x384xbf16, #tpu.memory_space<vmem>>, vector<16x16x384xbf16>
    %26 = vector.shape_cast %25 : vector<16x16x384xbf16> to vector<256x384xbf16>
    %c1_46 = arith.constant 1 : index
    %c0_47 = arith.constant 0 : index
    %c0_48 = arith.constant 0 : index
    %27 = vector.load %arg4[%c1_46, %c0_47, %c0_48] : memref<3x384x128xbf16, #tpu.memory_space<vmem>>, vector<1x384x128xbf16>
    %28 = vector.shape_cast %27 : vector<1x384x128xbf16> to vector<384x128xbf16>
    %cst_49 = arith.constant dense<0.000000e+00> : vector<256x128xf32>
    %29 = tpu.matmul %26, %28, %cst_49 {dimension_numbers = #tpu.dot_dimension_numbers<[1], [0], [0], [1], [0, 0, 1, 1], [], []>} : vector<256x384xbf16>, vector<384x128xbf16>, vector<256x128xf32> -> vector<256x128xf32>
    %30 = arith.addf %24, %29 : vector<256x128xf32>
    %c2_50 = arith.constant 2 : index
    %c0_51 = arith.constant 0 : index
    %c0_52 = arith.constant 0 : index
    %31 = vector.load %arg7[%c2_50, %c0_51, %c0_52] : memref<18x16x384xbf16, #tpu.memory_space<vmem>>, vector<16x16x384xbf16>
    %32 = vector.shape_cast %31 : vector<16x16x384xbf16> to vector<256x384xbf16>
    %c2_53 = arith.constant 2 : index
    %c0_54 = arith.constant 0 : index
    %c0_55 = arith.constant 0 : index
    %33 = vector.load %arg4[%c2_53, %c0_54, %c0_55] : memref<3x384x128xbf16, #tpu.memory_space<vmem>>, vector<1x384x128xbf16>
    %34 = vector.shape_cast %33 : vector<1x384x128xbf16> to vector<384x128xbf16>
    %cst_56 = arith.constant dense<0.000000e+00> : vector<256x128xf32>
    %35 = tpu.matmul %32, %34, %cst_56 {dimension_numbers = #tpu.dot_dimension_numbers<[1], [0], [0], [1], [0, 0, 1, 1], [], []>} : vector<256x384xbf16>, vector<384x128xbf16>, vector<256x128xf32> -> vector<256x128xf32>
    %36 = arith.addf %30, %35 : vector<256x128xf32>
    %37 = vector.shape_cast %36 : vector<256x128xf32> to vector<16x16x128xf32>
    %c0_57 = arith.constant 0 : index
    %c0_58 = arith.constant 0 : index
    %c0_59 = arith.constant 0 : index
    %c0_60 = arith.constant 0 : index
    %38 = vector.load %arg5[%c0_57, %c0_58, %c0_59, %c0_60] : memref<1x16x16x128xf32, #tpu.memory_space<vmem>>, vector<1x16x16x128xf32>
    %39 = vector.shape_cast %38 : vector<1x16x16x128xf32> to vector<16x16x128xf32>
    %40 = vector.shape_cast %37 : vector<16x16x128xf32> to vector<1x16x16x128xf32>
    tpu.vector_store %arg5[%c0_57, %c0_58, %c0_59, %c0_60], %40 {strides = array<i32>} : memref<1x16x16x128xf32, #tpu.memory_space<vmem>>, vector<1x16x16x128xf32>,
    %cst_61 = arith.constant dense<0.000000e+00> : vector<128xf32>
    %41 = vector.multi_reduction <add>, %36, %cst_61 [0] : vector<256x128xf32> to vector<128xf32>
    %42 = vector.shape_cast %41 : vector<128xf32> to vector<1x128xf32>
    %c0_62 = arith.constant 0 : index
    %c0_63 = arith.constant 0 : index
    %c0_64 = arith.constant 0 : index
    %c0_65 = arith.constant 0 : index
    %43 = vector.load %arg6[%c0_62, %c0_63, %c0_64, %c0_65] : memref<1x1x2x128xf32, #tpu.memory_space<vmem>>, vector<1x1x1x128xf32>
    %44 = vector.shape_cast %43 : vector<1x1x1x128xf32> to vector<1x128xf32>
    %45 = vector.shape_cast %42 : vector<1x128xf32> to vector<1x1x1x128xf32>
    tpu.vector_store %arg6[%c0_62, %c0_63, %c0_64, %c0_65], %45 {strides = array<i32>} : memref<1x1x2x128xf32, #tpu.memory_space<vmem>>, vector<1x1x1x128xf32>,
    %46 = arith.mulf %36, %36 : vector<256x128xf32>
    %cst_66 = arith.constant dense<0.000000e+00> : vector<128xf32>
    %47 = vector.multi_reduction <add>, %46, %cst_66 [0] : vector<256x128xf32> to vector<128xf32>
    %48 = vector.shape_cast %47 : vector<128xf32> to vector<1x128xf32>
    %c0_67 = arith.constant 0 : index
    %c0_68 = arith.constant 0 : index
    %c1_69 = arith.constant 1 : index
    %c0_70 = arith.constant 0 : index
    %49 = vector.load %arg6[%c0_67, %c0_68, %c1_69, %c0_70] : memref<1x1x2x128xf32, #tpu.memory_space<vmem>>, vector<1x1x1x128xf32>
    %50 = vector.shape_cast %49 : vector<1x1x1x128xf32> to vector<1x128xf32>
    %51 = vector.shape_cast %48 : vector<1x128xf32> to vector<1x1x1x128xf32>
    tpu.vector_store %arg6[%c0_67, %c0_68, %c1_69, %c0_70], %51 {strides = array<i32>} : memref<1x1x2x128xf32, #tpu.memory_space<vmem>>, vector<1x1x1x128xf32>,
    return
  }
  func.func @transform_0(%arg0: i32, %arg1: i32) -> (i32, i32, i32, i32) {
    %c0_i32 = arith.constant 0 : i32
    %c0_i32_0 = arith.constant 0 : i32
    %c0_i32_1 = arith.constant 0 : i32
    return %arg0, %arg1, %c0_i32, %c0_i32_0 : i32, i32, i32, i32
  }
  func.func @transform_1(%arg0: i32, %arg1: i32) -> (i32, i32, i32, i32) {
    %c1_i32 = arith.constant 1 : i32
    %0 = arith.addi %arg1, %c1_i32 : i32
    %c2_i32 = arith.constant 2 : i32
    %1 = arith.muli %0, %c2_i32 : i32
    %c0_i32 = arith.constant 0 : i32
    %c0_i32_0 = arith.constant 0 : i32
    %c0_i32_1 = arith.constant 0 : i32
    return %arg0, %1, %c0_i32, %c0_i32_0 : i32, i32, i32, i32
  }
  func.func @transform_2(%arg0: i32, %arg1: i32) -> (i32, i32, i32) {
    %c0_i32 = arith.constant 0 : i32
    %c0_i32_0 = arith.constant 0 : i32
    %c0_i32_1 = arith.constant 0 : i32
    %c0_i32_2 = arith.constant 0 : i32
    return %c0_i32, %c0_i32_0, %c0_i32_1 : i32, i32, i32
  }
  func.func @transform_3(%arg0: i32, %arg1: i32) -> (i32, i32, i32, i32) {
    %c0_i32 = arith.constant 0 : i32
    %c0_i32_0 = arith.constant 0 : i32
    %c0_i32_1 = arith.constant 0 : i32
    return %arg0, %arg1, %c0_i32, %c0_i32_0 : i32, i32, i32, i32
  }
  func.func @transform_4(%arg0: i32, %arg1: i32) -> (i32, i32, i32, i32) {
    %c0_i32 = arith.constant 0 : i32
    %c0_i32_0 = arith.constant 0 : i32
    %c0_i32_1 = arith.constant 0 : i32
    return %arg0, %arg1, %c0_i32, %c0_i32_0 : i32, i32, i32, i32
  }
}

module attributes {stable_mosaic.version = 11 : i64} {
  func.func @_bn_relu_kernel(%arg0: i32, %arg1: i32, %arg2: memref<1x16x16x128xf32, #tpu.memory_space<vmem>>, %arg3: memref<1x128xf32, #tpu.memory_space<vmem>>, %arg4: memref<1x128xf32, #tpu.memory_space<vmem>>, %arg5: memref<1x16x16x128xbf16, #tpu.memory_space<vmem>>) attributes {dimension_semantics = [#tpu.dimension_semantics<parallel>, #tpu.dimension_semantics<parallel>], iteration_bounds = array<i64: 2, 1>, scalar_prefetch = 0 : i64, scratch_operands = 0 : i64, tpu.core_type = #tpu.core_type<tc>, window_params = [{transform_indices = @transform_0, window_bounds = array<i64: 1, 16, 16, 128>}, {pipeline_mode = #tpu.pipeline_mode<synchronous>, transform_indices = @transform_1, window_bounds = array<i64: 1, 128>}, {pipeline_mode = #tpu.pipeline_mode<synchronous>, transform_indices = @transform_2, window_bounds = array<i64: 1, 128>}, {transform_indices = @transform_3, window_bounds = array<i64: 1, 16, 16, 128>}]} {
    %c0 = arith.constant 0 : index
    %c0_0 = arith.constant 0 : index
    %c0_1 = arith.constant 0 : index
    %c0_2 = arith.constant 0 : index
    %0 = vector.load %arg2[%c0, %c0_0, %c0_1, %c0_2] : memref<1x16x16x128xf32, #tpu.memory_space<vmem>>, vector<1x16x16x128xf32>
    %1 = vector.shape_cast %0 : vector<1x16x16x128xf32> to vector<16x16x128xf32>
    %c0_3 = arith.constant 0 : index
    %c0_4 = arith.constant 0 : index
    %2 = vector.load %arg3[%c0_3, %c0_4] : memref<1x128xf32, #tpu.memory_space<vmem>>, vector<1x128xf32>
    %3 = vector.shape_cast %2 : vector<1x128xf32> to vector<1x1x128xf32>
    %c0_5 = arith.constant 0 : index
    %c0_6 = arith.constant 0 : index
    %4 = vector.load %arg4[%c0_5, %c0_6] : memref<1x128xf32, #tpu.memory_space<vmem>>, vector<1x128xf32>
    %5 = vector.shape_cast %4 : vector<1x128xf32> to vector<1x1x128xf32>
    %6 = vector.broadcast %3 : vector<1x1x128xf32> to vector<16x16x128xf32>
    %7 = arith.mulf %1, %6 : vector<16x16x128xf32>
    %8 = vector.broadcast %5 : vector<1x1x128xf32> to vector<16x16x128xf32>
    %9 = arith.addf %7, %8 : vector<16x16x128xf32>
    %cst = arith.constant 0.000000e+00 : f32
    %10 = vector.broadcast %cst : f32 to vector<16x16x128xf32>
    %11 = arith.maximumf %9, %10 : vector<16x16x128xf32>
    %12 = arith.truncf %11 : vector<16x16x128xf32> to vector<16x16x128xbf16>
    %c0_7 = arith.constant 0 : index
    %c0_8 = arith.constant 0 : index
    %c0_9 = arith.constant 0 : index
    %c0_10 = arith.constant 0 : index
    %13 = vector.load %arg5[%c0_7, %c0_8, %c0_9, %c0_10] : memref<1x16x16x128xbf16, #tpu.memory_space<vmem>>, vector<1x16x16x128xbf16>
    %14 = vector.shape_cast %13 : vector<1x16x16x128xbf16> to vector<16x16x128xbf16>
    %15 = vector.shape_cast %12 : vector<16x16x128xbf16> to vector<1x16x16x128xbf16>
    tpu.vector_store %arg5[%c0_7, %c0_8, %c0_9, %c0_10], %15 {strides = array<i32>} : memref<1x16x16x128xbf16, #tpu.memory_space<vmem>>, vector<1x16x16x128xbf16>,
    return
  }
  func.func @transform_0(%arg0: i32, %arg1: i32) -> (i32, i32, i32, i32) {
    %c0_i32 = arith.constant 0 : i32
    %c0_i32_0 = arith.constant 0 : i32
    %c0_i32_1 = arith.constant 0 : i32
    return %arg0, %arg1, %c0_i32, %c0_i32_0 : i32, i32, i32, i32
  }
  func.func @transform_1(%arg0: i32, %arg1: i32) -> (i32, i32) {
    %c0_i32 = arith.constant 0 : i32
    %c0_i32_0 = arith.constant 0 : i32
    %c0_i32_1 = arith.constant 0 : i32
    return %c0_i32, %c0_i32_0 : i32, i32
  }
  func.func @transform_2(%arg0: i32, %arg1: i32) -> (i32, i32) {
    %c0_i32 = arith.constant 0 : i32
    %c0_i32_0 = arith.constant 0 : i32
    %c0_i32_1 = arith.constant 0 : i32
    return %c0_i32, %c0_i32_0 : i32, i32
  }
  func.func @transform_3(%arg0: i32, %arg1: i32) -> (i32, i32, i32, i32) {
    %c0_i32 = arith.constant 0 : i32
    %c0_i32_0 = arith.constant 0 : i32
    %c0_i32_1 = arith.constant 0 : i32
    return %arg0, %arg1, %c0_i32, %c0_i32_0 : i32, i32, i32, i32
  }
}

module attributes {stable_mosaic.version = 11 : i64} {
  func.func @_bn_relu_kernel(%arg0: i32, %arg1: i32, %arg2: memref<1x16x16x128xf32, #tpu.memory_space<vmem>>, %arg3: memref<1x128xf32, #tpu.memory_space<vmem>>, %arg4: memref<1x128xf32, #tpu.memory_space<vmem>>, %arg5: memref<1x16x16x128xf32, #tpu.memory_space<vmem>>) attributes {dimension_semantics = [#tpu.dimension_semantics<parallel>, #tpu.dimension_semantics<parallel>], iteration_bounds = array<i64: 2, 1>, scalar_prefetch = 0 : i64, scratch_operands = 0 : i64, tpu.core_type = #tpu.core_type<tc>, window_params = [{transform_indices = @transform_0, window_bounds = array<i64: 1, 16, 16, 128>}, {pipeline_mode = #tpu.pipeline_mode<synchronous>, transform_indices = @transform_1, window_bounds = array<i64: 1, 128>}, {pipeline_mode = #tpu.pipeline_mode<synchronous>, transform_indices = @transform_2, window_bounds = array<i64: 1, 128>}, {transform_indices = @transform_3, window_bounds = array<i64: 1, 16, 16, 128>}]} {
    %c0 = arith.constant 0 : index
    %c0_0 = arith.constant 0 : index
    %c0_1 = arith.constant 0 : index
    %c0_2 = arith.constant 0 : index
    %0 = vector.load %arg2[%c0, %c0_0, %c0_1, %c0_2] : memref<1x16x16x128xf32, #tpu.memory_space<vmem>>, vector<1x16x16x128xf32>
    %1 = vector.shape_cast %0 : vector<1x16x16x128xf32> to vector<16x16x128xf32>
    %c0_3 = arith.constant 0 : index
    %c0_4 = arith.constant 0 : index
    %2 = vector.load %arg3[%c0_3, %c0_4] : memref<1x128xf32, #tpu.memory_space<vmem>>, vector<1x128xf32>
    %3 = vector.shape_cast %2 : vector<1x128xf32> to vector<1x1x128xf32>
    %c0_5 = arith.constant 0 : index
    %c0_6 = arith.constant 0 : index
    %4 = vector.load %arg4[%c0_5, %c0_6] : memref<1x128xf32, #tpu.memory_space<vmem>>, vector<1x128xf32>
    %5 = vector.shape_cast %4 : vector<1x128xf32> to vector<1x1x128xf32>
    %6 = vector.broadcast %3 : vector<1x1x128xf32> to vector<16x16x128xf32>
    %7 = arith.mulf %1, %6 : vector<16x16x128xf32>
    %8 = vector.broadcast %5 : vector<1x1x128xf32> to vector<16x16x128xf32>
    %9 = arith.addf %7, %8 : vector<16x16x128xf32>
    %cst = arith.constant 0.000000e+00 : f32
    %10 = vector.broadcast %cst : f32 to vector<16x16x128xf32>
    %11 = arith.maximumf %9, %10 : vector<16x16x128xf32>
    %c0_7 = arith.constant 0 : index
    %c0_8 = arith.constant 0 : index
    %c0_9 = arith.constant 0 : index
    %c0_10 = arith.constant 0 : index
    %12 = vector.load %arg5[%c0_7, %c0_8, %c0_9, %c0_10] : memref<1x16x16x128xf32, #tpu.memory_space<vmem>>, vector<1x16x16x128xf32>
    %13 = vector.shape_cast %12 : vector<1x16x16x128xf32> to vector<16x16x128xf32>
    %14 = vector.shape_cast %11 : vector<16x16x128xf32> to vector<1x16x16x128xf32>
    tpu.vector_store %arg5[%c0_7, %c0_8, %c0_9, %c0_10], %14 {strides = array<i32>} : memref<1x16x16x128xf32, #tpu.memory_space<vmem>>, vector<1x16x16x128xf32>,
    return
  }
  func.func @transform_0(%arg0: i32, %arg1: i32) -> (i32, i32, i32, i32) {
    %c0_i32 = arith.constant 0 : i32
    %c0_i32_0 = arith.constant 0 : i32
    %c0_i32_1 = arith.constant 0 : i32
    return %arg0, %arg1, %c0_i32, %c0_i32_0 : i32, i32, i32, i32
  }
  func.func @transform_1(%arg0: i32, %arg1: i32) -> (i32, i32) {
    %c0_i32 = arith.constant 0 : i32
    %c0_i32_0 = arith.constant 0 : i32
    %c0_i32_1 = arith.constant 0 : i32
    return %c0_i32, %c0_i32_0 : i32, i32
  }
  func.func @transform_2(%arg0: i32, %arg1: i32) -> (i32, i32) {
    %c0_i32 = arith.constant 0 : i32
    %c0_i32_0 = arith.constant 0 : i32
    %c0_i32_1 = arith.constant 0 : i32
    return %c0_i32, %c0_i32_0 : i32, i32
  }
  func.func @transform_3(%arg0: i32, %arg1: i32) -> (i32, i32, i32, i32) {
    %c0_i32 = arith.constant 0 : i32
    %c0_i32_0 = arith.constant 0 : i32
    %c0_i32_1 = arith.constant 0 : i32
    return %arg0, %arg1, %c0_i32, %c0_i32_0 : i32, i32, i32, i32
  }
}

</mosaic_0001>

<llo_original>
// kernel: double_conv_forward.5
$region0: #{double_conv_forward.5}
  #allocation0 [shape = 'u32[]', space=smem, size = 0x4, offset = 0x4, fixed_abs, tag = 'smem constant byte address 0x4 - core index']
  #allocation1 [shape = 'u32[144,128]{1,0:T(1,128)}', space=vmem, size = 0x12000, scoped, tag = 'internal scratch']
  %s0 = inlined_call_operand.vmem [shape: f32[2,16,16,128], index: 0, kind: input, shape index: {}]
  %s1 = inlined_call_operand.vmem [shape: f32[1,128], index: 1, kind: input, shape index: {}]
  %s2 = inlined_call_operand.vmem [shape: f32[1,128], index: 2, kind: input, shape index: {}]
  %s3 = inlined_call_operand.vmem [shape: bf16[2,16,16,128], index: 3, kind: output, shape index: {}]
  %s4 = sld [smem:[#allocation0]]
  $region45: #{double_conv_forward.5} parent=0
    _
  %s6 = ssub.s32 1, %s4
  %s7 = scalar_select 0, %s6, %s4
  loop: start=0, step=1, limit=4
  $region2: #{double_conv_forward.5} parent=0 // loop_pre_header
    _
  $region3: #{double_conv_forward.5} parent=0 // loop_header
    %s9 = sphi 0, %s13
    %p10 = scmp.ge.s32.totalorder %s9, 4
    %s16 = sphi 0, %s28
    %s17 = sphi 0, %s24
    %s18 = sphi 0, %s16
    %s19 = sphi 0, %s17
    %s20 = sphi 0, %s18
    %s21 = sphi 0, %s19
    %s33 = sphi 0, %s35
    %s36 = sphi 0, %s33
    %s37 = sphi 0, %s36
    %s53 = sphi 0, %s37
    %s57 = sphi 0, %s57
    %s59 = sphi 0, %s57
    %s60 = sphi 0, %s59
    %s74 = sphi 0, %s60
    %s78 = sphi 0, %s78
    %s80 = sphi 0, %s78
    %s81 = sphi 0, %s80
    %s95 = sphi 0, %s81
    %s103 = sphi 0, %s105
    %s106 = sphi 0, %s103
    %s107 = sphi 0, %s106
    %s123 = sphi 0, %s107
  $region4: #{double_conv_forward.5} parent=0 // loop_header_branch
    %12 = sbr.rel (%p10) target = $region8
  $region5: #{double_conv_forward.5} parent=0 // loop_body
    %s14 = ssub.s32 %s9, 1
    %s15 = ssub.s32 %s9, 2
    %s22 = sadd.s32 1, %s17
    %p23 = scmp.ge.s32.totalorder %s22, 1
    %s24 = scalar_select %p23, 0, %s22
    %s25 = sadd.s32 1, %s16
    %s26 = scalar_select %p23, %s25, %s16
    %p27 = scmp.ge.s32.totalorder %s26, 2
    %s28 = scalar_select %p27, 0, %s26
    %s29 = ssub.s32 %s16, %s28
    %s30 = ssub.s32 %s17, %s24
    %s31 = sor.u32 %s29, %s30
    %p32 = scmp.eq.s32.totalorder %s31, 0
    %s34 = sadd.s32 %s33, 1
    %s35 = scalar_select %p32, %s33, %s34
    %p38 = pneg %p32
    %p39 = scmp.eq.s32.totalorder %s9, 1
    %p40 = por %p38, %p39
    %p41 = scmp.ne.s32.totalorder %s33, %s36
    %p42 = scmp.eq.s32.totalorder %s9, 0
    %p43 = por %p41, %p42
    %p44 = scmp.ne.s32.totalorder %s33, %s36
    %p45 = scmp.eq.s32.totalorder %s14, 1
    %p46 = por %p44, %p45
    %p47 = scmp.ne.s32.totalorder %s36, %s37
    %p48 = scmp.eq.s32.totalorder %s14, 0
    %p49 = por %p47, %p48
    %p50 = scmp.ne.s32.totalorder %s36, %s37
    %p51 = scmp.eq.s32.totalorder %s15, 1
    %p52 = por %p50, %p51
    %p54 = scmp.ne.s32.totalorder %s37, %s53
    %p55 = scmp.eq.s32.totalorder %s15, 0
    %p56 = por %p54, %p55
    %s58 = sadd.s32 %s57, 1
    %p61 = scmp.eq.s32.totalorder %s9, 1
    %p62 = scmp.ne.s32.totalorder %s57, %s59
    %p63 = scmp.eq.s32.totalorder %s9, 0
    %p64 = por %p62, %p63
    %p65 = scmp.ne.s32.totalorder %s57, %s59
    %p66 = scmp.eq.s32.totalorder %s14, 1
    %p67 = por %p65, %p66
    %p68 = scmp.ne.s32.totalorder %s59, %s60
    %p69 = scmp.eq.s32.totalorder %s14, 0
    %p70 = por %p68, %p69
    %p71 = scmp.ne.s32.totalorder %s59, %s60
    %p72 = scmp.eq.s32.totalorder %s15, 1
    %p73 = por %p71, %p72
    %p75 = scmp.ne.s32.totalorder %s60, %s74
    %p76 = scmp.eq.s32.totalorder %s15, 0
    %p77 = por %p75, %p76
    %s79 = sadd.s32 %s78, 1
    %p82 = scmp.eq.s32.totalorder %s9, 1
    %p83 = scmp.ne.s32.totalorder %s78, %s80
    %p84 = scmp.eq.s32.totalorder %s9, 0
    %p85 = por %p83, %p84
    %p86 = scmp.ne.s32.totalorder %s78, %s80
    %p87 = scmp.eq.s32.totalorder %s14, 1
    %p88 = por %p86, %p87
    %p89 = scmp.ne.s32.totalorder %s80, %s81
    %p90 = scmp.eq.s32.totalorder %s14, 0
    %p91 = por %p89, %p90
    %p92 = scmp.ne.s32.totalorder %s80, %s81
    %p93 = scmp.eq.s32.totalorder %s15, 1
    %p94 = por %p92, %p93
    %p96 = scmp.ne.s32.totalorder %s81, %s95
    %p97 = scmp.eq.s32.totalorder %s15, 0
    %p98 = por %p96, %p97
    %s99 = ssub.s32 %s16, %s28
    %s100 = ssub.s32 %s17, %s24
    %s101 = sor.u32 %s99, %s100
    %p102 = scmp.eq.s32.totalorder %s101, 0
    %s104 = sadd.s32 %s103, 1
    %s105 = scalar_select %p102, %s103, %s104
    %p108 = pneg %p102
    %p109 = scmp.eq.s32.totalorder %s9, 1
    %p110 = por %p108, %p109
    %p111 = scmp.ne.s32.totalorder %s103, %s106
    %p112 = scmp.eq.s32.totalorder %s9, 0
    %p113 = por %p111, %p112
    %p114 = scmp.ne.s32.totalorder %s103, %s106
    %p115 = scmp.eq.s32.totalorder %s14, 1
    %p116 = por %p114, %p115
    %p117 = scmp.ne.s32.totalorder %s106, %s107
    %p118 = scmp.eq.s32.totalorder %s14, 0
    %p119 = por %p117, %p118
    %p120 = scmp.ne.s32.totalorder %s106, %s107
    %p121 = scmp.eq.s32.totalorder %s15, 1
    %p122 = por %p120, %p121
    %p124 = scmp.ne.s32.totalorder %s107, %s123
    %p125 = scmp.eq.s32.totalorder %s15, 0
    %p126 = por %p124, %p125
    %p127 = scmp.le.s32.totalorder 1, %s9
    %p128 = scmp.lt.s32.totalorder %s9, 3
    %p129 = pnand %p127, %p128
    %p130 = pneg %p129
    // Predicated region
    $region9: #{double_conv_forward.5} parent=5 // pred_check
      _
    $region10: #{double_conv_forward.5} parent=5 // pred_check_branch
      %132 = sbr.rel (%p129) target = $region12
    $region11: #{double_conv_forward.5} parent=5 // pred_region
      %s133 = ssub.s32 %s9, 1
      // Predicated region
      $region13: #{double_conv_forward.5} parent=11 // pred_check
        %p134 = pneg %p70
      $region14: #{double_conv_forward.5} parent=11 // pred_check_branch
        %136 = sbr.rel (%p134) target = $region16
      $region15: #{double_conv_forward.5} parent=11 // pred_region
        _
      $region16: #{double_conv_forward.5} parent=11 // pred_fallthru
        _
      // Predicated region
      $region17: #{double_conv_forward.5} parent=11 // pred_check
        %p137 = pneg %p91
      $region18: #{double_conv_forward.5} parent=11 // pred_check_branch
        %139 = sbr.rel (%p137) target = $region20
      $region19: #{double_conv_forward.5} parent=11 // pred_region
        _
      $region20: #{double_conv_forward.5} parent=11 // pred_fallthru
        _
    $region12: #{double_conv_forward.5} parent=5 // pred_fallthru
      _
    %p140 = scmp.lt.s32.totalorder %s9, 2
    // Predicated region
    $region21: #{double_conv_forward.5} parent=5 // pred_check
      %p141 = pneg %p140
    $region22: #{double_conv_forward.5} parent=5 // pred_check_branch
      %143 = sbr.rel (%p141) target = $region24
    $region23: #{double_conv_forward.5} parent=5 // pred_region
      // Predicated region
      $region25: #{double_conv_forward.5} parent=23 // pred_check
        %p144 = pneg %p43
      $region26: #{double_conv_forward.5} parent=23 // pred_check_branch
        %146 = sbr.rel (%p144) target = $region28
      $region27: #{double_conv_forward.5} parent=23 // pred_region
        %s147 = smul.u32 16, %s17
        %p148 = scmp.lt.s32.totalorder %s16, 1
        %s149 = scalar_select %p148, %s16, 1
        %p150 = scmp.lt.s32.totalorder %s147, 15
        %s151 = scalar_select %p150, %s147, 15
        %s152 = smul.addr %s151, 2
        %s153 = smul.addr %s149, 32
        %s154 = sadd.s32 %s152, %s153
        %s155 = smul.addr %s154, 8
        %s156 = scalar_lea.vmem %s0, %s155
        %s157 = smul.u32 16, %s17
      $region28: #{double_conv_forward.5} parent=23 // pred_fallthru
        _
    $region24: #{double_conv_forward.5} parent=5 // pred_fallthru
      _
    %p158 = scmp.le.s32.totalorder 1, %s9
    %p159 = scmp.lt.s32.totalorder %s9, 3
    %p160 = pnand %p158, %p159
    %p161 = pneg %p160
    // Predicated region
    $region29: #{double_conv_forward.5} parent=5 // pred_check
      _
    $region30: #{double_conv_forward.5} parent=5 // pred_check_branch
      %163 = sbr.rel (%p160) target = $region32
    $region31: #{double_conv_forward.5} parent=5 // pred_region
      %s164 = ssub.s32 %s9, 1
      %s165 = smul.u32 16, %s19
      %p166 = scmp.lt.s32.totalorder %s18, 1
      %s167 = scalar_select %p166, %s18, 1
      %p168 = scmp.lt.s32.totalorder %s165, 15
      %s169 = scalar_select %p168, %s165, 15
      %s170 = smul.addr %s169, 2
      %s171 = smul.addr %s167, 32
      %s172 = sadd.s32 %s170, %s171
      %s173 = smul.addr %s172, 8
      %s174 = scalar_lea.vmem %s0, %s173
      %p175 = pneg %p49
      %p176 = pneg %p46
      %p177 = pneg %p70
      %p178 = pneg %p67
      %p179 = pneg %p91
      %p180 = pneg %p88
      %p181 = pneg %p119
      %p182 = pneg %p116
      %s183 = smul.u32 16, %s19
      %p184 = scmp.lt.s32.totalorder %s18, 1
      %s185 = scalar_select %p184, %s18, 1
      %p186 = scmp.lt.s32.totalorder %s183, 15
      %s187 = scalar_select %p186, %s183, 15
      %s188 = smul.addr %s187, 2
      %s189 = smul.addr %s185, 32
      %s190 = sadd.s32 %s188, %s189
      %s191 = smul.addr %s190, 4
      %s192 = scalar_lea.vmem %s3, %s191
      %s193 = smul.u32 16, %s19
      %p194 = scmp.lt.s32.totalorder %s18, 1
      %s195 = scalar_select %p194, %s18, 1
      %p196 = scmp.lt.s32.totalorder %s193, 15
      %s197 = scalar_select %p196, %s193, 15
      %s198 = smul.addr %s197, 2
      %s199 = smul.addr %s195, 32
      %s200 = sadd.s32 %s198, %s199
      %s201 = smul.addr %s200, 8
      %s202 = scalar_lea.vmem %s0, %s201
      %s203 = smul.u32 16, %s19
      %s204 = smul.u32 16, %s19
      %p205 = scmp.lt.s32.totalorder %s18, 1
      %s206 = scalar_select %p205, %s18, 1
      %p207 = scmp.lt.s32.totalorder %s204, 15
      %s208 = scalar_select %p207, %s204, 15
      %s209 = smul.addr %s208, 2
      %s210 = smul.addr %s206, 32
      %s211 = sadd.s32 %s209, %s210
      %s212 = smul.addr %s211, 4
      %s213 = scalar_lea.vmem %s3, %s212
      %s214 = smul.u32 16, %s19
      %v215 = vld [vmem:[%s202] sm:$0xff]
      %v216 = vld [vmem:[%s202 + $0x8] sm:$0xff]
      %v217 = vld [vmem:[%s202 + $0x10] sm:$0xff]
      %v218 = vld [vmem:[%s202 + $0x18] sm:$0xff]
      %v219 = vld [vmem:[%s202 + $0x20] sm:$0xff]
      %v220 = vld [vmem:[%s202 + $0x28] sm:$0xff]
      %v221 = vld [vmem:[%s202 + $0x30] sm:$0xff]
      %v222 = vld [vmem:[%s202 + $0x38] sm:$0xff]
      %v223 = vld [vmem:[%s202 + $0x40] sm:$0xff]
      %v224 = vld [vmem:[%s202 + $0x48] sm:$0xff]
      %v225 = vld [vmem:[%s202 + $0x50] sm:$0xff]
      %v226 = vld [vmem:[%s202 + $0x58] sm:$0xff]
      %v227 = vld [vmem:[%s202 + $0x60] sm:$0xff]
      %v228 = vld [vmem:[%s202 + $0x68] sm:$0xff]
      %v229 = vld [vmem:[%s202 + $0x70] sm:$0xff]
      %v230 = vld [vmem:[%s202 + $0x78] sm:$0xff]
      %v231 = vld [vmem:[%s202 + $0x80] sm:$0xff]
      %v232 = vld [vmem:[%s202 + $0x88] sm:$0xff]
      %v233 = vld [vmem:[%s202 + $0x90] sm:$0xff]
      %v234 = vld [vmem:[%s202 + $0x98] sm:$0xff]
      %v235 = vld [vmem:[%s202 + $0xa0] sm:$0xff]
      %v236 = vld [vmem:[%s202 + $0xa8] sm:$0xff]
      %v237 = vld [vmem:[%s202 + $0xb0] sm:$0xff]
      %v238 = vld [vmem:[%s202 + $0xb8] sm:$0xff]
      %v239 = vld [vmem:[%s202 + $0xc0] sm:$0xff]
      %v240 = vld [vmem:[%s202 + $0xc8] sm:$0xff]
      %v241 = vld [vmem:[%s202 + $0xd0] sm:$0xff]
      %v242 = vld [vmem:[%s202 + $0xd8] sm:$0xff]
      %v243 = vld [vmem:[%s202 + $0xe0] sm:$0xff]
      %v244 = vld [vmem:[%s202 + $0xe8] sm:$0xff]
      %v245 = vld [vmem:[%s202 + $0xf0] sm:$0xff]
      %v246 = vld [vmem:[%s202 + $0xf8] sm:$0xff]
      %v247 = vld [vmem:[%s1] sm:$0x1]
      %v248 = vld [vmem:[%s2] sm:$0x1]
      %v250 = vlaneseq
      %v251 = vshrl.u32 %v250, 7
      %v252 = vsub.s32 0, %v251
      %v253 = vrot.slane %v247, %v252
      %v255 = vmul.f32 %v215, %v253
      %v256 = vmul.f32 %v216, %v253
      %v257 = vmul.f32 %v217, %v253
      %v258 = vmul.f32 %v218, %v253
      %v259 = vmul.f32 %v219, %v253
      %v260 = vmul.f32 %v220, %v253
      %v261 = vmul.f32 %v221, %v253
      %v262 = vmul.f32 %v222, %v253
      %v263 = vmul.f32 %v223, %v253
      %v264 = vmul.f32 %v224, %v253
      %v265 = vmul.f32 %v225, %v253
      %v266 = vmul.f32 %v226, %v253
      %v267 = vmul.f32 %v227, %v253
      %v268 = vmul.f32 %v228, %v253
      %v269 = vmul.f32 %v229, %v253
      %v270 = vmul.f32 %v230, %v253
      %v271 = vmul.f32 %v231, %v253
      %v272 = vmul.f32 %v232, %v253
      %v273 = vmul.f32 %v233, %v253
      %v274 = vmul.f32 %v234, %v253
      %v275 = vmul.f32 %v235, %v253
      %v276 = vmul.f32 %v236, %v253
      %v277 = vmul.f32 %v237, %v253
      %v278 = vmul.f32 %v238, %v253
      %v279 = vmul.f32 %v239, %v253
      %v280 = vmul.f32 %v240, %v253
      %v281 = vmul.f32 %v241, %v253
      %v282 = vmul.f32 %v242, %v253
      %v283 = vmul.f32 %v243, %v253
      %v284 = vmul.f32 %v244, %v253
      %v285 = vmul.f32 %v245, %v253
      %v286 = vmul.f32 %v246, %v253
      %v288 = vlaneseq
      %v289 = vshrl.u32 %v288, 7
      %v290 = vsub.s32 0, %v289
      %v291 = vrot.slane %v248, %v290
      %v293 = vadd.f32 %v255, %v291
      %v294 = vadd.f32 %v256, %v291
      %v295 = vadd.f32 %v257, %v291
      %v296 = vadd.f32 %v258, %v291
      %v297 = vadd.f32 %v259, %v291
      %v298 = vadd.f32 %v260, %v291
      %v299 = vadd.f32 %v261, %v291
      %v300 = vadd.f32 %v262, %v291
      %v301 = vadd.f32 %v263, %v291
      %v302 = vadd.f32 %v264, %v291
      %v303 = vadd.f32 %v265, %v291
      %v304 = vadd.f32 %v266, %v291
      %v305 = vadd.f32 %v267, %v291
      %v306 = vadd.f32 %v268, %v291
      %v307 = vadd.f32 %v269, %v291
      %v308 = vadd.f32 %v270, %v291
      %v309 = vadd.f32 %v271, %v291
      %v310 = vadd.f32 %v272, %v291
      %v311 = vadd.f32 %v273, %v291
      %v312 = vadd.f32 %v274, %v291
      %v313 = vadd.f32 %v275, %v291
      %v314 = vadd.f32 %v276, %v291
      %v315 = vadd.f32 %v277, %v291
      %v316 = vadd.f32 %v278, %v291
      %v317 = vadd.f32 %v279, %v291
      %v318 = vadd.f32 %v280, %v291
      %v319 = vadd.f32 %v281, %v291
      %v320 = vadd.f32 %v282, %v291
      %v321 = vadd.f32 %v283, %v291
      %v322 = vadd.f32 %v284, %v291
      %v323 = vadd.f32 %v285, %v291
      %v324 = vadd.f32 %v286, %v291
      %v325 = vmax.f32 %v293, 0.0
      %v326 = vmax.f32 %v294, 0.0
      %v327 = vmax.f32 %v295, 0.0
      %v328 = vmax.f32 %v296, 0.0
      %v329 = vmax.f32 %v297, 0.0
      %v330 = vmax.f32 %v298, 0.0
      %v331 = vmax.f32 %v299, 0.0
      %v332 = vmax.f32 %v300, 0.0
      %v333 = vmax.f32 %v301, 0.0
      %v334 = vmax.f32 %v302, 0.0
      %v335 = vmax.f32 %v303, 0.0
      %v336 = vmax.f32 %v304, 0.0
      %v337 = vmax.f32 %v305, 0.0
      %v338 = vmax.f32 %v306, 0.0
      %v339 = vmax.f32 %v307, 0.0
      %v340 = vmax.f32 %v308, 0.0
      %v341 = vmax.f32 %v309, 0.0
      %v342 = vmax.f32 %v310, 0.0
      %v343 = vmax.f32 %v311, 0.0
      %v344 = vmax.f32 %v312, 0.0
      %v345 = vmax.f32 %v313, 0.0
      %v346 = vmax.f32 %v314, 0.0
      %v347 = vmax.f32 %v315, 0.0
      %v348 = vmax.f32 %v316, 0.0
      %v349 = vmax.f32 %v317, 0.0
      %v350 = vmax.f32 %v318, 0.0
      %v351 = vmax.f32 %v319, 0.0
      %v352 = vmax.f32 %v320, 0.0
      %v353 = vmax.f32 %v321, 0.0
      %v354 = vmax.f32 %v322, 0.0
      %v355 = vmax.f32 %v323, 0.0
      %v356 = vmax.f32 %v324, 0.0
      %v357 = vpack.c.bf16 %v326, %v325
      %v358 = vpack.c.bf16 %v328, %v327
      %v359 = vpack.c.bf16 %v330, %v329
      %v360 = vpack.c.bf16 %v332, %v331
      %v361 = vpack.c.bf16 %v334, %v333
      %v362 = vpack.c.bf16 %v336, %v335
      %v363 = vpack.c.bf16 %v338, %v337
      %v364 = vpack.c.bf16 %v340, %v339
      %v365 = vpack.c.bf16 %v342, %v341
      %v366 = vpack.c.bf16 %v344, %v343
      %v367 = vpack.c.bf16 %v346, %v345
      %v368 = vpack.c.bf16 %v348, %v347
      %v369 = vpack.c.bf16 %v350, %v349
      %v370 = vpack.c.bf16 %v352, %v351
      %v371 = vpack.c.bf16 %v354, %v353
      %v372 = vpack.c.bf16 %v356, %v355
      %v389 = vunpack.c.l.b16 %v357
      %v390 = vunpack.c.h.b16 %v357
      %v391 = vunpack.c.l.b16 %v358
      %v392 = vunpack.c.h.b16 %v358
      %v393 = vunpack.c.l.b16 %v359
      %v394 = vunpack.c.h.b16 %v359
      %v395 = vunpack.c.l.b16 %v360
      %v396 = vunpack.c.h.b16 %v360
      %v397 = vunpack.c.l.b16 %v361
      %v398 = vunpack.c.h.b16 %v361
      %v399 = vunpack.c.l.b16 %v362
      %v400 = vunpack.c.h.b16 %v362
      %v401 = vunpack.c.l.b16 %v363
      %v402 = vunpack.c.h.b16 %v363
      %v403 = vunpack.c.l.b16 %v364
      %v404 = vunpack.c.h.b16 %v364
      %v405 = vunpack.c.l.b16 %v365
      %v406 = vunpack.c.h.b16 %v365
      %v407 = vunpack.c.l.b16 %v366
      %v408 = vunpack.c.h.b16 %v366
      %v409 = vunpack.c.l.b16 %v367
      %v410 = vunpack.c.h.b16 %v367
      %v411 = vunpack.c.l.b16 %v368
      %v412 = vunpack.c.h.b16 %v368
      %v413 = vunpack.c.l.b16 %v369
      %v414 = vunpack.c.h.b16 %v369
      %v415 = vunpack.c.l.b16 %v370
      %v416 = vunpack.c.h.b16 %v370
      %v417 = vunpack.c.l.b16 %v371
      %v418 = vunpack.c.h.b16 %v371
      %v419 = vunpack.c.l.b16 %v372
      %v420 = vunpack.c.h.b16 %v372
      %v421 = vpack.c.b16 %v389, %v389
      %v422 = vpack.c.b16 %v390, %v390
      %v423 = vpack.c.b16 %v391, %v391
      %v424 = vpack.c.b16 %v392, %v392
      %v425 = vpack.c.b16 %v393, %v393
      %v426 = vpack.c.b16 %v394, %v394
      %v427 = vpack.c.b16 %v395, %v395
      %v428 = vpack.c.b16 %v396, %v396
      %v429 = vpack.c.b16 %v397, %v397
      %v430 = vpack.c.b16 %v398, %v398
      %v431 = vpack.c.b16 %v399, %v399
      %v432 = vpack.c.b16 %v400, %v400
      %v433 = vpack.c.b16 %v401, %v401
      %v434 = vpack.c.b16 %v402, %v402
      %v435 = vpack.c.b16 %v403, %v403
      %v436 = vpack.c.b16 %v404, %v404
      %v437 = vpack.c.b16 %v405, %v405
      %v438 = vpack.c.b16 %v406, %v406
      %v439 = vpack.c.b16 %v407, %v407
      %v440 = vpack.c.b16 %v408, %v408
      %v441 = vpack.c.b16 %v409, %v409
      %v442 = vpack.c.b16 %v410, %v410
      %v443 = vpack.c.b16 %v411, %v411
      %v444 = vpack.c.b16 %v412, %v412
      %v445 = vpack.c.b16 %v413, %v413
      %v446 = vpack.c.b16 %v414, %v414
      %v447 = vpack.c.b16 %v415, %v415
      %v448 = vpack.c.b16 %v416, %v416
      %v449 = vpack.c.b16 %v417, %v417
      %v450 = vpack.c.b16 %v418, %v418
      %v451 = vpack.c.b16 %v419, %v419
      %v452 = vpack.c.b16 %v420, %v420
      %485 = vst [vmem:[%s213] sm:$0xf] %v421
      %486 = vst [vmem:[%s213 + $0x4] sm:$0xf] %v422
      %487 = vst [vmem:[%s213 + $0x8] sm:$0xf] %v423
      %488 = vst [vmem:[%s213 + $0xc] sm:$0xf] %v424
      %489 = vst [vmem:[%s213 + $0x10] sm:$0xf] %v425
      %490 = vst [vmem:[%s213 + $0x14] sm:$0xf] %v426
      %491 = vst [vmem:[%s213 + $0x18] sm:$0xf] %v427
      %492 = vst [vmem:[%s213 + $0x1c] sm:$0xf] %v428
      %493 = vst [vmem:[%s213 + $0x20] sm:$0xf] %v429
      %494 = vst [vmem:[%s213 + $0x24] sm:$0xf] %v430
      %495 = vst [vmem:[%s213 + $0x28] sm:$0xf] %v431
      %496 = vst [vmem:[%s213 + $0x2c] sm:$0xf] %v432
      %497 = vst [vmem:[%s213 + $0x30] sm:$0xf] %v433
      %498 = vst [vmem:[%s213 + $0x34] sm:$0xf] %v434
      %499 = vst [vmem:[%s213 + $0x38] sm:$0xf] %v435
      %500 = vst [vmem:[%s213 + $0x3c] sm:$0xf] %v436
      %501 = vst [vmem:[%s213 + $0x40] sm:$0xf] %v437
      %502 = vst [vmem:[%s213 + $0x44] sm:$0xf] %v438
      %503 = vst [vmem:[%s213 + $0x48] sm:$0xf] %v439
      %504 = vst [vmem:[%s213 + $0x4c] sm:$0xf] %v440
      %505 = vst [vmem:[%s213 + $0x50] sm:$0xf] %v441
      %506 = vst [vmem:[%s213 + $0x54] sm:$0xf] %v442
      %507 = vst [vmem:[%s213 + $0x58] sm:$0xf] %v443
      %508 = vst [vmem:[%s213 + $0x5c] sm:$0xf] %v444
      %509 = vst [vmem:[%s213 + $0x60] sm:$0xf] %v445
      %510 = vst [vmem:[%s213 + $0x64] sm:$0xf] %v446
      %511 = vst [vmem:[%s213 + $0x68] sm:$0xf] %v447
      %512 = vst [vmem:[%s213 + $0x6c] sm:$0xf] %v448
      %513 = vst [vmem:[%s213 + $0x70] sm:$0xf] %v449
      %514 = vst [vmem:[%s213 + $0x74] sm:$0xf] %v450
      %515 = vst [vmem:[%s213 + $0x78] sm:$0xf] %v451
      %516 = vst [vmem:[%s213 + $0x7c] sm:$0xf] %v452
      %s517 = smul.u32 16, %s19
      %p518 = scmp.lt.s32.totalorder %s18, 1
      %s519 = scalar_select %p518, %s18, 1
      %p520 = scmp.lt.s32.totalorder %s517, 15
      %s521 = scalar_select %p520, %s517, 15
      %s522 = smul.addr %s521, 2
      %s523 = smul.addr %s519, 32
      %s524 = sadd.s32 %s522, %s523
      %s525 = smul.addr %s524, 4
      %s526 = scalar_lea.vmem %s3, %s525
      // Predicated region
      $region33: #{double_conv_forward.5} parent=31 // pred_check
        %p527 = pneg %p116
      $region34: #{double_conv_forward.5} parent=31 // pred_check_branch
        %529 = sbr.rel (%p527) target = $region36
      $region35: #{double_conv_forward.5} parent=31 // pred_region
        %s530 = smul.u32 16, %s19
      $region36: #{double_conv_forward.5} parent=31 // pred_fallthru
        _
    $region32: #{double_conv_forward.5} parent=5 // pred_fallthru
      _
    %p531 = scmp.le.s32.totalorder 2, %s9
    // Predicated region
    $region37: #{double_conv_forward.5} parent=5 // pred_check
      %p532 = pneg %p531
    $region38: #{double_conv_forward.5} parent=5 // pred_check_branch
      %534 = sbr.rel (%p532) target = $region40
    $region39: #{double_conv_forward.5} parent=5 // pred_region
      %s535 = ssub.s32 %s9, 2
      // Predicated region
      $region41: #{double_conv_forward.5} parent=39 // pred_check
        %p536 = pneg %p122
      $region42: #{double_conv_forward.5} parent=39 // pred_check_branch
        %538 = sbr.rel (%p536) target = $region44
      $region43: #{double_conv_forward.5} parent=39 // pred_region
        %s539 = smul.u32 16, %s21
        %p540 = scmp.lt.s32.totalorder %s20, 1
        %s541 = scalar_select %p540, %s20, 1
        %p542 = scmp.lt.s32.totalorder %s539, 15
        %s543 = scalar_select %p542, %s539, 15
        %s544 = smul.addr %s543, 2
        %s545 = smul.addr %s541, 32
        %s546 = sadd.s32 %s544, %s545
        %s547 = smul.addr %s546, 4
        %s548 = scalar_lea.vmem %s3, %s547
      $region44: #{double_conv_forward.5} parent=39 // pred_fallthru
        _
    $region40: #{double_conv_forward.5} parent=5 // pred_fallthru
      _
  $region6: #{double_conv_forward.5} parent=0 // loop_footer
    %s13 = sadd.s32 1, %s9
  $region7: #{double_conv_forward.5} parent=0 // loop_footer_branch
    %8 = sbr.rel target = $region3
  $region8: #{double_conv_forward.5} parent=0 // loop_exit
    _

// kernel: double_conv_forward.7
$region0: #{double_conv_forward.7}
  #allocation0 [shape = 'u32[]', space=smem, size = 0x4, offset = 0x4, fixed_abs, tag = 'smem constant byte address 0x4 - core index']
  #allocation1 [shape = 'u32[144,128]{1,0:T(1,128)}', space=vmem, size = 0x12000, scoped, tag = 'internal scratch']
  %s0 = inlined_call_operand.vmem [shape: f32[2,16,16,128], index: 0, kind: input, shape index: {}]
  %s1 = inlined_call_operand.vmem [shape: f32[1,128], index: 1, kind: input, shape index: {}]
  %s2 = inlined_call_operand.vmem [shape: f32[1,128], index: 2, kind: input, shape index: {}]
  %s3 = inlined_call_operand.vmem [shape: f32[2,16,16,128], index: 3, kind: output, shape index: {}]
  %s4 = sld [smem:[#allocation0]]
  $region45: #{double_conv_forward.7} parent=0
    _
  %s6 = ssub.s32 1, %s4
  %s7 = scalar_select 0, %s6, %s4
  loop: start=0, step=1, limit=4
  $region2: #{double_conv_forward.7} parent=0 // loop_pre_header
    _
  $region3: #{double_conv_forward.7} parent=0 // loop_header
    %s9 = sphi 0, %s13
    %p10 = scmp.ge.s32.totalorder %s9, 4
    %s16 = sphi 0, %s28
    %s17 = sphi 0, %s24
    %s18 = sphi 0, %s16
    %s19 = sphi 0, %s17
    %s20 = sphi 0, %s18
    %s21 = sphi 0, %s19
    %s33 = sphi 0, %s35
    %s36 = sphi 0, %s33
    %s37 = sphi 0, %s36
    %s53 = sphi 0, %s37
    %s57 = sphi 0, %s57
    %s59 = sphi 0, %s57
    %s60 = sphi 0, %s59
    %s74 = sphi 0, %s60
    %s78 = sphi 0, %s78
    %s80 = sphi 0, %s78
    %s81 = sphi 0, %s80
    %s95 = sphi 0, %s81
    %s103 = sphi 0, %s105
    %s106 = sphi 0, %s103
    %s107 = sphi 0, %s106
    %s123 = sphi 0, %s107
  $region4: #{double_conv_forward.7} parent=0 // loop_header_branch
    %12 = sbr.rel (%p10) target = $region8
  $region5: #{double_conv_forward.7} parent=0 // loop_body
    %s14 = ssub.s32 %s9, 1
    %s15 = ssub.s32 %s9, 2
    %s22 = sadd.s32 1, %s17
    %p23 = scmp.ge.s32.totalorder %s22, 1
    %s24 = scalar_select %p23, 0, %s22
    %s25 = sadd.s32 1, %s16
    %s26 = scalar_select %p23, %s25, %s16
    %p27 = scmp.ge.s32.totalorder %s26, 2
    %s28 = scalar_select %p27, 0, %s26
    %s29 = ssub.s32 %s16, %s28
    %s30 = ssub.s32 %s17, %s24
    %s31 = sor.u32 %s29, %s30
    %p32 = scmp.eq.s32.totalorder %s31, 0
    %s34 = sadd.s32 %s33, 1
    %s35 = scalar_select %p32, %s33, %s34
    %p38 = pneg %p32
    %p39 = scmp.eq.s32.totalorder %s9, 1
    %p40 = por %p38, %p39
    %p41 = scmp.ne.s32.totalorder %s33, %s36
    %p42 = scmp.eq.s32.totalorder %s9, 0
    %p43 = por %p41, %p42
    %p44 = scmp.ne.s32.totalorder %s33, %s36
    %p45 = scmp.eq.s32.totalorder %s14, 1
    %p46 = por %p44, %p45
    %p47 = scmp.ne.s32.totalorder %s36, %s37
    %p48 = scmp.eq.s32.totalorder %s14, 0
    %p49 = por %p47, %p48
    %p50 = scmp.ne.s32.totalorder %s36, %s37
    %p51 = scmp.eq.s32.totalorder %s15, 1
    %p52 = por %p50, %p51
    %p54 = scmp.ne.s32.totalorder %s37, %s53
    %p55 = scmp.eq.s32.totalorder %s15, 0
    %p56 = por %p54, %p55
    %s58 = sadd.s32 %s57, 1
    %p61 = scmp.eq.s32.totalorder %s9, 1
    %p62 = scmp.ne.s32.totalorder %s57, %s59
    %p63 = scmp.eq.s32.totalorder %s9, 0
    %p64 = por %p62, %p63
    %p65 = scmp.ne.s32.totalorder %s57, %s59
    %p66 = scmp.eq.s32.totalorder %s14, 1
    %p67 = por %p65, %p66
    %p68 = scmp.ne.s32.totalorder %s59, %s60
    %p69 = scmp.eq.s32.totalorder %s14, 0
    %p70 = por %p68, %p69
    %p71 = scmp.ne.s32.totalorder %s59, %s60
    %p72 = scmp.eq.s32.totalorder %s15, 1
    %p73 = por %p71, %p72
    %p75 = scmp.ne.s32.totalorder %s60, %s74
    %p76 = scmp.eq.s32.totalorder %s15, 0
    %p77 = por %p75, %p76
    %s79 = sadd.s32 %s78, 1
    %p82 = scmp.eq.s32.totalorder %s9, 1
    %p83 = scmp.ne.s32.totalorder %s78, %s80
    %p84 = scmp.eq.s32.totalorder %s9, 0
    %p85 = por %p83, %p84
    %p86 = scmp.ne.s32.totalorder %s78, %s80
    %p87 = scmp.eq.s32.totalorder %s14, 1
    %p88 = por %p86, %p87
    %p89 = scmp.ne.s32.totalorder %s80, %s81
    %p90 = scmp.eq.s32.totalorder %s14, 0
    %p91 = por %p89, %p90
    %p92 = scmp.ne.s32.totalorder %s80, %s81
    %p93 = scmp.eq.s32.totalorder %s15, 1
    %p94 = por %p92, %p93
    %p96 = scmp.ne.s32.totalorder %s81, %s95
    %p97 = scmp.eq.s32.totalorder %s15, 0
    %p98 = por %p96, %p97
    %s99 = ssub.s32 %s16, %s28
    %s100 = ssub.s32 %s17, %s24
    %s101 = sor.u32 %s99, %s100
    %p102 = scmp.eq.s32.totalorder %s101, 0
    %s104 = sadd.s32 %s103, 1
    %s105 = scalar_select %p102, %s103, %s104
    %p108 = pneg %p102
    %p109 = scmp.eq.s32.totalorder %s9, 1
    %p110 = por %p108, %p109
    %p111 = scmp.ne.s32.totalorder %s103, %s106
    %p112 = scmp.eq.s32.totalorder %s9, 0
    %p113 = por %p111, %p112
    %p114 = scmp.ne.s32.totalorder %s103, %s106
    %p115 = scmp.eq.s32.totalorder %s14, 1
    %p116 = por %p114, %p115
    %p117 = scmp.ne.s32.totalorder %s106, %s107
    %p118 = scmp.eq.s32.totalorder %s14, 0
    %p119 = por %p117, %p118
    %p120 = scmp.ne.s32.totalorder %s106, %s107
    %p121 = scmp.eq.s32.totalorder %s15, 1
    %p122 = por %p120, %p121
    %p124 = scmp.ne.s32.totalorder %s107, %s123
    %p125 = scmp.eq.s32.totalorder %s15, 0
    %p126 = por %p124, %p125
    %p127 = scmp.le.s32.totalorder 1, %s9
    %p128 = scmp.lt.s32.totalorder %s9, 3
    %p129 = pnand %p127, %p128
    %p130 = pneg %p129
    // Predicated region
    $region9: #{double_conv_forward.7} parent=5 // pred_check
      _
    $region10: #{double_conv_forward.7} parent=5 // pred_check_branch
      %132 = sbr.rel (%p129) target = $region12
    $region11: #{double_conv_forward.7} parent=5 // pred_region
      %s133 = ssub.s32 %s9, 1
      // Predicated region
      $region13: #{double_conv_forward.7} parent=11 // pred_check
        %p134 = pneg %p70
      $region14: #{double_conv_forward.7} parent=11 // pred_check_branch
        %136 = sbr.rel (%p134) target = $region16
      $region15: #{double_conv_forward.7} parent=11 // pred_region
        _
      $region16: #{double_conv_forward.7} parent=11 // pred_fallthru
        _
      // Predicated region
      $region17: #{double_conv_forward.7} parent=11 // pred_check
        %p137 = pneg %p91
      $region18: #{double_conv_forward.7} parent=11 // pred_check_branch
        %139 = sbr.rel (%p137) target = $region20
      $region19: #{double_conv_forward.7} parent=11 // pred_region
        _
      $region20: #{double_conv_forward.7} parent=11 // pred_fallthru
        _
    $region12: #{double_conv_forward.7} parent=5 // pred_fallthru
      _
    %p140 = scmp.lt.s32.totalorder %s9, 2
    // Predicated region
    $region21: #{double_conv_forward.7} parent=5 // pred_check
      %p141 = pneg %p140
    $region22: #{double_conv_forward.7} parent=5 // pred_check_branch
      %143 = sbr.rel (%p141) target = $region24
    $region23: #{double_conv_forward.7} parent=5 // pred_region
      // Predicated region
      $region25: #{double_conv_forward.7} parent=23 // pred_check
        %p144 = pneg %p43
      $region26: #{double_conv_forward.7} parent=23 // pred_check_branch
        %146 = sbr.rel (%p144) target = $region28
      $region27: #{double_conv_forward.7} parent=23 // pred_region
        %s147 = smul.u32 16, %s17
        %p148 = scmp.lt.s32.totalorder %s16, 1
        %s149 = scalar_select %p148, %s16, 1
        %p150 = scmp.lt.s32.totalorder %s147, 15
        %s151 = scalar_select %p150, %s147, 15
        %s152 = smul.addr %s151, 2
        %s153 = smul.addr %s149, 32
        %s154 = sadd.s32 %s152, %s153
        %s155 = smul.addr %s154, 8
        %s156 = scalar_lea.vmem %s0, %s155
        %s157 = smul.u32 16, %s17
      $region28: #{double_conv_forward.7} parent=23 // pred_fallthru
        _
    $region24: #{double_conv_forward.7} parent=5 // pred_fallthru
      _
    %p158 = scmp.le.s32.totalorder 1, %s9
    %p159 = scmp.lt.s32.totalorder %s9, 3
    %p160 = pnand %p158, %p159
    %p161 = pneg %p160
    // Predicated region
    $region29: #{double_conv_forward.7} parent=5 // pred_check
      _
    $region30: #{double_conv_forward.7} parent=5 // pred_check_branch
      %163 = sbr.rel (%p160) target = $region32
    $region31: #{double_conv_forward.7} parent=5 // pred_region
      %s164 = ssub.s32 %s9, 1
      %s165 = smul.u32 16, %s19
      %p166 = scmp.lt.s32.totalorder %s18, 1
      %s167 = scalar_select %p166, %s18, 1
      %p168 = scmp.lt.s32.totalorder %s165, 15
      %s169 = scalar_select %p168, %s165, 15
      %s170 = smul.addr %s169, 2
      %s171 = smul.addr %s167, 32
      %s172 = sadd.s32 %s170, %s171
      %s173 = smul.addr %s172, 8
      %s174 = scalar_lea.vmem %s0, %s173
      %p175 = pneg %p49
      %p176 = pneg %p46
      %p177 = pneg %p70
      %p178 = pneg %p67
      %p179 = pneg %p91
      %p180 = pneg %p88
      %p181 = pneg %p119
      %p182 = pneg %p116
      %s183 = smul.u32 16, %s19
      %p184 = scmp.lt.s32.totalorder %s18, 1
      %s185 = scalar_select %p184, %s18, 1
      %p186 = scmp.lt.s32.totalorder %s183, 15
      %s187 = scalar_select %p186, %s183, 15
      %s188 = smul.addr %s187, 2
      %s189 = smul.addr %s185, 32
      %s190 = sadd.s32 %s188, %s189
      %s191 = smul.addr %s190, 8
      %s192 = scalar_lea.vmem %s3, %s191
      %s193 = smul.u32 16, %s19
      %p194 = scmp.lt.s32.totalorder %s18, 1
      %s195 = scalar_select %p194, %s18, 1
      %p196 = scmp.lt.s32.totalorder %s193, 15
      %s197 = scalar_select %p196, %s193, 15
      %s198 = smul.addr %s197, 2
      %s199 = smul.addr %s195, 32
      %s200 = sadd.s32 %s198, %s199
      %s201 = smul.addr %s200, 8
      %s202 = scalar_lea.vmem %s0, %s201
      %s203 = smul.u32 16, %s19
      %s204 = smul.u32 16, %s19
      %p205 = scmp.lt.s32.totalorder %s18, 1
      %s206 = scalar_select %p205, %s18, 1
      %p207 = scmp.lt.s32.totalorder %s204, 15
      %s208 = scalar_select %p207, %s204, 15
      %s209 = smul.addr %s208, 2
      %s210 = smul.addr %s206, 32
      %s211 = sadd.s32 %s209, %s210
      %s212 = smul.addr %s211, 8
      %s213 = scalar_lea.vmem %s3, %s212
      %s214 = smul.u32 16, %s19
      %v215 = vld [vmem:[%s202] sm:$0xff]
      %v216 = vld [vmem:[%s202 + $0x8] sm:$0xff]
      %v217 = vld [vmem:[%s202 + $0x10] sm:$0xff]
      %v218 = vld [vmem:[%s202 + $0x18] sm:$0xff]
      %v219 = vld [vmem:[%s202 + $0x20] sm:$0xff]
      %v220 = vld [vmem:[%s202 + $0x28] sm:$0xff]
      %v221 = vld [vmem:[%s202 + $0x30] sm:$0xff]
      %v222 = vld [vmem:[%s202 + $0x38] sm:$0xff]
      %v223 = vld [vmem:[%s202 + $0x40] sm:$0xff]
      %v224 = vld [vmem:[%s202 + $0x48] sm:$0xff]
      %v225 = vld [vmem:[%s202 + $0x50] sm:$0xff]
      %v226 = vld [vmem:[%s202 + $0x58] sm:$0xff]
      %v227 = vld [vmem:[%s202 + $0x60] sm:$0xff]
      %v228 = vld [vmem:[%s202 + $0x68] sm:$0xff]
      %v229 = vld [vmem:[%s202 + $0x70] sm:$0xff]
      %v230 = vld [vmem:[%s202 + $0x78] sm:$0xff]
      %v231 = vld [vmem:[%s202 + $0x80] sm:$0xff]
      %v232 = vld [vmem:[%s202 + $0x88] sm:$0xff]
      %v233 = vld [vmem:[%s202 + $0x90] sm:$0xff]
      %v234 = vld [vmem:[%s202 + $0x98] sm:$0xff]
      %v235 = vld [vmem:[%s202 + $0xa0] sm:$0xff]
      %v236 = vld [vmem:[%s202 + $0xa8] sm:$0xff]
      %v237 = vld [vmem:[%s202 + $0xb0] sm:$0xff]
      %v238 = vld [vmem:[%s202 + $0xb8] sm:$0xff]
      %v239 = vld [vmem:[%s202 + $0xc0] sm:$0xff]
      %v240 = vld [vmem:[%s202 + $0xc8] sm:$0xff]
      %v241 = vld [vmem:[%s202 + $0xd0] sm:$0xff]
      %v242 = vld [vmem:[%s202 + $0xd8] sm:$0xff]
      %v243 = vld [vmem:[%s202 + $0xe0] sm:$0xff]
      %v244 = vld [vmem:[%s202 + $0xe8] sm:$0xff]
      %v245 = vld [vmem:[%s202 + $0xf0] sm:$0xff]
      %v246 = vld [vmem:[%s202 + $0xf8] sm:$0xff]
      %v247 = vld [vmem:[%s1] sm:$0x1]
      %v248 = vld [vmem:[%s2] sm:$0x1]
      %v250 = vlaneseq
      %v251 = vshrl.u32 %v250, 7
      %v252 = vsub.s32 0, %v251
      %v253 = vrot.slane %v247, %v252
      %v255 = vmul.f32 %v215, %v253
      %v256 = vmul.f32 %v216, %v253
      %v257 = vmul.f32 %v217, %v253
      %v258 = vmul.f32 %v218, %v253
      %v259 = vmul.f32 %v219, %v253
      %v260 = vmul.f32 %v220, %v253
      %v261 = vmul.f32 %v221, %v253
      %v262 = vmul.f32 %v222, %v253
      %v263 = vmul.f32 %v223, %v253
      %v264 = vmul.f32 %v224, %v253
      %v265 = vmul.f32 %v225, %v253
      %v266 = vmul.f32 %v226, %v253
      %v267 = vmul.f32 %v227, %v253
      %v268 = vmul.f32 %v228, %v253
      %v269 = vmul.f32 %v229, %v253
      %v270 = vmul.f32 %v230, %v253
      %v271 = vmul.f32 %v231, %v253
      %v272 = vmul.f32 %v232, %v253
      %v273 = vmul.f32 %v233, %v253
      %v274 = vmul.f32 %v234, %v253
      %v275 = vmul.f32 %v235, %v253
      %v276 = vmul.f32 %v236, %v253
      %v277 = vmul.f32 %v237, %v253
      %v278 = vmul.f32 %v238, %v253
      %v279 = vmul.f32 %v239, %v253
      %v280 = vmul.f32 %v240, %v253
      %v281 = vmul.f32 %v241, %v253
      %v282 = vmul.f32 %v242, %v253
      %v283 = vmul.f32 %v243, %v253
      %v284 = vmul.f32 %v244, %v253
      %v285 = vmul.f32 %v245, %v253
      %v286 = vmul.f32 %v246, %v253
      %v288 = vlaneseq
      %v289 = vshrl.u32 %v288, 7
      %v290 = vsub.s32 0, %v289
      %v291 = vrot.slane %v248, %v290
      %v293 = vadd.f32 %v255, %v291
      %v294 = vadd.f32 %v256, %v291
      %v295 = vadd.f32 %v257, %v291
      %v296 = vadd.f32 %v258, %v291
      %v297 = vadd.f32 %v259, %v291
      %v298 = vadd.f32 %v260, %v291
      %v299 = vadd.f32 %v261, %v291
      %v300 = vadd.f32 %v262, %v291
      %v301 = vadd.f32 %v263, %v291
      %v302 = vadd.f32 %v264, %v291
      %v303 = vadd.f32 %v265, %v291
      %v304 = vadd.f32 %v266, %v291
      %v305 = vadd.f32 %v267, %v291
      %v306 = vadd.f32 %v268, %v291
      %v307 = vadd.f32 %v269, %v291
      %v308 = vadd.f32 %v270, %v291
      %v309 = vadd.f32 %v271, %v291
      %v310 = vadd.f32 %v272, %v291
      %v311 = vadd.f32 %v273, %v291
      %v312 = vadd.f32 %v274, %v291
      %v313 = vadd.f32 %v275, %v291
      %v314 = vadd.f32 %v276, %v291
      %v315 = vadd.f32 %v277, %v291
      %v316 = vadd.f32 %v278, %v291
      %v317 = vadd.f32 %v279, %v291
      %v318 = vadd.f32 %v280, %v291
      %v319 = vadd.f32 %v281, %v291
      %v320 = vadd.f32 %v282, %v291
      %v321 = vadd.f32 %v283, %v291
      %v322 = vadd.f32 %v284, %v291
      %v323 = vadd.f32 %v285, %v291
      %v324 = vadd.f32 %v286, %v291
      %v325 = vmax.f32 %v293, 0.0
      %v326 = vmax.f32 %v294, 0.0
      %v327 = vmax.f32 %v295, 0.0
      %v328 = vmax.f32 %v296, 0.0
      %v329 = vmax.f32 %v297, 0.0
      %v330 = vmax.f32 %v298, 0.0
      %v331 = vmax.f32 %v299, 0.0
      %v332 = vmax.f32 %v300, 0.0
      %v333 = vmax.f32 %v301, 0.0
      %v334 = vmax.f32 %v302, 0.0
      %v335 = vmax.f32 %v303, 0.0
      %v336 = vmax.f32 %v304, 0.0
      %v337 = vmax.f32 %v305, 0.0
      %v338 = vmax.f32 %v306, 0.0
      %v339 = vmax.f32 %v307, 0.0
      %v340 = vmax.f32 %v308, 0.0
      %v341 = vmax.f32 %v309, 0.0
      %v342 = vmax.f32 %v310, 0.0
      %v343 = vmax.f32 %v311, 0.0
      %v344 = vmax.f32 %v312, 0.0
      %v345 = vmax.f32 %v313, 0.0
      %v346 = vmax.f32 %v314, 0.0
      %v347 = vmax.f32 %v315, 0.0
      %v348 = vmax.f32 %v316, 0.0
      %v349 = vmax.f32 %v317, 0.0
      %v350 = vmax.f32 %v318, 0.0
      %v351 = vmax.f32 %v319, 0.0
      %v352 = vmax.f32 %v320, 0.0
      %v353 = vmax.f32 %v321, 0.0
      %v354 = vmax.f32 %v322, 0.0
      %v355 = vmax.f32 %v323, 0.0
      %v356 = vmax.f32 %v324, 0.0
      %357 = vst [vmem:[%s213] sm:$0xff] %v325
      %358 = vst [vmem:[%s213 + $0x8] sm:$0xff] %v326
      %359 = vst [vmem:[%s213 + $0x10] sm:$0xff] %v327
      %360 = vst [vmem:[%s213 + $0x18] sm:$0xff] %v328
      %361 = vst [vmem:[%s213 + $0x20] sm:$0xff] %v329
      %362 = vst [vmem:[%s213 + $0x28] sm:$0xff] %v330
      %363 = vst [vmem:[%s213 + $0x30] sm:$0xff] %v331
      %364 = vst [vmem:[%s213 + $0x38] sm:$0xff] %v332
      %365 = vst [vmem:[%s213 + $0x40] sm:$0xff] %v333
      %366 = vst [vmem:[%s213 + $0x48] sm:$0xff] %v334
      %367 = vst [vmem:[%s213 + $0x50] sm:$0xff] %v335
      %368 = vst [vmem:[%s213 + $0x58] sm:$0xff] %v336
      %369 = vst [vmem:[%s213 + $0x60] sm:$0xff] %v337
      %370 = vst [vmem:[%s213 + $0x68] sm:$0xff] %v338
      %371 = vst [vmem:[%s213 + $0x70] sm:$0xff] %v339
      %372 = vst [vmem:[%s213 + $0x78] sm:$0xff] %v340
      %373 = vst [vmem:[%s213 + $0x80] sm:$0xff] %v341
      %374 = vst [vmem:[%s213 + $0x88] sm:$0xff] %v342
      %375 = vst [vmem:[%s213 + $0x90] sm:$0xff] %v343
      %376 = vst [vmem:[%s213 + $0x98] sm:$0xff] %v344
      %377 = vst [vmem:[%s213 + $0xa0] sm:$0xff] %v345
      %378 = vst [vmem:[%s213 + $0xa8] sm:$0xff] %v346
      %379 = vst [vmem:[%s213 + $0xb0] sm:$0xff] %v347
      %380 = vst [vmem:[%s213 + $0xb8] sm:$0xff] %v348
      %381 = vst [vmem:[%s213 + $0xc0] sm:$0xff] %v349
      %382 = vst [vmem:[%s213 + $0xc8] sm:$0xff] %v350
      %383 = vst [vmem:[%s213 + $0xd0] sm:$0xff] %v351
      %384 = vst [vmem:[%s213 + $0xd8] sm:$0xff] %v352
      %385 = vst [vmem:[%s213 + $0xe0] sm:$0xff] %v353
      %386 = vst [vmem:[%s213 + $0xe8] sm:$0xff] %v354
      %387 = vst [vmem:[%s213 + $0xf0] sm:$0xff] %v355
      %388 = vst [vmem:[%s213 + $0xf8] sm:$0xff] %v356
      %s389 = smul.u32 16, %s19
      %p390 = scmp.lt.s32.totalorder %s18, 1
      %s391 = scalar_select %p390, %s18, 1
      %p392 = scmp.lt.s32.totalorder %s389, 15
      %s393 = scalar_select %p392, %s389, 15
      %s394 = smul.addr %s393, 2
      %s395 = smul.addr %s391, 32
      %s396 = sadd.s32 %s394, %s395
      %s397 = smul.addr %s396, 8
      %s398 = scalar_lea.vmem %s3, %s397
      // Predicated region
      $region33: #{double_conv_forward.7} parent=31 // pred_check
        %p399 = pneg %p116
      $region34: #{double_conv_forward.7} parent=31 // pred_check_branch
        %401 = sbr.rel (%p399) target = $region36
      $region35: #{double_conv_forward.7} parent=31 // pred_region
        %s402 = smul.u32 16, %s19
      $region36: #{double_conv_forward.7} parent=31 // pred_fallthru
        _
    $region32: #{double_conv_forward.7} parent=5 // pred_fallthru
      _
    %p403 = scmp.le.s32.totalorder 2, %s9
    // Predicated region
    $region37: #{double_conv_forward.7} parent=5 // pred_check
      %p404 = pneg %p403
    $region38: #{double_conv_forward.7} parent=5 // pred_check_branch
      %406 = sbr.rel (%p404) target = $region40
    $region39: #{double_conv_forward.7} parent=5 // pred_region
      %s407 = ssub.s32 %s9, 2
      // Predicated region
      $region41: #{double_conv_forward.7} parent=39 // pred_check
        %p408 = pneg %p122
      $region42: #{double_conv_forward.7} parent=39 // pred_check_branch
        %410 = sbr.rel (%p408) target = $region44
      $region43: #{double_conv_forward.7} parent=39 // pred_region
        %s411 = smul.u32 16, %s21
        %p412 = scmp.lt.s32.totalorder %s20, 1
        %s413 = scalar_select %p412, %s20, 1
        %p414 = scmp.lt.s32.totalorder %s411, 15
        %s415 = scalar_select %p414, %s411, 15
        %s416 = smul.addr %s415, 2
        %s417 = smul.addr %s413, 32
        %s418 = sadd.s32 %s416, %s417
        %s419 = smul.addr %s418, 8
        %s420 = scalar_lea.vmem %s3, %s419
      $region44: #{double_conv_forward.7} parent=39 // pred_fallthru
        _
    $region40: #{double_conv_forward.7} parent=5 // pred_fallthru
      _
  $region6: #{double_conv_forward.7} parent=0 // loop_footer
    %s13 = sadd.s32 1, %s9
  $region7: #{double_conv_forward.7} parent=0 // loop_footer_branch
    %8 = sbr.rel target = $region3
  $region8: #{double_conv_forward.7} parent=0 // loop_exit
    _

// kernel: double_conv_forward.4
$region0: #{double_conv_forward.4}
  #allocation0 [shape = 'u32[]', space=smem, size = 0x4, offset = 0x4, fixed_abs, tag = 'smem constant byte address 0x4 - core index']
  #allocation1 [shape = 'u32[144,128]{1,0:T(1,128)}', space=vmem, size = 0x12000, scoped, tag = 'internal scratch']
  #allocation2 [shape = 'bf16[18,16,384]{2,1,0:T(8,128)(2,1)}', space=vmem, size = 0x36000, scoped, tag = 'scratch operand']
  %s0 = inlined_call_operand.vmem [shape: bf16[2,24,18,128], index: 0, kind: input, shape index: {}, may-alias: {0,1}]
  %s1 = inlined_call_operand.vmem [shape: bf16[2,24,18,128], index: 1, kind: input, shape index: {}, may-alias: {0,1}]
  %s2 = inlined_call_operand.vmem [shape: bf16[3,384,128], index: 2, kind: input, shape index: {}]
  %s3 = inlined_call_operand.vmem [shape: f32[2,16,16,128], index: 3, kind: output, shape index: {0}]
  %s4 = inlined_call_operand.vmem [shape: f32[2,1,2,128], index: 4, kind: output, shape index: {1}]
  %5 = xla_tuple %s3, %s4
  %s6 = sld [smem:[#allocation0]]
  $region53: #{double_conv_forward.4} parent=0
    _
  %s8 = ssub.s32 1, %s6
  %s9 = scalar_select 0, %s8, %s6
  loop: start=0, step=1, limit=4
  $region2: #{double_conv_forward.4} parent=0 // loop_pre_header
    _
  $region3: #{double_conv_forward.4} parent=0 // loop_header
    %s11 = sphi 0, %s15
    %p12 = scmp.ge.s32.totalorder %s11, 4
    %s18 = sphi 0, %s30
    %s19 = sphi 0, %s26
    %s20 = sphi 0, %s18
    %s21 = sphi 0, %s19
    %s22 = sphi 0, %s20
    %s23 = sphi 0, %s21
    %s35 = sphi 0, %s37
    %s38 = sphi 0, %s35
    %s39 = sphi 0, %s38
    %s55 = sphi 0, %s39
    %s67 = sphi 0, %s69
    %s70 = sphi 0, %s67
    %s71 = sphi 0, %s70
    %s87 = sphi 0, %s71
    %s91 = sphi 0, %s91
    %s93 = sphi 0, %s91
    %s94 = sphi 0, %s93
    %s108 = sphi 0, %s94
    %s116 = sphi 0, %s118
    %s119 = sphi 0, %s116
    %s120 = sphi 0, %s119
    %s136 = sphi 0, %s120
    %s144 = sphi 0, %s146
    %s147 = sphi 0, %s144
    %s148 = sphi 0, %s147
    %s164 = sphi 0, %s148
  $region4: #{double_conv_forward.4} parent=0 // loop_header_branch
    %14 = sbr.rel (%p12) target = $region8
  $region5: #{double_conv_forward.4} parent=0 // loop_body
    %s16 = ssub.s32 %s11, 1
    %s17 = ssub.s32 %s11, 2
    %s24 = sadd.s32 1, %s19
    %p25 = scmp.ge.s32.totalorder %s24, 1
    %s26 = scalar_select %p25, 0, %s24
    %s27 = sadd.s32 1, %s18
    %s28 = scalar_select %p25, %s27, %s18
    %p29 = scmp.ge.s32.totalorder %s28, 2
    %s30 = scalar_select %p29, 0, %s28
    %s31 = ssub.s32 %s18, %s30
    %s32 = ssub.s32 %s19, %s26
    %s33 = sor.u32 %s31, %s32
    %p34 = scmp.eq.s32.totalorder %s33, 0
    %s36 = sadd.s32 %s35, 1
    %s37 = scalar_select %p34, %s35, %s36
    %p40 = pneg %p34
    %p41 = scmp.eq.s32.totalorder %s11, 1
    %p42 = por %p40, %p41
    %p43 = scmp.ne.s32.totalorder %s35, %s38
    %p44 = scmp.eq.s32.totalorder %s11, 0
    %p45 = por %p43, %p44
    %p46 = scmp.ne.s32.totalorder %s35, %s38
    %p47 = scmp.eq.s32.totalorder %s16, 1
    %p48 = por %p46, %p47
    %p49 = scmp.ne.s32.totalorder %s38, %s39
    %p50 = scmp.eq.s32.totalorder %s16, 0
    %p51 = por %p49, %p50
    %p52 = scmp.ne.s32.totalorder %s38, %s39
    %p53 = scmp.eq.s32.totalorder %s17, 1
    %p54 = por %p52, %p53
    %p56 = scmp.ne.s32.totalorder %s39, %s55
    %p57 = scmp.eq.s32.totalorder %s17, 0
    %p58 = por %p56, %p57
    %s59 = sadd.s32 %s19, 1
    %s60 = smul.u32 %s59, 2
    %s61 = sadd.s32 %s26, 1
    %s62 = smul.u32 %s61, 2
    %s63 = ssub.s32 %s18, %s30
    %s64 = ssub.s32 %s60, %s62
    %s65 = sor.u32 %s63, %s64
    %p66 = scmp.eq.s32.totalorder %s65, 0
    %s68 = sadd.s32 %s67, 1
    %s69 = scalar_select %p66, %s67, %s68
    %p72 = pneg %p66
    %p73 = scmp.eq.s32.totalorder %s11, 1
    %p74 = por %p72, %p73
    %p75 = scmp.ne.s32.totalorder %s67, %s70
    %p76 = scmp.eq.s32.totalorder %s11, 0
    %p77 = por %p75, %p76
    %p78 = scmp.ne.s32.totalorder %s67, %s70
    %p79 = scmp.eq.s32.totalorder %s16, 1
    %p80 = por %p78, %p79
    %p81 = scmp.ne.s32.totalorder %s70, %s71
    %p82 = scmp.eq.s32.totalorder %s16, 0
    %p83 = por %p81, %p82
    %p84 = scmp.ne.s32.totalorder %s70, %s71
    %p85 = scmp.eq.s32.totalorder %s17, 1
    %p86 = por %p84, %p85
    %p88 = scmp.ne.s32.totalorder %s71, %s87
    %p89 = scmp.eq.s32.totalorder %s17, 0
    %p90 = por %p88, %p89
    %s92 = sadd.s32 %s91, 1
    %p95 = scmp.eq.s32.totalorder %s11, 1
    %p96 = scmp.ne.s32.totalorder %s91, %s93
    %p97 = scmp.eq.s32.totalorder %s11, 0
    %p98 = por %p96, %p97
    %p99 = scmp.ne.s32.totalorder %s91, %s93
    %p100 = scmp.eq.s32.totalorder %s16, 1
    %p101 = por %p99, %p100
    %p102 = scmp.ne.s32.totalorder %s93, %s94
    %p103 = scmp.eq.s32.totalorder %s16, 0
    %p104 = por %p102, %p103
    %p105 = scmp.ne.s32.totalorder %s93, %s94
    %p106 = scmp.eq.s32.totalorder %s17, 1
    %p107 = por %p105, %p106
    %p109 = scmp.ne.s32.totalorder %s94, %s108
    %p110 = scmp.eq.s32.totalorder %s17, 0
    %p111 = por %p109, %p110
    %s112 = ssub.s32 %s18, %s30
    %s113 = ssub.s32 %s19, %s26
    %s114 = sor.u32 %s112, %s113
    %p115 = scmp.eq.s32.totalorder %s114, 0
    %s117 = sadd.s32 %s116, 1
    %s118 = scalar_select %p115, %s116, %s117
    %p121 = pneg %p115
    %p122 = scmp.eq.s32.totalorder %s11, 1
    %p123 = por %p121, %p122
    %p124 = scmp.ne.s32.totalorder %s116, %s119
    %p125 = scmp.eq.s32.totalorder %s11, 0
    %p126 = por %p124, %p125
    %p127 = scmp.ne.s32.totalorder %s116, %s119
    %p128 = scmp.eq.s32.totalorder %s16, 1
    %p129 = por %p127, %p128
    %p130 = scmp.ne.s32.totalorder %s119, %s120
    %p131 = scmp.eq.s32.totalorder %s16, 0
    %p132 = por %p130, %p131
    %p133 = scmp.ne.s32.totalorder %s119, %s120
    %p134 = scmp.eq.s32.totalorder %s17, 1
    %p135 = por %p133, %p134
    %p137 = scmp.ne.s32.totalorder %s120, %s136
    %p138 = scmp.eq.s32.totalorder %s17, 0
    %p139 = por %p137, %p138
    %s140 = ssub.s32 %s18, %s30
    %s141 = ssub.s32 %s19, %s26
    %s142 = sor.u32 %s140, %s141
    %p143 = scmp.eq.s32.totalorder %s142, 0
    %s145 = sadd.s32 %s144, 1
    %s146 = scalar_select %p143, %s144, %s145
    %p149 = pneg %p143
    %p150 = scmp.eq.s32.totalorder %s11, 1
    %p151 = por %p149, %p150
    %p152 = scmp.ne.s32.totalorder %s144, %s147
    %p153 = scmp.eq.s32.totalorder %s11, 0
    %p154 = por %p152, %p153
    %p155 = scmp.ne.s32.totalorder %s144, %s147
    %p156 = scmp.eq.s32.totalorder %s16, 1
    %p157 = por %p155, %p156
    %p158 = scmp.ne.s32.totalorder %s147, %s148
    %p159 = scmp.eq.s32.totalorder %s16, 0
    %p160 = por %p158, %p159
    %p161 = scmp.ne.s32.totalorder %s147, %s148
    %p162 = scmp.eq.s32.totalorder %s17, 1
    %p163 = por %p161, %p162
    %p165 = scmp.ne.s32.totalorder %s148, %s164
    %p166 = scmp.eq.s32.totalorder %s17, 0
    %p167 = por %p165, %p166
    %p168 = scmp.le.s32.totalorder 1, %s11
    %p169 = scmp.lt.s32.totalorder %s11, 3
    %p170 = pnand %p168, %p169
    %p171 = pneg %p170
    // Predicated region
    $region9: #{double_conv_forward.4} parent=5 // pred_check
      _
    $region10: #{double_conv_forward.4} parent=5 // pred_check_branch
      %173 = sbr.rel (%p170) target = $region12
    $region11: #{double_conv_forward.4} parent=5 // pred_region
      %s174 = ssub.s32 %s11, 1
      // Predicated region
      $region13: #{double_conv_forward.4} parent=11 // pred_check
        %p175 = pneg %p104
      $region14: #{double_conv_forward.4} parent=11 // pred_check_branch
        %177 = sbr.rel (%p175) target = $region16
      $region15: #{double_conv_forward.4} parent=11 // pred_region
        _
      $region16: #{double_conv_forward.4} parent=11 // pred_fallthru
        _
    $region12: #{double_conv_forward.4} parent=5 // pred_fallthru
      _
    %p178 = scmp.lt.s32.totalorder %s11, 2
    // Predicated region
    $region17: #{double_conv_forward.4} parent=5 // pred_check
      %p179 = pneg %p178
    $region18: #{double_conv_forward.4} parent=5 // pred_check_branch
      %181 = sbr.rel (%p179) target = $region20
    $region19: #{double_conv_forward.4} parent=5 // pred_region
      // Predicated region
      $region21: #{double_conv_forward.4} parent=19 // pred_check
        %p182 = pneg %p45
      $region22: #{double_conv_forward.4} parent=19 // pred_check_branch
        %184 = sbr.rel (%p182) target = $region24
      $region23: #{double_conv_forward.4} parent=19 // pred_region
        %s185 = smul.u32 16, %s19
        %s186 = ssub.s32 24, %s185
        %p187 = scmp.lt.s32.totalorder %s186, 16
        %s188 = scalar_select %p187, %s186, 16
        %s189 = smul.u32 64, %s188
        %s190 = smul.u32 %s189, 3
        %p191 = scmp.lt.s32.totalorder %s18, 1
        %s192 = scalar_select %p191, %s18, 1
        %p193 = scmp.lt.s32.totalorder %s185, 23
        %s194 = scalar_select %p193, %s185, 23
        %s195 = smul.addr %s194, 3
        %s196 = smul.addr %s192, 72
        %s197 = sadd.s32 %s195, %s196
        %s198 = smul.addr %s197, 4
        %s199 = scalar_lea.vmem %s0, %s198
        %s200 = smul.u32 16, %s19
        %s201 = ssub.s32 24, %s200
        %p202 = scmp.lt.s32.totalorder %s201, 16
        %s203 = scalar_select %p202, %s201, 16
        %s204 = smul.u32 64, %s203
        %s205 = smul.u32 %s204, 3
      $region24: #{double_conv_forward.4} parent=19 // pred_fallthru
        _
      // Predicated region
      $region25: #{double_conv_forward.4} parent=19 // pred_check
        %p206 = pneg %p77
      $region26: #{double_conv_forward.4} parent=19 // pred_check_branch
        %208 = sbr.rel (%p206) target = $region28
      $region27: #{double_conv_forward.4} parent=19 // pred_region
        %s209 = sadd.s32 %s19, 1
        %s210 = smul.u32 %s209, 2
        %s211 = smul.u32 8, %s210
        %p212 = scmp.lt.s32.totalorder %s18, 1
        %s213 = scalar_select %p212, %s18, 1
        %p214 = scmp.lt.s32.totalorder %s211, 23
        %s215 = scalar_select %p214, %s211, 23
        %s216 = smul.addr %s215, 3
        %s217 = smul.addr %s213, 72
        %s218 = sadd.s32 %s216, %s217
        %s219 = smul.addr %s218, 4
        %s220 = scalar_lea.vmem %s1, %s219
        %s221 = sadd.s32 %s19, 1
        %s222 = smul.u32 %s221, 2
        %s223 = smul.u32 8, %s222
      $region28: #{double_conv_forward.4} parent=19 // pred_fallthru
        _
    $region20: #{double_conv_forward.4} parent=5 // pred_fallthru
      _
    %p224 = scmp.le.s32.totalorder 1, %s11
    %p225 = scmp.lt.s32.totalorder %s11, 3
    %p226 = pnand %p224, %p225
    %p227 = pneg %p226
    // Predicated region
    $region29: #{double_conv_forward.4} parent=5 // pred_check
      _
    $region30: #{double_conv_forward.4} parent=5 // pred_check_branch
      %229 = sbr.rel (%p226) target = $region32
    $region31: #{double_conv_forward.4} parent=5 // pred_region
      %s230 = ssub.s32 %s11, 1
      %s231 = smul.u32 16, %s21
      %s232 = ssub.s32 24, %s231
      %p233 = scmp.lt.s32.totalorder %s232, 16
      %s234 = scalar_select %p233, %s232, 16
      %s235 = smul.u32 64, %s234
      %s236 = smul.u32 %s235, 3
      %p237 = scmp.lt.s32.totalorder %s20, 1
      %s238 = scalar_select %p237, %s20, 1
      %p239 = scmp.lt.s32.totalorder %s231, 23
      %s240 = scalar_select %p239, %s231, 23
      %s241 = smul.addr %s240, 3
      %s242 = smul.addr %s238, 72
      %s243 = sadd.s32 %s241, %s242
      %s244 = smul.addr %s243, 4
      %s245 = scalar_lea.vmem %s0, %s244
      %p246 = pneg %p51
      %p247 = pneg %p48
      %s248 = sadd.s32 %s21, 1
      %s249 = smul.u32 %s248, 2
      %s250 = smul.u32 8, %s249
      %p251 = scmp.lt.s32.totalorder %s20, 1
      %s252 = scalar_select %p251, %s20, 1
      %p253 = scmp.lt.s32.totalorder %s250, 23
      %s254 = scalar_select %p253, %s250, 23
      %s255 = smul.addr %s254, 3
      %s256 = smul.addr %s252, 72
      %s257 = sadd.s32 %s255, %s256
      %s258 = smul.addr %s257, 4
      %s259 = scalar_lea.vmem %s1, %s258
      %p260 = pneg %p83
      %p261 = pneg %p80
      %p262 = pneg %p104
      %p263 = pneg %p101
      %p264 = pneg %p132
      %p265 = pneg %p129
      %s266 = smul.u32 16, %s21
      %p267 = scmp.lt.s32.totalorder %s20, 1
      %s268 = scalar_select %p267, %s20, 1
      %p269 = scmp.lt.s32.totalorder %s266, 15
      %s270 = scalar_select %p269, %s266, 15
      %s271 = smul.addr %s270, 2
      %s272 = smul.addr %s268, 32
      %s273 = sadd.s32 %s271, %s272
      %s274 = smul.addr %s273, 8
      %s275 = scalar_lea.vmem %s3, %s274
      %p276 = pneg %p160
      %p277 = pneg %p157
      %p278 = scmp.lt.s32.totalorder %s20, 1
      %s279 = scalar_select %p278, %s20, 1
      %p280 = scmp.lt.s32.totalorder %s21, 0
      %s281 = scalar_select %p280, %s21, 0
      %s282 = sadd.s32 %s281, %s279
      %s283 = smul.addr %s282, 2
      %s284 = scalar_lea.vmem %s4, %s283
      %s285 = smul.u32 16, %s21
      %s286 = ssub.s32 24, %s285
      %p287 = scmp.lt.s32.totalorder %s286, 16
      %s288 = scalar_select %p287, %s286, 16
      %s289 = smul.u32 64, %s288
      %s290 = smul.u32 %s289, 3
      %p291 = scmp.lt.s32.totalorder %s20, 1
      %s292 = scalar_select %p291, %s20, 1
      %p293 = scmp.lt.s32.totalorder %s285, 23
      %s294 = scalar_select %p293, %s285, 23
      %s295 = smul.addr %s294, 3
      %s296 = smul.addr %s292, 72
      %s297 = sadd.s32 %s295, %s296
      %s298 = smul.addr %s297, 4
      %s299 = scalar_lea.vmem %s0, %s298
      %s300 = smul.u32 16, %s21
      %s301 = ssub.s32 24, %s300
      %p302 = scmp.lt.s32.totalorder %s301, 16
      %s303 = scalar_select %p302, %s301, 16
      %s304 = smul.u32 64, %s303
      %s305 = smul.u32 %s304, 3
      %s306 = sadd.s32 %s21, 1
      %s307 = smul.u32 %s306, 2
      %s308 = smul.u32 8, %s307
      %p309 = scmp.lt.s32.totalorder %s20, 1
      %s310 = scalar_select %p309, %s20, 1
      %p311 = scmp.lt.s32.totalorder %s308, 23
      %s312 = scalar_select %p311, %s308, 23
      %s313 = smul.addr %s312, 3
      %s314 = smul.addr %s310, 72
      %s315 = sadd.s32 %s313, %s314
      %s316 = smul.addr %s315, 4
      %s317 = scalar_lea.vmem %s1, %s316
      %s318 = sadd.s32 %s21, 1
      %s319 = smul.u32 %s318, 2
      %s320 = smul.u32 8, %s319
      %s321 = smul.u32 16, %s21
      %p322 = scmp.lt.s32.totalorder %s20, 1
      %s323 = scalar_select %p322, %s20, 1
      %p324 = scmp.lt.s32.totalorder %s321, 15
      %s325 = scalar_select %p324, %s321, 15
      %s326 = smul.addr %s325, 2
      %s327 = smul.addr %s323, 32
      %s328 = sadd.s32 %s326, %s327
      %s329 = smul.addr %s328, 8
      %s330 = scalar_lea.vmem %s3, %s329
      %s331 = smul.u32 16, %s21
      %p332 = scmp.lt.s32.totalorder %s20, 1
      %s333 = scalar_select %p332, %s20, 1
      %p334 = scmp.lt.s32.totalorder %s21, 0
      %s335 = scalar_select %p334, %s21, 0
      %s336 = sadd.s32 %s335, %s333
      %s337 = smul.addr %s336, 2
      %s338 = scalar_lea.vmem %s4, %s337
      %v340 = vld [vmem:[%s299] sm:$0xf]
      %v341 = vld [vmem:[%s299 + $0x4] sm:$0xf]
      %v342 = vld [vmem:[%s299 + $0xc] sm:$0xf]
      %v343 = vld [vmem:[%s299 + $0x10] sm:$0xf]
      %v344 = vld [vmem:[%s299 + $0x18] sm:$0xf]
      %v345 = vld [vmem:[%s299 + $0x1c] sm:$0xf]
      %v346 = vld [vmem:[%s299 + $0x24] sm:$0xf]
      %v347 = vld [vmem:[%s299 + $0x28] sm:$0xf]
      %v348 = vld [vmem:[%s299 + $0x30] sm:$0xf]
      %v349 = vld [vmem:[%s299 + $0x34] sm:$0xf]
      %v350 = vld [vmem:[%s299 + $0x3c] sm:$0xf]
      %v351 = vld [vmem:[%s299 + $0x40] sm:$0xf]
      %v352 = vld [vmem:[%s299 + $0x48] sm:$0xf]
      %v353 = vld [vmem:[%s299 + $0x4c] sm:$0xf]
      %v354 = vld [vmem:[%s299 + $0x54] sm:$0xf]
      %v355 = vld [vmem:[%s299 + $0x58] sm:$0xf]
      %v356 = vld [vmem:[%s299 + $0x60] sm:$0xf]
      %v357 = vld [vmem:[%s299 + $0x64] sm:$0xf]
      %v358 = vld [vmem:[%s299 + $0x6c] sm:$0xf]
      %v359 = vld [vmem:[%s299 + $0x70] sm:$0xf]
      %v360 = vld [vmem:[%s299 + $0x78] sm:$0xf]
      %v361 = vld [vmem:[%s299 + $0x7c] sm:$0xf]
      %v362 = vld [vmem:[%s299 + $0x84] sm:$0xf]
      %v363 = vld [vmem:[%s299 + $0x88] sm:$0xf]
      %v364 = vld [vmem:[%s299 + $0x90] sm:$0xf]
      %v365 = vld [vmem:[%s299 + $0x94] sm:$0xf]
      %v366 = vld [vmem:[%s299 + $0x9c] sm:$0xf]
      %v367 = vld [vmem:[%s299 + $0xa0] sm:$0xf]
      %v368 = vld [vmem:[%s299 + $0xa8] sm:$0xf]
      %v369 = vld [vmem:[%s299 + $0xac] sm:$0xf]
      %v370 = vld [vmem:[%s299 + $0xb4] sm:$0xf]
      %v371 = vld [vmem:[%s299 + $0xb8] sm:$0xf]
      %372 = vst [vmem:[#allocation2] sm:$0xf] %v340
      %373 = vst [vmem:[#allocation2 + $0xc] sm:$0xf] %v341
      %374 = vst [vmem:[#allocation2 + $0x18] sm:$0xf] %v342
      %375 = vst [vmem:[#allocation2 + $0x24] sm:$0xf] %v343
      %376 = vst [vmem:[#allocation2 + $0x30] sm:$0xf] %v344
      %377 = vst [vmem:[#allocation2 + $0x3c] sm:$0xf] %v345
      %378 = vst [vmem:[#allocation2 + $0x48] sm:$0xf] %v346
      %379 = vst [vmem:[#allocation2 + $0x54] sm:$0xf] %v347
      %380 = vst [vmem:[#allocation2 + $0x60] sm:$0xf] %v348
      %381 = vst [vmem:[#allocation2 + $0x6c] sm:$0xf] %v349
      %382 = vst [vmem:[#allocation2 + $0x78] sm:$0xf] %v350
      %383 = vst [vmem:[#allocation2 + $0x84] sm:$0xf] %v351
      %384 = vst [vmem:[#allocation2 + $0x90] sm:$0xf] %v352
      %385 = vst [vmem:[#allocation2 + $0x9c] sm:$0xf] %v353
      %386 = vst [vmem:[#allocation2 + $0xa8] sm:$0xf] %v354
      %387 = vst [vmem:[#allocation2 + $0xb4] sm:$0xf] %v355
      %388 = vst [vmem:[#allocation2 + $0xc0] sm:$0xf] %v356
      %389 = vst [vmem:[#allocation2 + $0xcc] sm:$0xf] %v357
      %390 = vst [vmem:[#allocation2 + $0xd8] sm:$0xf] %v358
      %391 = vst [vmem:[#allocation2 + $0xe4] sm:$0xf] %v359
      %392 = vst [vmem:[#allocation2 + $0xf0] sm:$0xf] %v360
      %393 = vst [vmem:[#allocation2 + $0xfc] sm:$0xf] %v361
      %394 = vst [vmem:[#allocation2 + $0x108] sm:$0xf] %v362
      %395 = vst [vmem:[#allocation2 + $0x114] sm:$0xf] %v363
      %396 = vst [vmem:[#allocation2 + $0x120] sm:$0xf] %v364
      %397 = vst [vmem:[#allocation2 + $0x12c] sm:$0xf] %v365
      %398 = vst [vmem:[#allocation2 + $0x138] sm:$0xf] %v366
      %399 = vst [vmem:[#allocation2 + $0x144] sm:$0xf] %v367
      %400 = vst [vmem:[#allocation2 + $0x150] sm:$0xf] %v368
      %401 = vst [vmem:[#allocation2 + $0x15c] sm:$0xf] %v369
      %402 = vst [vmem:[#allocation2 + $0x168] sm:$0xf] %v370
      %403 = vst [vmem:[#allocation2 + $0x174] sm:$0xf] %v371
      %v404 = vld [vmem:[%s317] sm:$0xf]
      %v405 = vld [vmem:[%s317 + $0x4] sm:$0xf]
      %v406 = vld [vmem:[%s317 + $0xc] sm:$0xf]
      %v407 = vld [vmem:[%s317 + $0x10] sm:$0xf]
      %s408 = scalar_lea.vmem [#allocation2], 384
      %409 = vst [vmem:[%s408] sm:$0xf] %v404
      %410 = vst [vmem:[%s408 + $0xc] sm:$0xf] %v405
      %411 = vst [vmem:[%s408 + $0x18] sm:$0xf] %v406
      %412 = vst [vmem:[%s408 + $0x24] sm:$0xf] %v407
      %v413 = vld [vmem:[%s299] sm:$0xf]
      %v414 = vld [vmem:[%s299 + $0x4] sm:$0xf]
      %v415 = vld [vmem:[%s299 + $0x8] sm:$0x1]
      %v416 = vld [vmem:[%s299 + $0xc] sm:$0xf]
      %v417 = vld [vmem:[%s299 + $0x10] sm:$0xf]
      %v418 = vld [vmem:[%s299 + $0x14] sm:$0x1]
      %v419 = vld [vmem:[%s299 + $0x18] sm:$0xf]
      %v420 = vld [vmem:[%s299 + $0x1c] sm:$0xf]
      %v421 = vld [vmem:[%s299 + $0x20] sm:$0x1]
      %v422 = vld [vmem:[%s299 + $0x24] sm:$0xf]
      %v423 = vld [vmem:[%s299 + $0x28] sm:$0xf]
      %v424 = vld [vmem:[%s299 + $0x2c] sm:$0x1]
      %v425 = vld [vmem:[%s299 + $0x30] sm:$0xf]
      %v426 = vld [vmem:[%s299 + $0x34] sm:$0xf]
      %v427 = vld [vmem:[%s299 + $0x38] sm:$0x1]
      %v428 = vld [vmem:[%s299 + $0x3c] sm:$0xf]
      %v429 = vld [vmem:[%s299 + $0x40] sm:$0xf]
      %v430 = vld [vmem:[%s299 + $0x44] sm:$0x1]
      %v431 = vld [vmem:[%s299 + $0x48] sm:$0xf]
      %v432 = vld [vmem:[%s299 + $0x4c] sm:$0xf]
      %v433 = vld [vmem:[%s299 + $0x50] sm:$0x1]
      %v434 = vld [vmem:[%s299 + $0x54] sm:$0xf]
      %v435 = vld [vmem:[%s299 + $0x58] sm:$0xf]
      %v436 = vld [vmem:[%s299 + $0x5c] sm:$0x1]
      %v437 = vld [vmem:[%s299 + $0x60] sm:$0xf]
      %v438 = vld [vmem:[%s299 + $0x64] sm:$0xf]
      %v439 = vld [vmem:[%s299 + $0x68] sm:$0x1]
      %v440 = vld [vmem:[%s299 + $0x6c] sm:$0xf]
      %v441 = vld [vmem:[%s299 + $0x70] sm:$0xf]
      %v442 = vld [vmem:[%s299 + $0x74] sm:$0x1]
      %v443 = vld [vmem:[%s299 + $0x78] sm:$0xf]
      %v444 = vld [vmem:[%s299 + $0x7c] sm:$0xf]
      %v445 = vld [vmem:[%s299 + $0x80] sm:$0x1]
      %v446 = vld [vmem:[%s299 + $0x84] sm:$0xf]
      %v447 = vld [vmem:[%s299 + $0x88] sm:$0xf]
      %v448 = vld [vmem:[%s299 + $0x8c] sm:$0x1]
      %v449 = vld [vmem:[%s299 + $0x90] sm:$0xf]
      %v450 = vld [vmem:[%s299 + $0x94] sm:$0xf]
      %v451 = vld [vmem:[%s299 + $0x98] sm:$0x1]
      %v452 = vld [vmem:[%s299 + $0x9c] sm:$0xf]
      %v453 = vld [vmem:[%s299 + $0xa0] sm:$0xf]
      %v454 = vld [vmem:[%s299 + $0xa4] sm:$0x1]
      %v455 = vld [vmem:[%s299 + $0xa8] sm:$0xf]
      %v456 = vld [vmem:[%s299 + $0xac] sm:$0xf]
      %v457 = vld [vmem:[%s299 + $0xb0] sm:$0x1]
      %v458 = vld [vmem:[%s299 + $0xb4] sm:$0xf]
      %v459 = vld [vmem:[%s299 + $0xb8] sm:$0xf]
      %v460 = vld [vmem:[%s299 + $0xbc] sm:$0x1]
      %vm461 = vsmask.f32 3328
      %vm462 = vsmask.f32 7440
      %vm463 = vmor %vm461, %vm462
      %v465 = vshrl.u32 %v413, 16
      %v467 = vrot.slane %v465, 4
      %v468 = vshll.u32 %v413, 16
      %v470 = vrot.slane %v468, 5
      %v471 = vor.u32 %v467, %v470
      %v472 = vrot.slane %v471, 4
      %v474 = vshll.u32 %v414, 16
      %v476 = vrot.slane %v474, 5
      %v477 = vsel %vm463, %v472, %v476
      %v478 = vshrl.u32 %v414, 16
      %v480 = vrot.slane %v478, 4
      %v481 = vor.u32 %v480, %v476
      %v482 = vrot.slane %v481, 4
      %v484 = vshll.u32 %v415, 16
      %v486 = vrot.slane %v484, 5
      %v487 = vsel %vm463, %v482, %v486
      %v489 = vshrl.u32 %v416, 16
      %v491 = vrot.slane %v489, 4
      %v492 = vshll.u32 %v416, 16
      %v494 = vrot.slane %v492, 5
      %v495 = vor.u32 %v491, %v494
      %v496 = vrot.slane %v495, 4
      %v498 = vshll.u32 %v417, 16
      %v500 = vrot.slane %v498, 5
      %v501 = vsel %vm463, %v496, %v500
      %v502 = vshrl.u32 %v417, 16
      %v504 = vrot.slane %v502, 4
      %v505 = vor.u32 %v504, %v500
      %v506 = vrot.slane %v505, 4
      %v508 = vshll.u32 %v418, 16
      %v510 = vrot.slane %v508, 5
      %v511 = vsel %vm463, %v506, %v510
      %v513 = vshrl.u32 %v419, 16
      %v515 = vrot.slane %v513, 4
      %v516 = vshll.u32 %v419, 16
      %v518 = vrot.slane %v516, 5
      %v519 = vor.u32 %v515, %v518
      %v520 = vrot.slane %v519, 4
      %v522 = vshll.u32 %v420, 16
      %v524 = vrot.slane %v522, 5
      %v525 = vsel %vm463, %v520, %v524
      %v526 = vshrl.u32 %v420, 16
      %v528 = vrot.slane %v526, 4
      %v529 = vor.u32 %v528, %v524
      %v530 = vrot.slane %v529, 4
      %v532 = vshll.u32 %v421, 16
      %v534 = vrot.slane %v532, 5
      %v535 = vsel %vm463, %v530, %v534
      %v537 = vshrl.u32 %v422, 16
      %v539 = vrot.slane %v537, 4
      %v540 = vshll.u32 %v422, 16
      %v542 = vrot.slane %v540, 5
      %v543 = vor.u32 %v539, %v542
      %v544 = vrot.slane %v543, 4
      %v546 = vshll.u32 %v423, 16
      %v548 = vrot.slane %v546, 5
      %v549 = vsel %vm463, %v544, %v548
      %v550 = vshrl.u32 %v423, 16
      %v552 = vrot.slane %v550, 4
      %v553 = vor.u32 %v552, %v548
      %v554 = vrot.slane %v553, 4
      %v556 = vshll.u32 %v424, 16
      %v558 = vrot.slane %v556, 5
      %v559 = vsel %vm463, %v554, %v558
      %v561 = vshrl.u32 %v425, 16
      %v563 = vrot.slane %v561, 4
      %v564 = vshll.u32 %v425, 16
      %v566 = vrot.slane %v564, 5
      %v567 = vor.u32 %v563, %v566
      %v568 = vrot.slane %v567, 4
      %v570 = vshll.u32 %v426, 16
      %v572 = vrot.slane %v570, 5
      %v573 = vsel %vm463, %v568, %v572
      %v574 = vshrl.u32 %v426, 16
      %v576 = vrot.slane %v574, 4
      %v577 = vor.u32 %v576, %v572
      %v578 = vrot.slane %v577, 4
      %v580 = vshll.u32 %v427, 16
      %v582 = vrot.slane %v580, 5
      %v583 = vsel %vm463, %v578, %v582
      %v585 = vshrl.u32 %v428, 16
      %v587 = vrot.slane %v585, 4
      %v588 = vshll.u32 %v428, 16
      %v590 = vrot.slane %v588, 5
      %v591 = vor.u32 %v587, %v590
      %v592 = vrot.slane %v591, 4
      %v594 = vshll.u32 %v429, 16
      %v596 = vrot.slane %v594, 5
      %v597 = vsel %vm463, %v592, %v596
      %v598 = vshrl.u32 %v429, 16
      %v600 = vrot.slane %v598, 4
      %v601 = vor.u32 %v600, %v596
      %v602 = vrot.slane %v601, 4
      %v604 = vshll.u32 %v430, 16
      %v606 = vrot.slane %v604, 5
      %v607 = vsel %vm463, %v602, %v606
      %v609 = vshrl.u32 %v431, 16
      %v611 = vrot.slane %v609, 4
      %v612 = vshll.u32 %v431, 16
      %v614 = vrot.slane %v612, 5
      %v615 = vor.u32 %v611, %v614
      %v616 = vrot.slane %v615, 4
      %v618 = vshll.u32 %v432, 16
      %v620 = vrot.slane %v618, 5
      %v621 = vsel %vm463, %v616, %v620
      %v622 = vshrl.u32 %v432, 16
      %v624 = vrot.slane %v622, 4
      %v625 = vor.u32 %v624, %v620
      %v626 = vrot.slane %v625, 4
      %v628 = vshll.u32 %v433, 16
      %v630 = vrot.slane %v628, 5
      %v631 = vsel %vm463, %v626, %v630
      %v633 = vshrl.u32 %v434, 16
      %v635 = vrot.slane %v633, 4
      %v636 = vshll.u32 %v434, 16
      %v638 = vrot.slane %v636, 5
      %v639 = vor.u32 %v635, %v638
      %v640 = vrot.slane %v639, 4
      %v642 = vshll.u32 %v435, 16
      %v644 = vrot.slane %v642, 5
      %v645 = vsel %vm463, %v640, %v644
      %v646 = vshrl.u32 %v435, 16
      %v648 = vrot.slane %v646, 4
      %v649 = vor.u32 %v648, %v644
      %v650 = vrot.slane %v649, 4
      %v652 = vshll.u32 %v436, 16
      %v654 = vrot.slane %v652, 5
      %v655 = vsel %vm463, %v650, %v654
      %v657 = vshrl.u32 %v437, 16
      %v659 = vrot.slane %v657, 4
      %v660 = vshll.u32 %v437, 16
      %v662 = vrot.slane %v660, 5
      %v663 = vor.u32 %v659, %v662
      %v664 = vrot.slane %v663, 4
      %v666 = vshll.u32 %v438, 16
      %v668 = vrot.slane %v666, 5
      %v669 = vsel %vm463, %v664, %v668
      %v670 = vshrl.u32 %v438, 16
      %v672 = vrot.slane %v670, 4
      %v673 = vor.u32 %v672, %v668
      %v674 = vrot.slane %v673, 4
      %v676 = vshll.u32 %v439, 16
      %v678 = vrot.slane %v676, 5
      %v679 = vsel %vm463, %v674, %v678
      %v681 = vshrl.u32 %v440, 16
      %v683 = vrot.slane %v681, 4
      %v684 = vshll.u32 %v440, 16
      %v686 = vrot.slane %v684, 5
      %v687 = vor.u32 %v683, %v686
      %v688 = vrot.slane %v687, 4
      %v690 = vshll.u32 %v441, 16
      %v692 = vrot.slane %v690, 5
      %v693 = vsel %vm463, %v688, %v692
      %v694 = vshrl.u32 %v441, 16
      %v696 = vrot.slane %v694, 4
      %v697 = vor.u32 %v696, %v692
      %v698 = vrot.slane %v697, 4
      %v700 = vshll.u32 %v442, 16
      %v702 = vrot.slane %v700, 5
      %v703 = vsel %vm463, %v698, %v702
      %v705 = vshrl.u32 %v443, 16
      %v707 = vrot.slane %v705, 4
      %v708 = vshll.u32 %v443, 16
      %v710 = vrot.slane %v708, 5
      %v711 = vor.u32 %v707, %v710
      %v712 = vrot.slane %v711, 4
      %v714 = vshll.u32 %v444, 16
      %v716 = vrot.slane %v714, 5
      %v717 = vsel %vm463, %v712, %v716
      %v718 = vshrl.u32 %v444, 16
      %v720 = vrot.slane %v718, 4
      %v721 = vor.u32 %v720, %v716
      %v722 = vrot.slane %v721, 4
      %v724 = vshll.u32 %v445, 16
      %v726 = vrot.slane %v724, 5
      %v727 = vsel %vm463, %v722, %v726
      %v729 = vshrl.u32 %v446, 16
      %v731 = vrot.slane %v729, 4
      %v732 = vshll.u32 %v446, 16
      %v734 = vrot.slane %v732, 5
      %v735 = vor.u32 %v731, %v734
      %v736 = vrot.slane %v735, 4
      %v738 = vshll.u32 %v447, 16
      %v740 = vrot.slane %v738, 5
      %v741 = vsel %vm463, %v736, %v740
      %v742 = vshrl.u32 %v447, 16
      %v744 = vrot.slane %v742, 4
      %v745 = vor.u32 %v744, %v740
      %v746 = vrot.slane %v745, 4
      %v748 = vshll.u32 %v448, 16
      %v750 = vrot.slane %v748, 5
      %v751 = vsel %vm463, %v746, %v750
      %v753 = vshrl.u32 %v449, 16
      %v755 = vrot.slane %v753, 4
      %v756 = vshll.u32 %v449, 16
      %v758 = vrot.slane %v756, 5
      %v759 = vor.u32 %v755, %v758
      %v760 = vrot.slane %v759, 4
      %v762 = vshll.u32 %v450, 16
      %v764 = vrot.slane %v762, 5
      %v765 = vsel %vm463, %v760, %v764
      %v766 = vshrl.u32 %v450, 16
      %v768 = vrot.slane %v766, 4
      %v769 = vor.u32 %v768, %v764
      %v770 = vrot.slane %v769, 4
      %v772 = vshll.u32 %v451, 16
      %v774 = vrot.slane %v772, 5
      %v775 = vsel %vm463, %v770, %v774
      %v777 = vshrl.u32 %v452, 16
      %v779 = vrot.slane %v777, 4
      %v780 = vshll.u32 %v452, 16
      %v782 = vrot.slane %v780, 5
      %v783 = vor.u32 %v779, %v782
      %v784 = vrot.slane %v783, 4
      %v786 = vshll.u32 %v453, 16
      %v788 = vrot.slane %v786, 5
      %v789 = vsel %vm463, %v784, %v788
      %v790 = vshrl.u32 %v453, 16
      %v792 = vrot.slane %v790, 4
      %v793 = vor.u32 %v792, %v788
      %v794 = vrot.slane %v793, 4
      %v796 = vshll.u32 %v454, 16
      %v798 = vrot.slane %v796, 5
      %v799 = vsel %vm463, %v794, %v798
      %v801 = vshrl.u32 %v455, 16
      %v803 = vrot.slane %v801, 4
      %v804 = vshll.u32 %v455, 16
      %v806 = vrot.slane %v804, 5
      %v807 = vor.u32 %v803, %v806
      %v808 = vrot.slane %v807, 4
      %v810 = vshll.u32 %v456, 16
      %v812 = vrot.slane %v810, 5
      %v813 = vsel %vm463, %v808, %v812
      %v814 = vshrl.u32 %v456, 16
      %v816 = vrot.slane %v814, 4
      %v817 = vor.u32 %v816, %v812
      %v818 = vrot.slane %v817, 4
      %v820 = vshll.u32 %v457, 16
      %v822 = vrot.slane %v820, 5
      %v823 = vsel %vm463, %v818, %v822
      %v825 = vshrl.u32 %v458, 16
      %v827 = vrot.slane %v825, 4
      %v828 = vshll.u32 %v458, 16
      %v830 = vrot.slane %v828, 5
      %v831 = vor.u32 %v827, %v830
      %v832 = vrot.slane %v831, 4
      %v834 = vshll.u32 %v459, 16
      %v836 = vrot.slane %v834, 5
      %v837 = vsel %vm463, %v832, %v836
      %v838 = vshrl.u32 %v459, 16
      %v840 = vrot.slane %v838, 4
      %v841 = vor.u32 %v840, %v836
      %v842 = vrot.slane %v841, 4
      %v844 = vshll.u32 %v460, 16
      %v846 = vrot.slane %v844, 5
      %v847 = vsel %vm463, %v842, %v846
      %880 = vst [vmem:[#allocation2 + $0x4] sm:$0xf] %v477
      %881 = vst [vmem:[#allocation2 + $0x10] sm:$0xf] %v487
      %882 = vst [vmem:[#allocation2 + $0x1c] sm:$0xf] %v501
      %883 = vst [vmem:[#allocation2 + $0x28] sm:$0xf] %v511
      %884 = vst [vmem:[#allocation2 + $0x34] sm:$0xf] %v525
      %885 = vst [vmem:[#allocation2 + $0x40] sm:$0xf] %v535
      %886 = vst [vmem:[#allocation2 + $0x4c] sm:$0xf] %v549
      %887 = vst [vmem:[#allocation2 + $0x58] sm:$0xf] %v559
      %888 = vst [vmem:[#allocation2 + $0x64] sm:$0xf] %v573
      %889 = vst [vmem:[#allocation2 + $0x70] sm:$0xf] %v583
      %890 = vst [vmem:[#allocation2 + $0x7c] sm:$0xf] %v597
      %891 = vst [vmem:[#allocation2 + $0x88] sm:$0xf] %v607
      %892 = vst [vmem:[#allocation2 + $0x94] sm:$0xf] %v621
      %893 = vst [vmem:[#allocation2 + $0xa0] sm:$0xf] %v631
      %894 = vst [vmem:[#allocation2 + $0xac] sm:$0xf] %v645
      %895 = vst [vmem:[#allocation2 + $0xb8] sm:$0xf] %v655
      %896 = vst [vmem:[#allocation2 + $0xc4] sm:$0xf] %v669
      %897 = vst [vmem:[#allocation2 + $0xd0] sm:$0xf] %v679
      %898 = vst [vmem:[#allocation2 + $0xdc] sm:$0xf] %v693
      %899 = vst [vmem:[#allocation2 + $0xe8] sm:$0xf] %v703
      %900 = vst [vmem:[#allocation2 + $0xf4] sm:$0xf] %v717
      %901 = vst [vmem:[#allocation2 + $0x100] sm:$0xf] %v727
      %902 = vst [vmem:[#allocation2 + $0x10c] sm:$0xf] %v741
      %903 = vst [vmem:[#allocation2 + $0x118] sm:$0xf] %v751
      %904 = vst [vmem:[#allocation2 + $0x124] sm:$0xf] %v765
      %905 = vst [vmem:[#allocation2 + $0x130] sm:$0xf] %v775
      %906 = vst [vmem:[#allocation2 + $0x13c] sm:$0xf] %v789
      %907 = vst [vmem:[#allocation2 + $0x148] sm:$0xf] %v799
      %908 = vst [vmem:[#allocation2 + $0x154] sm:$0xf] %v813
      %909 = vst [vmem:[#allocation2 + $0x160] sm:$0xf] %v823
      %910 = vst [vmem:[#allocation2 + $0x16c] sm:$0xf] %v837
      %911 = vst [vmem:[#allocation2 + $0x178] sm:$0xf] %v847
      %v912 = vld [vmem:[%s317] sm:$0xf]
      %v913 = vld [vmem:[%s317 + $0x4] sm:$0xf]
      %v914 = vld [vmem:[%s317 + $0x8] sm:$0x1]
      %v915 = vld [vmem:[%s317 + $0xc] sm:$0xf]
      %v916 = vld [vmem:[%s317 + $0x10] sm:$0xf]
      %v917 = vld [vmem:[%s317 + $0x14] sm:$0x1]
      %v919 = vshrl.u32 %v912, 16
      %v921 = vrot.slane %v919, 4
      %v922 = vshll.u32 %v912, 16
      %v924 = vrot.slane %v922, 5
      %v925 = vor.u32 %v921, %v924
      %v926 = vrot.slane %v925, 4
      %v928 = vshll.u32 %v913, 16
      %v930 = vrot.slane %v928, 5
      %v931 = vsel %vm463, %v926, %v930
      %v932 = vshrl.u32 %v913, 16
      %v934 = vrot.slane %v932, 4
      %v935 = vor.u32 %v934, %v930
      %v936 = vrot.slane %v935, 4
      %v938 = vshll.u32 %v914, 16
      %v940 = vrot.slane %v938, 5
      %v941 = vsel %vm463, %v936, %v940
      %v943 = vshrl.u32 %v915, 16
      %v945 = vrot.slane %v943, 4
      %v946 = vshll.u32 %v915, 16
      %v948 = vrot.slane %v946, 5
      %v949 = vor.u32 %v945, %v948
      %v950 = vrot.slane %v949, 4
      %v952 = vshll.u32 %v916, 16
      %v954 = vrot.slane %v952, 5
      %v955 = vsel %vm463, %v950, %v954
      %v956 = vshrl.u32 %v916, 16
      %v958 = vrot.slane %v956, 4
      %v959 = vor.u32 %v958, %v954
      %v960 = vrot.slane %v959, 4
      %v962 = vshll.u32 %v917, 16
      %v964 = vrot.slane %v962, 5
      %v965 = vsel %vm463, %v960, %v964
      %970 = vst [vmem:[%s408 + $0x4] sm:$0xf] %v931
      %971 = vst [vmem:[%s408 + $0x10] sm:$0xf] %v941
      %972 = vst [vmem:[%s408 + $0x1c] sm:$0xf] %v955
      %973 = vst [vmem:[%s408 + $0x28] sm:$0xf] %v965
      %v974 = vld [vmem:[%s299] sm:$0xe]
      %v975 = vld [vmem:[%s299 + $0x4] sm:$0xf]
      %v976 = vld [vmem:[%s299 + $0x8] sm:$0x1]
      %v977 = vld [vmem:[%s299 + $0xc] sm:$0xe]
      %v978 = vld [vmem:[%s299 + $0x10] sm:$0xf]
      %v979 = vld [vmem:[%s299 + $0x14] sm:$0x1]
      %v980 = vld [vmem:[%s299 + $0x18] sm:$0xe]
      %v981 = vld [vmem:[%s299 + $0x1c] sm:$0xf]
      %v982 = vld [vmem:[%s299 + $0x20] sm:$0x1]
      %v983 = vld [vmem:[%s299 + $0x24] sm:$0xe]
      %v984 = vld [vmem:[%s299 + $0x28] sm:$0xf]
      %v985 = vld [vmem:[%s299 + $0x2c] sm:$0x1]
      %v986 = vld [vmem:[%s299 + $0x30] sm:$0xe]
      %v987 = vld [vmem:[%s299 + $0x34] sm:$0xf]
      %v988 = vld [vmem:[%s299 + $0x38] sm:$0x1]
      %v989 = vld [vmem:[%s299 + $0x3c] sm:$0xe]
      %v990 = vld [vmem:[%s299 + $0x40] sm:$0xf]
      %v991 = vld [vmem:[%s299 + $0x44] sm:$0x1]
      %v992 = vld [vmem:[%s299 + $0x48] sm:$0xe]
      %v993 = vld [vmem:[%s299 + $0x4c] sm:$0xf]
      %v994 = vld [vmem:[%s299 + $0x50] sm:$0x1]
      %v995 = vld [vmem:[%s299 + $0x54] sm:$0xe]
      %v996 = vld [vmem:[%s299 + $0x58] sm:$0xf]
      %v997 = vld [vmem:[%s299 + $0x5c] sm:$0x1]
      %v998 = vld [vmem:[%s299 + $0x60] sm:$0xe]
      %v999 = vld [vmem:[%s299 + $0x64] sm:$0xf]
      %v1000 = vld [vmem:[%s299 + $0x68] sm:$0x1]
      %v1001 = vld [vmem:[%s299 + $0x6c] sm:$0xe]
      %v1002 = vld [vmem:[%s299 + $0x70] sm:$0xf]
      %v1003 = vld [vmem:[%s299 + $0x74] sm:$0x1]
      %v1004 = vld [vmem:[%s299 + $0x78] sm:$0xe]
      %v1005 = vld [vmem:[%s299 + $0x7c] sm:$0xf]
      %v1006 = vld [vmem:[%s299 + $0x80] sm:$0x1]
      %v1007 = vld [vmem:[%s299 + $0x84] sm:$0xe]
      %v1008 = vld [vmem:[%s299 + $0x88] sm:$0xf]
      %v1009 = vld [vmem:[%s299 + $0x8c] sm:$0x1]
      %v1010 = vld [vmem:[%s299 + $0x90] sm:$0xe]
      %v1011 = vld [vmem:[%s299 + $0x94] sm:$0xf]
      %v1012 = vld [vmem:[%s299 + $0x98] sm:$0x1]
      %v1013 = vld [vmem:[%s299 + $0x9c] sm:$0xe]
      %v1014 = vld [vmem:[%s299 + $0xa0] sm:$0xf]
      %v1015 = vld [vmem:[%s299 + $0xa4] sm:$0x1]
      %v1016 = vld [vmem:[%s299 + $0xa8] sm:$0xe]
      %v1017 = vld [vmem:[%s299 + $0xac] sm:$0xf]
      %v1018 = vld [vmem:[%s299 + $0xb0] sm:$0x1]
      %v1019 = vld [vmem:[%s299 + $0xb4] sm:$0xe]
      %v1020 = vld [vmem:[%s299 + $0xb8] sm:$0xf]
      %v1021 = vld [vmem:[%s299 + $0xbc] sm:$0x1]
      %vm1070 = vcmask 1042432
      %vm1071 = vcmask 1046532
      %vm1072 = vmor %vm1070, %vm1071
      %v1073 = vrot.slane %v974, 5
      %v1074 = vrot.slane %v1073, 4
      %v1075 = vrot.slane %v975, 5
      %v1076 = vsel %vm1072, %v1074, %v1075
      %v1077 = vrot.slane %v1075, 4
      %v1078 = vrot.slane %v976, 5
      %v1079 = vsel %vm1072, %v1077, %v1078
      %v1080 = vrot.slane %v977, 5
      %v1081 = vrot.slane %v1080, 4
      %v1082 = vrot.slane %v978, 5
      %v1083 = vsel %vm1072, %v1081, %v1082
      %v1084 = vrot.slane %v1082, 4
      %v1085 = vrot.slane %v979, 5
      %v1086 = vsel %vm1072, %v1084, %v1085
      %v1087 = vrot.slane %v980, 5
      %v1088 = vrot.slane %v1087, 4
      %v1089 = vrot.slane %v981, 5
      %v1090 = vsel %vm1072, %v1088, %v1089
      %v1091 = vrot.slane %v1089, 4
      %v1092 = vrot.slane %v982, 5
      %v1093 = vsel %vm1072, %v1091, %v1092
      %v1094 = vrot.slane %v983, 5
      %v1095 = vrot.slane %v1094, 4
      %v1096 = vrot.slane %v984, 5
      %v1097 = vsel %vm1072, %v1095, %v1096
      %v1098 = vrot.slane %v1096, 4
      %v1099 = vrot.slane %v985, 5
      %v1100 = vsel %vm1072, %v1098, %v1099
      %v1101 = vrot.slane %v986, 5
      %v1102 = vrot.slane %v1101, 4
      %v1103 = vrot.slane %v987, 5
      %v1104 = vsel %vm1072, %v1102, %v1103
      %v1105 = vrot.slane %v1103, 4
      %v1106 = vrot.slane %v988, 5
      %v1107 = vsel %vm1072, %v1105, %v1106
      %v1108 = vrot.slane %v989, 5
      %v1109 = vrot.slane %v1108, 4
      %v1110 = vrot.slane %v990, 5
      %v1111 = vsel %vm1072, %v1109, %v1110
      %v1112 = vrot.slane %v1110, 4
      %v1113 = vrot.slane %v991, 5
      %v1114 = vsel %vm1072, %v1112, %v1113
      %v1115 = vrot.slane %v992, 5
      %v1116 = vrot.slane %v1115, 4
      %v1117 = vrot.slane %v993, 5
      %v1118 = vsel %vm1072, %v1116, %v1117
      %v1119 = vrot.slane %v1117, 4
      %v1120 = vrot.slane %v994, 5
      %v1121 = vsel %vm1072, %v1119, %v1120
      %v1122 = vrot.slane %v995, 5
      %v1123 = vrot.slane %v1122, 4
      %v1124 = vrot.slane %v996, 5
      %v1125 = vsel %vm1072, %v1123, %v1124
      %v1126 = vrot.slane %v1124, 4
      %v1127 = vrot.slane %v997, 5
      %v1128 = vsel %vm1072, %v1126, %v1127
      %v1129 = vrot.slane %v998, 5
      %v1130 = vrot.slane %v1129, 4
      %v1131 = vrot.slane %v999, 5
      %v1132 = vsel %vm1072, %v1130, %v1131
      %v1133 = vrot.slane %v1131, 4
      %v1134 = vrot.slane %v1000, 5
      %v1135 = vsel %vm1072, %v1133, %v1134
      %v1136 = vrot.slane %v1001, 5
      %v1137 = vrot.slane %v1136, 4
      %v1138 = vrot.slane %v1002, 5
      %v1139 = vsel %vm1072, %v1137, %v1138
      %v1140 = vrot.slane %v1138, 4
      %v1141 = vrot.slane %v1003, 5
      %v1142 = vsel %vm1072, %v1140, %v1141
      %v1143 = vrot.slane %v1004, 5
      %v1144 = vrot.slane %v1143, 4
      %v1145 = vrot.slane %v1005, 5
      %v1146 = vsel %vm1072, %v1144, %v1145
      %v1147 = vrot.slane %v1145, 4
      %v1148 = vrot.slane %v1006, 5
      %v1149 = vsel %vm1072, %v1147, %v1148
      %v1150 = vrot.slane %v1007, 5
      %v1151 = vrot.slane %v1150, 4
      %v1152 = vrot.slane %v1008, 5
      %v1153 = vsel %vm1072, %v1151, %v1152
      %v1154 = vrot.slane %v1152, 4
      %v1155 = vrot.slane %v1009, 5
      %v1156 = vsel %vm1072, %v1154, %v1155
      %v1157 = vrot.slane %v1010, 5
      %v1158 = vrot.slane %v1157, 4
      %v1159 = vrot.slane %v1011, 5
      %v1160 = vsel %vm1072, %v1158, %v1159
      %v1161 = vrot.slane %v1159, 4
      %v1162 = vrot.slane %v1012, 5
      %v1163 = vsel %vm1072, %v1161, %v1162
      %v1164 = vrot.slane %v1013, 5
      %v1165 = vrot.slane %v1164, 4
      %v1166 = vrot.slane %v1014, 5
      %v1167 = vsel %vm1072, %v1165, %v1166
      %v1168 = vrot.slane %v1166, 4
      %v1169 = vrot.slane %v1015, 5
      %v1170 = vsel %vm1072, %v1168, %v1169
      %v1171 = vrot.slane %v1016, 5
      %v1172 = vrot.slane %v1171, 4
      %v1173 = vrot.slane %v1017, 5
      %v1174 = vsel %vm1072, %v1172, %v1173
      %v1175 = vrot.slane %v1173, 4
      %v1176 = vrot.slane %v1018, 5
      %v1177 = vsel %vm1072, %v1175, %v1176
      %v1178 = vrot.slane %v1019, 5
      %v1179 = vrot.slane %v1178, 4
      %v1180 = vrot.slane %v1020, 5
      %v1181 = vsel %vm1072, %v1179, %v1180
      %v1182 = vrot.slane %v1180, 4
      %v1183 = vrot.slane %v1021, 5
      %v1184 = vsel %vm1072, %v1182, %v1183
      %1217 = vst [vmem:[#allocation2 + $0x8] sm:$0xf] %v1076
      %1218 = vst [vmem:[#allocation2 + $0x14] sm:$0xf] %v1079
      %1219 = vst [vmem:[#allocation2 + $0x20] sm:$0xf] %v1083
      %1220 = vst [vmem:[#allocation2 + $0x2c] sm:$0xf] %v1086
      %1221 = vst [vmem:[#allocation2 + $0x38] sm:$0xf] %v1090
      %1222 = vst [vmem:[#allocation2 + $0x44] sm:$0xf] %v1093
      %1223 = vst [vmem:[#allocation2 + $0x50] sm:$0xf] %v1097
      %1224 = vst [vmem:[#allocation2 + $0x5c] sm:$0xf] %v1100
      %1225 = vst [vmem:[#allocation2 + $0x68] sm:$0xf] %v1104
      %1226 = vst [vmem:[#allocation2 + $0x74] sm:$0xf] %v1107
      %1227 = vst [vmem:[#allocation2 + $0x80] sm:$0xf] %v1111
      %1228 = vst [vmem:[#allocation2 + $0x8c] sm:$0xf] %v1114
      %1229 = vst [vmem:[#allocation2 + $0x98] sm:$0xf] %v1118
      %1230 = vst [vmem:[#allocation2 + $0xa4] sm:$0xf] %v1121
      %1231 = vst [vmem:[#allocation2 + $0xb0] sm:$0xf] %v1125
      %1232 = vst [vmem:[#allocation2 + $0xbc] sm:$0xf] %v1128
      %1233 = vst [vmem:[#allocation2 + $0xc8] sm:$0xf] %v1132
      %1234 = vst [vmem:[#allocation2 + $0xd4] sm:$0xf] %v1135
      %1235 = vst [vmem:[#allocation2 + $0xe0] sm:$0xf] %v1139
      %1236 = vst [vmem:[#allocation2 + $0xec] sm:$0xf] %v1142
      %1237 = vst [vmem:[#allocation2 + $0xf8] sm:$0xf] %v1146
      %1238 = vst [vmem:[#allocation2 + $0x104] sm:$0xf] %v1149
      %1239 = vst [vmem:[#allocation2 + $0x110] sm:$0xf] %v1153
      %1240 = vst [vmem:[#allocation2 + $0x11c] sm:$0xf] %v1156
      %1241 = vst [vmem:[#allocation2 + $0x128] sm:$0xf] %v1160
      %1242 = vst [vmem:[#allocation2 + $0x134] sm:$0xf] %v1163
      %1243 = vst [vmem:[#allocation2 + $0x140] sm:$0xf] %v1167
      %1244 = vst [vmem:[#allocation2 + $0x14c] sm:$0xf] %v1170
      %1245 = vst [vmem:[#allocation2 + $0x158] sm:$0xf] %v1174
      %1246 = vst [vmem:[#allocation2 + $0x164] sm:$0xf] %v1177
      %1247 = vst [vmem:[#allocation2 + $0x170] sm:$0xf] %v1181
      %1248 = vst [vmem:[#allocation2 + $0x17c] sm:$0xf] %v1184
      %v1249 = vld [vmem:[%s317] sm:$0xe]
      %v1250 = vld [vmem:[%s317 + $0x4] sm:$0xf]
      %v1251 = vld [vmem:[%s317 + $0x8] sm:$0x1]
      %v1252 = vld [vmem:[%s317 + $0xc] sm:$0xe]
      %v1253 = vld [vmem:[%s317 + $0x10] sm:$0xf]
      %v1254 = vld [vmem:[%s317 + $0x14] sm:$0x1]
      %v1261 = vrot.slane %v1249, 5
      %v1262 = vrot.slane %v1261, 4
      %v1263 = vrot.slane %v1250, 5
      %v1264 = vsel %vm1072, %v1262, %v1263
      %v1265 = vrot.slane %v1263, 4
      %v1266 = vrot.slane %v1251, 5
      %v1267 = vsel %vm1072, %v1265, %v1266
      %v1268 = vrot.slane %v1252, 5
      %v1269 = vrot.slane %v1268, 4
      %v1270 = vrot.slane %v1253, 5
      %v1271 = vsel %vm1072, %v1269, %v1270
      %v1272 = vrot.slane %v1270, 4
      %v1273 = vrot.slane %v1254, 5
      %v1274 = vsel %vm1072, %v1272, %v1273
      %1279 = vst [vmem:[%s408 + $0x8] sm:$0xf] %v1264
      %1280 = vst [vmem:[%s408 + $0x14] sm:$0xf] %v1267
      %1281 = vst [vmem:[%s408 + $0x20] sm:$0xf] %v1271
      %1282 = vst [vmem:[%s408 + $0x2c] sm:$0xf] %v1274
      %v1283 = vld [vmem:[#allocation2] sm:$0xff]
      %v1284 = vld [vmem:[#allocation2 + $0x8] sm:$0xf]
      %v1285 = vld [vmem:[#allocation2 + $0xc] sm:$0xff]
      %v1286 = vld [vmem:[#allocation2 + $0x14] sm:$0xf]
      %v1287 = vld [vmem:[#allocation2 + $0x18] sm:$0xff]
      %v1288 = vld [vmem:[#allocation2 + $0x20] sm:$0xf]
      %v1289 = vld [vmem:[#allocation2 + $0x24] sm:$0xff]
      %v1290 = vld [vmem:[#allocation2 + $0x2c] sm:$0xf]
      %v1291 = vld [vmem:[#allocation2 + $0x30] sm:$0xff]
      %v1292 = vld [vmem:[#allocation2 + $0x38] sm:$0xf]
      %v1293 = vld [vmem:[#allocation2 + $0x3c] sm:$0xff]
      %v1294 = vld [vmem:[#allocation2 + $0x44] sm:$0xf]
      %v1295 = vld [vmem:[#allocation2 + $0x48] sm:$0xff]
      %v1296 = vld [vmem:[#allocation2 + $0x50] sm:$0xf]
      %v1297 = vld [vmem:[#allocation2 + $0x54] sm:$0xff]
      %v1298 = vld [vmem:[#allocation2 + $0x5c] sm:$0xf]
      %v1299 = vld [vmem:[#allocation2 + $0x60] sm:$0xff]
      %v1300 = vld [vmem:[#allocation2 + $0x68] sm:$0xf]
      %v1301 = vld [vmem:[#allocation2 + $0x6c] sm:$0xff]
      %v1302 = vld [vmem:[#allocation2 + $0x74] sm:$0xf]
      %v1303 = vld [vmem:[#allocation2 + $0x78] sm:$0xff]
      %v1304 = vld [vmem:[#allocation2 + $0x80] sm:$0xf]
      %v1305 = vld [vmem:[#allocation2 + $0x84] sm:$0xff]
      %v1306 = vld [vmem:[#allocation2 + $0x8c] sm:$0xf]
      %v1307 = vld [vmem:[#allocation2 + $0x90] sm:$0xff]
      %v1308 = vld [vmem:[#allocation2 + $0x98] sm:$0xf]
      %v1309 = vld [vmem:[#allocation2 + $0x9c] sm:$0xff]
      %v1310 = vld [vmem:[#allocation2 + $0xa4] sm:$0xf]
      %v1311 = vld [vmem:[#allocation2 + $0xa8] sm:$0xff]
      %v1312 = vld [vmem:[#allocation2 + $0xb0] sm:$0xf]
      %v1313 = vld [vmem:[#allocation2 + $0xb4] sm:$0xff]
      %v1314 = vld [vmem:[#allocation2 + $0xbc] sm:$0xf]
      %v1315 = vld [vmem:[#allocation2 + $0xc0] sm:$0xff]
      %v1316 = vld [vmem:[#allocation2 + $0xc8] sm:$0xf]
      %v1317 = vld [vmem:[#allocation2 + $0xcc] sm:$0xff]
      %v1318 = vld [vmem:[#allocation2 + $0xd4] sm:$0xf]
      %v1319 = vld [vmem:[#allocation2 + $0xd8] sm:$0xff]
      %v1320 = vld [vmem:[#allocation2 + $0xe0] sm:$0xf]
      %v1321 = vld [vmem:[#allocation2 + $0xe4] sm:$0xff]
      %v1322 = vld [vmem:[#allocation2 + $0xec] sm:$0xf]
      %v1323 = vld [vmem:[#allocation2 + $0xf0] sm:$0xff]
      %v1324 = vld [vmem:[#allocation2 + $0xf8] sm:$0xf]
      %v1325 = vld [vmem:[#allocation2 + $0xfc] sm:$0xff]
      %v1326 = vld [vmem:[#allocation2 + $0x104] sm:$0xf]
      %v1327 = vld [vmem:[#allocation2 + $0x108] sm:$0xff]
      %v1328 = vld [vmem:[#allocation2 + $0x110] sm:$0xf]
      %v1329 = vld [vmem:[#allocation2 + $0x114] sm:$0xff]
      %v1330 = vld [vmem:[#allocation2 + $0x11c] sm:$0xf]
      %v1331 = vld [vmem:[#allocation2 + $0x120] sm:$0xff]
      %v1332 = vld [vmem:[#allocation2 + $0x128] sm:$0xf]
      %v1333 = vld [vmem:[#allocation2 + $0x12c] sm:$0xff]
      %v1334 = vld [vmem:[#allocation2 + $0x134] sm:$0xf]
      %v1335 = vld [vmem:[#allocation2 + $0x138] sm:$0xff]
      %v1336 = vld [vmem:[#allocation2 + $0x140] sm:$0xf]
      %v1337 = vld [vmem:[#allocation2 + $0x144] sm:$0xff]
      %v1338 = vld [vmem:[#allocation2 + $0x14c] sm:$0xf]
      %v1339 = vld [vmem:[#allocation2 + $0x150] sm:$0xff]
      %v1340 = vld [vmem:[#allocation2 + $0x158] sm:$0xf]
      %v1341 = vld [vmem:[#allocation2 + $0x15c] sm:$0xff]
      %v1342 = vld [vmem:[#allocation2 + $0x164] sm:$0xf]
      %v1343 = vld [vmem:[#allocation2 + $0x168] sm:$0xff]
      %v1344 = vld [vmem:[#allocation2 + $0x170] sm:$0xf]
      %v1345 = vld [vmem:[#allocation2 + $0x174] sm:$0xff]
      %v1346 = vld [vmem:[#allocation2 + $0x17c] sm:$0xf]
      %v1347 = vld [vmem:[%s2] sm:$0xf]
      %v1348 = vld [vmem:[%s2 + $0x4] sm:$0xf]
      %v1349 = vld [vmem:[%s2 + $0x8] sm:$0xf]
      %v1350 = vld [vmem:[%s2 + $0xc] sm:$0xf]
      %v1351 = vld [vmem:[%s2 + $0x10] sm:$0xf]
      %v1352 = vld [vmem:[%s2 + $0x14] sm:$0xf]
      %v1353 = vld [vmem:[%s2 + $0x18] sm:$0xf]
      %v1354 = vld [vmem:[%s2 + $0x1c] sm:$0xf]
      %v1355 = vld [vmem:[%s2 + $0x20] sm:$0xf]
      %v1356 = vld [vmem:[%s2 + $0x24] sm:$0xf]
      %v1357 = vld [vmem:[%s2 + $0x28] sm:$0xf]
      %v1358 = vld [vmem:[%s2 + $0x2c] sm:$0xf]
      %v1359 = vld [vmem:[%s2 + $0x30] sm:$0xf]
      %v1360 = vld [vmem:[%s2 + $0x34] sm:$0xf]
      %v1361 = vld [vmem:[%s2 + $0x38] sm:$0xf]
      %v1362 = vld [vmem:[%s2 + $0x3c] sm:$0xf]
      %v1363 = vld [vmem:[%s2 + $0x40] sm:$0xf]
      %v1364 = vld [vmem:[%s2 + $0x44] sm:$0xf]
      %v1365 = vld [vmem:[%s2 + $0x48] sm:$0xf]
      %v1366 = vld [vmem:[%s2 + $0x4c] sm:$0xf]
      %v1367 = vld [vmem:[%s2 + $0x50] sm:$0xf]
      %v1368 = vld [vmem:[%s2 + $0x54] sm:$0xf]
      %v1369 = vld [vmem:[%s2 + $0x58] sm:$0xf]
      %v1370 = vld [vmem:[%s2 + $0x5c] sm:$0xf]
      %v1371 = vld [vmem:[%s2 + $0x60] sm:$0xf]
      %v1372 = vld [vmem:[%s2 + $0x64] sm:$0xf]
      %v1373 = vld [vmem:[%s2 + $0x68] sm:$0xf]
      %v1374 = vld [vmem:[%s2 + $0x6c] sm:$0xf]
      %v1375 = vld [vmem:[%s2 + $0x70] sm:$0xf]
      %v1376 = vld [vmem:[%s2 + $0x74] sm:$0xf]
      %v1377 = vld [vmem:[%s2 + $0x78] sm:$0xf]
      %v1378 = vld [vmem:[%s2 + $0x7c] sm:$0xf]
      %v1379 = vld [vmem:[%s2 + $0x80] sm:$0xf]
      %v1380 = vld [vmem:[%s2 + $0x84] sm:$0xf]
      %v1381 = vld [vmem:[%s2 + $0x88] sm:$0xf]
      %v1382 = vld [vmem:[%s2 + $0x8c] sm:$0xf]
      %v1383 = vld [vmem:[%s2 + $0x90] sm:$0xf]
      %v1384 = vld [vmem:[%s2 + $0x94] sm:$0xf]
      %v1385 = vld [vmem:[%s2 + $0x98] sm:$0xf]
      %v1386 = vld [vmem:[%s2 + $0x9c] sm:$0xf]
      %v1387 = vld [vmem:[%s2 + $0xa0] sm:$0xf]
      %v1388 = vld [vmem:[%s2 + $0xa4] sm:$0xf]
      %v1389 = vld [vmem:[%s2 + $0xa8] sm:$0xf]
      %v1390 = vld [vmem:[%s2 + $0xac] sm:$0xf]
      %v1391 = vld [vmem:[%s2 + $0xb0] sm:$0xf]
      %v1392 = vld [vmem:[%s2 + $0xb4] sm:$0xf]
      %v1393 = vld [vmem:[%s2 + $0xb8] sm:$0xf]
      %v1394 = vld [vmem:[%s2 + $0xbc] sm:$0xf]
      %s1395 = scalar_lea.vmem [#allocation2], 24
      %v1396 = vld [vmem:[%s1395] sm:$0xff]
      %v1397 = vld [vmem:[%s1395 + $0x8] sm:$0xf]
      %v1398 = vld [vmem:[%s1395 + $0xc] sm:$0xff]
      %v1399 = vld [vmem:[%s1395 + $0x14] sm:$0xf]
      %v1400 = vld [vmem:[%s1395 + $0x18] sm:$0xff]
      %v1401 = vld [vmem:[%s1395 + $0x20] sm:$0xf]
      %v1402 = vld [vmem:[%s1395 + $0x24] sm:$0xff]
      %v1403 = vld [vmem:[%s1395 + $0x2c] sm:$0xf]
      %v1404 = vld [vmem:[%s1395 + $0x30] sm:$0xff]
      %v1405 = vld [vmem:[%s1395 + $0x38] sm:$0xf]
      %v1406 = vld [vmem:[%s1395 + $0x3c] sm:$0xff]
      %v1407 = vld [vmem:[%s1395 + $0x44] sm:$0xf]
      %v1408 = vld [vmem:[%s1395 + $0x48] sm:$0xff]
      %v1409 = vld [vmem:[%s1395 + $0x50] sm:$0xf]
      %v1410 = vld [vmem:[%s1395 + $0x54] sm:$0xff]
      %v1411 = vld [vmem:[%s1395 + $0x5c] sm:$0xf]
      %v1412 = vld [vmem:[%s1395 + $0x60] sm:$0xff]
      %v1413 = vld [vmem:[%s1395 + $0x68] sm:$0xf]
      %v1414 = vld [vmem:[%s1395 + $0x6c] sm:$0xff]
      %v1415 = vld [vmem:[%s1395 + $0x74] sm:$0xf]
      %v1416 = vld [vmem:[%s1395 + $0x78] sm:$0xff]
      %v1417 = vld [vmem:[%s1395 + $0x80] sm:$0xf]
      %v1418 = vld [vmem:[%s1395 + $0x84] sm:$0xff]
      %v1419 = vld [vmem:[%s1395 + $0x8c] sm:$0xf]
      %v1420 = vld [vmem:[%s1395 + $0x90] sm:$0xff]
      %v1421 = vld [vmem:[%s1395 + $0x98] sm:$0xf]
      %v1422 = vld [vmem:[%s1395 + $0x9c] sm:$0xff]
      %v1423 = vld [vmem:[%s1395 + $0xa4] sm:$0xf]
      %v1424 = vld [vmem:[%s1395 + $0xa8] sm:$0xff]
      %v1425 = vld [vmem:[%s1395 + $0xb0] sm:$0xf]
      %v1426 = vld [vmem:[%s1395 + $0xb4] sm:$0xff]
      %v1427 = vld [vmem:[%s1395 + $0xbc] sm:$0xf]
      %v1428 = vld [vmem:[%s1395 + $0xc0] sm:$0xff]
      %v1429 = vld [vmem:[%s1395 + $0xc8] sm:$0xf]
      %v1430 = vld [vmem:[%s1395 + $0xcc] sm:$0xff]
      %v1431 = vld [vmem:[%s1395 + $0xd4] sm:$0xf]
      %v1432 = vld [vmem:[%s1395 + $0xd8] sm:$0xff]
      %v1433 = vld [vmem:[%s1395 + $0xe0] sm:$0xf]
      %v1434 = vld [vmem:[%s1395 + $0xe4] sm:$0xff]
      %v1435 = vld [vmem:[%s1395 + $0xec] sm:$0xf]
      %v1436 = vld [vmem:[%s1395 + $0xf0] sm:$0xff]
      %v1437 = vld [vmem:[%s1395 + $0xf8] sm:$0xf]
      %v1438 = vld [vmem:[%s1395 + $0xfc] sm:$0xff]
      %v1439 = vld [vmem:[%s1395 + $0x104] sm:$0xf]
      %v1440 = vld [vmem:[%s1395 + $0x108] sm:$0xff]
      %v1441 = vld [vmem:[%s1395 + $0x110] sm:$0xf]
      %v1442 = vld [vmem:[%s1395 + $0x114] sm:$0xff]
      %v1443 = vld [vmem:[%s1395 + $0x11c] sm:$0xf]
      %v1444 = vld [vmem:[%s1395 + $0x120] sm:$0xff]
      %v1445 = vld [vmem:[%s1395 + $0x128] sm:$0xf]
      %v1446 = vld [vmem:[%s1395 + $0x12c] sm:$0xff]
      %v1447 = vld [vmem:[%s1395 + $0x134] sm:$0xf]
      %v1448 = vld [vmem:[%s1395 + $0x138] sm:$0xff]
      %v1449 = vld [vmem:[%s1395 + $0x140] sm:$0xf]
      %v1450 = vld [vmem:[%s1395 + $0x144] sm:$0xff]
      %v1451 = vld [vmem:[%s1395 + $0x14c] sm:$0xf]
      %v1452 = vld [vmem:[%s1395 + $0x150] sm:$0xff]
      %v1453 = vld [vmem:[%s1395 + $0x158] sm:$0xf]
      %v1454 = vld [vmem:[%s1395 + $0x15c] sm:$0xff]
      %v1455 = vld [vmem:[%s1395 + $0x164] sm:$0xf]
      %v1456 = vld [vmem:[%s1395 + $0x168] sm:$0xff]
      %v1457 = vld [vmem:[%s1395 + $0x170] sm:$0xf]
      %v1458 = vld [vmem:[%s1395 + $0x174] sm:$0xff]
      %v1459 = vld [vmem:[%s1395 + $0x17c] sm:$0xf]
      %s1460 = scalar_lea.vmem %s2, 192
      %v1461 = vld [vmem:[%s1460] sm:$0xf]
      %v1462 = vld [vmem:[%s1460 + $0x4] sm:$0xf]
      %v1463 = vld [vmem:[%s1460 + $0x8] sm:$0xf]
      %v1464 = vld [vmem:[%s1460 + $0xc] sm:$0xf]
      %v1465 = vld [vmem:[%s1460 + $0x10] sm:$0xf]
      %v1466 = vld [vmem:[%s1460 + $0x14] sm:$0xf]
      %v1467 = vld [vmem:[%s1460 + $0x18] sm:$0xf]
      %v1468 = vld [vmem:[%s1460 + $0x1c] sm:$0xf]
      %v1469 = vld [vmem:[%s1460 + $0x20] sm:$0xf]
      %v1470 = vld [vmem:[%s1460 + $0x24] sm:$0xf]
      %v1471 = vld [vmem:[%s1460 + $0x28] sm:$0xf]
      %v1472 = vld [vmem:[%s1460 + $0x2c] sm:$0xf]
      %v1473 = vld [vmem:[%s1460 + $0x30] sm:$0xf]
      %v1474 = vld [vmem:[%s1460 + $0x34] sm:$0xf]
      %v1475 = vld [vmem:[%s1460 + $0x38] sm:$0xf]
      %v1476 = vld [vmem:[%s1460 + $0x3c] sm:$0xf]
      %v1477 = vld [vmem:[%s1460 + $0x40] sm:$0xf]
      %v1478 = vld [vmem:[%s1460 + $0x44] sm:$0xf]
      %v1479 = vld [vmem:[%s1460 + $0x48] sm:$0xf]
      %v1480 = vld [vmem:[%s1460 + $0x4c] sm:$0xf]
      %v1481 = vld [vmem:[%s1460 + $0x50] sm:$0xf]
      %v1482 = vld [vmem:[%s1460 + $0x54] sm:$0xf]
      %v1483 = vld [vmem:[%s1460 + $0x58] sm:$0xf]
      %v1484 = vld [vmem:[%s1460 + $0x5c] sm:$0xf]
      %v1485 = vld [vmem:[%s1460 + $0x60] sm:$0xf]
      %v1486 = vld [vmem:[%s1460 + $0x64] sm:$0xf]
      %v1487 = vld [vmem:[%s1460 + $0x68] sm:$0xf]
      %v1488 = vld [vmem:[%s1460 + $0x6c] sm:$0xf]
      %v1489 = vld [vmem:[%s1460 + $0x70] sm:$0xf]
      %v1490 = vld [vmem:[%s1460 + $0x74] sm:$0xf]
      %v1491 = vld [vmem:[%s1460 + $0x78] sm:$0xf]
      %v1492 = vld [vmem:[%s1460 + $0x7c] sm:$0xf]
      %v1493 = vld [vmem:[%s1460 + $0x80] sm:$0xf]
      %v1494 = vld [vmem:[%s1460 + $0x84] sm:$0xf]
      %v1495 = vld [vmem:[%s1460 + $0x88] sm:$0xf]
      %v1496 = vld [vmem:[%s1460 + $0x8c] sm:$0xf]
      %v1497 = vld [vmem:[%s1460 + $0x90] sm:$0xf]
      %v1498 = vld [vmem:[%s1460 + $0x94] sm:$0xf]
      %v1499 = vld [vmem:[%s1460 + $0x98] sm:$0xf]
      %v1500 = vld [vmem:[%s1460 + $0x9c] sm:$0xf]
      %v1501 = vld [vmem:[%s1460 + $0xa0] sm:$0xf]
      %v1502 = vld [vmem:[%s1460 + $0xa4] sm:$0xf]
      %v1503 = vld [vmem:[%s1460 + $0xa8] sm:$0xf]
      %v1504 = vld [vmem:[%s1460 + $0xac] sm:$0xf]
      %v1505 = vld [vmem:[%s1460 + $0xb0] sm:$0xf]
      %v1506 = vld [vmem:[%s1460 + $0xb4] sm:$0xf]
      %v1507 = vld [vmem:[%s1460 + $0xb8] sm:$0xf]
      %v1508 = vld [vmem:[%s1460 + $0xbc] sm:$0xf]
      %v1573 = vunpack.c.l.b16 %v1396
      %v1574 = vunpack.c.h.b16 %v1396
      %v1575 = vunpack.c.l.b16 %v1397
      %v1576 = vunpack.c.l.b16 %v1398
      %v1577 = vunpack.c.h.b16 %v1398
      %v1578 = vunpack.c.l.b16 %v1399
      %v1579 = vunpack.c.l.b16 %v1400
      %v1580 = vunpack.c.h.b16 %v1400
      %v1581 = vunpack.c.l.b16 %v1401
      %v1582 = vunpack.c.l.b16 %v1402
      %v1583 = vunpack.c.h.b16 %v1402
      %v1584 = vunpack.c.l.b16 %v1403
      %v1585 = vunpack.c.l.b16 %v1404
      %v1586 = vunpack.c.h.b16 %v1404
      %v1587 = vunpack.c.l.b16 %v1405
      %v1588 = vunpack.c.l.b16 %v1406
      %v1589 = vunpack.c.h.b16 %v1406
      %v1590 = vunpack.c.l.b16 %v1407
      %v1591 = vunpack.c.l.b16 %v1408
      %v1592 = vunpack.c.h.b16 %v1408
      %v1593 = vunpack.c.l.b16 %v1409
      %v1594 = vunpack.c.l.b16 %v1410
      %v1595 = vunpack.c.h.b16 %v1410
      %v1596 = vunpack.c.l.b16 %v1411
      %v1597 = vunpack.c.l.b16 %v1412
      %v1598 = vunpack.c.h.b16 %v1412
      %v1599 = vunpack.c.l.b16 %v1413
      %v1600 = vunpack.c.l.b16 %v1414
      %v1601 = vunpack.c.h.b16 %v1414
      %v1602 = vunpack.c.l.b16 %v1415
      %v1603 = vunpack.c.l.b16 %v1416
      %v1604 = vunpack.c.h.b16 %v1416
      %v1605 = vunpack.c.l.b16 %v1417
      %v1606 = vunpack.c.l.b16 %v1418
      %v1607 = vunpack.c.h.b16 %v1418
      %v1608 = vunpack.c.l.b16 %v1419
      %v1609 = vunpack.c.l.b16 %v1420
      %v1610 = vunpack.c.h.b16 %v1420
      %v1611 = vunpack.c.l.b16 %v1421
      %v1612 = vunpack.c.l.b16 %v1422
      %v1613 = vunpack.c.h.b16 %v1422
      %v1614 = vunpack.c.l.b16 %v1423
      %v1615 = vunpack.c.l.b16 %v1424
      %v1616 = vunpack.c.h.b16 %v1424
      %v1617 = vunpack.c.l.b16 %v1425
      %v1618 = vunpack.c.l.b16 %v1426
      %v1619 = vunpack.c.h.b16 %v1426
      %v1620 = vunpack.c.l.b16 %v1427
      %v1621 = vunpack.c.l.b16 %v1428
      %v1622 = vunpack.c.h.b16 %v1428
      %v1623 = vunpack.c.l.b16 %v1429
      %v1624 = vunpack.c.l.b16 %v1430
      %v1625 = vunpack.c.h.b16 %v1430
      %v1626 = vunpack.c.l.b16 %v1431
      %v1627 = vunpack.c.l.b16 %v1432
      %v1628 = vunpack.c.h.b16 %v1432
      %v1629 = vunpack.c.l.b16 %v1433
      %v1630 = vunpack.c.l.b16 %v1434
      %v1631 = vunpack.c.h.b16 %v1434
      %v1632 = vunpack.c.l.b16 %v1435
      %v1633 = vunpack.c.l.b16 %v1436
      %v1634 = vunpack.c.h.b16 %v1436
      %v1635 = vunpack.c.l.b16 %v1437
      %v1636 = vunpack.c.l.b16 %v1438
      %v1637 = vunpack.c.h.b16 %v1438
      %v1638 = vunpack.c.l.b16 %v1439
      %v1639 = vunpack.c.l.b16 %v1440
      %v1640 = vunpack.c.h.b16 %v1440
      %v1641 = vunpack.c.l.b16 %v1441
      %v1642 = vunpack.c.l.b16 %v1442
      %v1643 = vunpack.c.h.b16 %v1442
      %v1644 = vunpack.c.l.b16 %v1443
      %v1645 = vunpack.c.l.b16 %v1444
      %v1646 = vunpack.c.h.b16 %v1444
      %v1647 = vunpack.c.l.b16 %v1445
      %v1648 = vunpack.c.l.b16 %v1446
      %v1649 = vunpack.c.h.b16 %v1446
      %v1650 = vunpack.c.l.b16 %v1447
      %v1651 = vunpack.c.l.b16 %v1448
      %v1652 = vunpack.c.h.b16 %v1448
      %v1653 = vunpack.c.l.b16 %v1449
      %v1654 = vunpack.c.l.b16 %v1450
      %v1655 = vunpack.c.h.b16 %v1450
      %v1656 = vunpack.c.l.b16 %v1451
      %v1657 = vunpack.c.l.b16 %v1452
      %v1658 = vunpack.c.h.b16 %v1452
      %v1659 = vunpack.c.l.b16 %v1453
      %v1660 = vunpack.c.l.b16 %v1454
      %v1661 = vunpack.c.h.b16 %v1454
      %v1662 = vunpack.c.l.b16 %v1455
      %v1663 = vunpack.c.l.b16 %v1456
      %v1664 = vunpack.c.h.b16 %v1456
      %v1665 = vunpack.c.l.b16 %v1457
      %v1666 = vunpack.c.l.b16 %v1458
      %v1667 = vunpack.c.h.b16 %v1458
      %v1668 = vunpack.c.l.b16 %v1459
      %v1669 = vpack.c.b16 %v1576, %v1573
      %v1670 = vpack.c.b16 %v1577, %v1574
      %v1671 = vpack.c.b16 %v1578, %v1575
      %v1672 = vpack.c.b16 %v1582, %v1579
      %v1673 = vpack.c.b16 %v1583, %v1580
      %v1674 = vpack.c.b16 %v1584, %v1581
      %v1675 = vpack.c.b16 %v1588, %v1585
      %v1676 = vpack.c.b16 %v1589, %v1586
      %v1677 = vpack.c.b16 %v1590, %v1587
      %v1678 = vpack.c.b16 %v1594, %v1591
      %v1679 = vpack.c.b16 %v1595, %v1592
      %v1680 = vpack.c.b16 %v1596, %v1593
      %v1681 = vpack.c.b16 %v1600, %v1597
      %v1682 = vpack.c.b16 %v1601, %v1598
      %v1683 = vpack.c.b16 %v1602, %v1599
      %v1684 = vpack.c.b16 %v1606, %v1603
      %v1685 = vpack.c.b16 %v1607, %v1604
      %v1686 = vpack.c.b16 %v1608, %v1605
      %v1687 = vpack.c.b16 %v1612, %v1609
      %v1688 = vpack.c.b16 %v1613, %v1610
      %v1689 = vpack.c.b16 %v1614, %v1611
      %v1690 = vpack.c.b16 %v1618, %v1615
      %v1691 = vpack.c.b16 %v1619, %v1616
      %v1692 = vpack.c.b16 %v1620, %v1617
      %v1693 = vpack.c.b16 %v1624, %v1621
      %v1694 = vpack.c.b16 %v1625, %v1622
      %v1695 = vpack.c.b16 %v1626, %v1623
      %v1696 = vpack.c.b16 %v1630, %v1627
      %v1697 = vpack.c.b16 %v1631, %v1628
      %v1698 = vpack.c.b16 %v1632, %v1629
      %v1699 = vpack.c.b16 %v1636, %v1633
      %v1700 = vpack.c.b16 %v1637, %v1634
      %v1701 = vpack.c.b16 %v1638, %v1635
      %v1702 = vpack.c.b16 %v1642, %v1639
      %v1703 = vpack.c.b16 %v1643, %v1640
      %v1704 = vpack.c.b16 %v1644, %v1641
      %v1705 = vpack.c.b16 %v1648, %v1645
      %v1706 = vpack.c.b16 %v1649, %v1646
      %v1707 = vpack.c.b16 %v1650, %v1647
      %v1708 = vpack.c.b16 %v1654, %v1651
      %v1709 = vpack.c.b16 %v1655, %v1652
      %v1710 = vpack.c.b16 %v1656, %v1653
      %v1711 = vpack.c.b16 %v1660, %v1657
      %v1712 = vpack.c.b16 %v1661, %v1658
      %v1713 = vpack.c.b16 %v1662, %v1659
      %v1714 = vpack.c.b16 %v1666, %v1663
      %v1715 = vpack.c.b16 %v1667, %v1664
      %v1716 = vpack.c.b16 %v1668, %v1665
      %v1813 = vunpack.c.l.b16 %v1461
      %v1814 = vunpack.c.l.b16 %v1462
      %v1815 = vunpack.c.l.b16 %v1463
      %v1816 = vunpack.c.l.b16 %v1464
      %v1817 = vunpack.c.l.b16 %v1465
      %v1818 = vunpack.c.l.b16 %v1466
      %v1819 = vunpack.c.l.b16 %v1467
      %v1820 = vunpack.c.l.b16 %v1468
      %v1821 = vunpack.c.l.b16 %v1469
      %v1822 = vunpack.c.l.b16 %v1470
      %v1823 = vunpack.c.l.b16 %v1471
      %v1824 = vunpack.c.l.b16 %v1472
      %v1825 = vunpack.c.l.b16 %v1473
      %v1826 = vunpack.c.l.b16 %v1474
      %v1827 = vunpack.c.l.b16 %v1475
      %v1828 = vunpack.c.l.b16 %v1476
      %v1829 = vunpack.c.l.b16 %v1477
      %v1830 = vunpack.c.l.b16 %v1478
      %v1831 = vunpack.c.l.b16 %v1479
      %v1832 = vunpack.c.l.b16 %v1480
      %v1833 = vunpack.c.l.b16 %v1481
      %v1834 = vunpack.c.l.b16 %v1482
      %v1835 = vunpack.c.l.b16 %v1483
      %v1836 = vunpack.c.l.b16 %v1484
      %v1837 = vunpack.c.l.b16 %v1485
      %v1838 = vunpack.c.l.b16 %v1486
      %v1839 = vunpack.c.l.b16 %v1487
      %v1840 = vunpack.c.l.b16 %v1488
      %v1841 = vunpack.c.l.b16 %v1489
      %v1842 = vunpack.c.l.b16 %v1490
      %v1843 = vunpack.c.l.b16 %v1491
      %v1844 = vunpack.c.l.b16 %v1492
      %v1845 = vunpack.c.l.b16 %v1493
      %v1846 = vunpack.c.l.b16 %v1494
      %v1847 = vunpack.c.l.b16 %v1495
      %v1848 = vunpack.c.l.b16 %v1496
      %v1849 = vunpack.c.l.b16 %v1497
      %v1850 = vunpack.c.l.b16 %v1498
      %v1851 = vunpack.c.l.b16 %v1499
      %v1852 = vunpack.c.l.b16 %v1500
      %v1853 = vunpack.c.l.b16 %v1501
      %v1854 = vunpack.c.l.b16 %v1502
      %v1855 = vunpack.c.l.b16 %v1503
      %v1856 = vunpack.c.l.b16 %v1504
      %v1857 = vunpack.c.l.b16 %v1505
      %v1858 = vunpack.c.l.b16 %v1506
      %v1859 = vunpack.c.l.b16 %v1507
      %v1860 = vunpack.c.l.b16 %v1508
      %v1861 = vpack.c.b16 %v1814, %v1813
      %v1862 = vpack.c.b16 %v1816, %v1815
      %v1863 = vpack.c.b16 %v1818, %v1817
      %v1864 = vpack.c.b16 %v1820, %v1819
      %v1865 = vpack.c.b16 %v1822, %v1821
      %v1866 = vpack.c.b16 %v1824, %v1823
      %v1867 = vpack.c.b16 %v1826, %v1825
      %v1868 = vpack.c.b16 %v1828, %v1827
      %v1869 = vpack.c.b16 %v1830, %v1829
      %v1870 = vpack.c.b16 %v1832, %v1831
      %v1871 = vpack.c.b16 %v1834, %v1833
      %v1872 = vpack.c.b16 %v1836, %v1835
      %v1873 = vpack.c.b16 %v1838, %v1837
      %v1874 = vpack.c.b16 %v1840, %v1839
      %v1875 = vpack.c.b16 %v1842, %v1841
      %v1876 = vpack.c.b16 %v1844, %v1843
      %v1877 = vpack.c.b16 %v1846, %v1845
      %v1878 = vpack.c.b16 %v1848, %v1847
      %v1879 = vpack.c.b16 %v1850, %v1849
      %v1880 = vpack.c.b16 %v1852, %v1851
      %v1881 = vpack.c.b16 %v1854, %v1853
      %v1882 = vpack.c.b16 %v1856, %v1855
      %v1883 = vpack.c.b16 %v1858, %v1857
      %v1884 = vpack.c.b16 %v1860, %v1859
      %1909 = vmatprep.subr.bf16.mxu0 0
      %1910 = vmatpush1.bf16.msra.mxu0 %v1868
      %1911 = vmatprep.subr.bf16.mxu0 0
      %1912 = vmatpush1.bf16.msra.mxu0 %v1867
      %1913 = vmatprep.subr.bf16.mxu0 0
      %1914 = vmatpush1.bf16.msra.mxu0 %v1866
      %1915 = vmatprep.subr.bf16.mxu0 0
      %1916 = vmatpush1.bf16.msra.mxu0 %v1865
      %1917 = vmatprep.subr.bf16.mxu0 0
      %1918 = vmatpush1.bf16.msra.mxu0 %v1864
      %1919 = vmatprep.subr.bf16.mxu0 0
      %1920 = vmatpush1.bf16.msra.mxu0 %v1863
      %1921 = vmatprep.subr.bf16.mxu0 0
      %1922 = vmatpush1.bf16.msra.mxu0 %v1862
      %1923 = vmatprep.subr.bf16.mxu0 0
      %1924 = vmatpush1.bf16.msra.mxu0 %v1861
      %1925 = vmatprep.subr.bf16.mxu0 0
      %1926 = vmatpush2.bf16.msra.mxu0 %v1876
      %1927 = vmatprep.subr.bf16.mxu0 0
      %1928 = vmatpush2.bf16.msra.mxu0 %v1875
      %1929 = vmatprep.subr.bf16.mxu0 0
      %1930 = vmatpush2.bf16.msra.mxu0 %v1874
      %1931 = vmatprep.subr.bf16.mxu0 0
      %1932 = vmatpush2.bf16.msra.mxu0 %v1873
      %1933 = vmatprep.subr.bf16.mxu0 0
      %1934 = vmatpush2.bf16.msra.mxu0 %v1872
      %1935 = vmatprep.subr.bf16.mxu0 0
      %1936 = vmatpush2.bf16.msra.mxu0 %v1871
      %1937 = vmatprep.subr.bf16.mxu0 0
      %1938 = vmatpush2.bf16.msra.mxu0 %v1870
      %1939 = vmatprep.subr.bf16.mxu0 0
      %1940 = vmatpush2.bf16.msra.mxu0 %v1869
      %1941 = vmatprep.mubr.bf16.mxu0 %v1670
      %1942 = vmatmul.mubr.bf16.gmra.mxu0 %v1669
      %v1943 = vpop.f32.mrf.mxu0
      %v1944 = vadd.f32 0.0, %v1943
      %v1945 = vpop.f32.mrf.mxu0
      %v1946 = vpop.f32.mrf.mxu0
      %v1947 = vadd.f32 0.0, %v1946
      %v1948 = vpop.f32.mrf.mxu0
      %1949 = vmatprep.mubr.bf16.mxu0 %v1673
      %1950 = vmatmul.mubr.bf16.gmra.mxu0 %v1672
      %v1951 = vpop.f32.mrf.mxu0
      %v1952 = vadd.f32 0.0, %v1951
      %v1953 = vpop.f32.mrf.mxu0
      %v1954 = vpop.f32.mrf.mxu0
      %v1955 = vadd.f32 0.0, %v1954
      %v1956 = vpop.f32.mrf.mxu0
      %1957 = vmatprep.mubr.bf16.mxu0 %v1676
      %1958 = vmatmul.mubr.bf16.gmra.mxu0 %v1675
      %v1959 = vpop.f32.mrf.mxu0
      %v1960 = vadd.f32 0.0, %v1959
      %v1961 = vpop.f32.mrf.mxu0
      %v1962 = vpop.f32.mrf.mxu0
      %v1963 = vadd.f32 0.0, %v1962
      %v1964 = vpop.f32.mrf.mxu0
      %1965 = vmatprep.mubr.bf16.mxu0 %v1679
      %1966 = vmatmul.mubr.bf16.gmra.mxu0 %v1678
      %v1967 = vpop.f32.mrf.mxu0
      %v1968 = vadd.f32 0.0, %v1967
      %v1969 = vpop.f32.mrf.mxu0
      %v1970 = vpop.f32.mrf.mxu0
      %v1971 = vadd.f32 0.0, %v1970
      %v1972 = vpop.f32.mrf.mxu0
      %1973 = vmatprep.mubr.bf16.mxu0 %v1682
      %1974 = vmatmul.mubr.bf16.gmra.mxu0 %v1681
      %v1975 = vpop.f32.mrf.mxu0
      %v1976 = vadd.f32 0.0, %v1975
      %v1977 = vpop.f32.mrf.mxu0
      %v1978 = vpop.f32.mrf.mxu0
      %v1979 = vadd.f32 0.0, %v1978
      %v1980 = vpop.f32.mrf.mxu0
      %1981 = vmatprep.mubr.bf16.mxu0 %v1685
      %1982 = vmatmul.mubr.bf16.gmra.mxu0 %v1684
      %v1983 = vpop.f32.mrf.mxu0
      %v1984 = vadd.f32 0.0, %v1983
      %v1985 = vpop.f32.mrf.mxu0
      %v1986 = vpop.f32.mrf.mxu0
      %v1987 = vadd.f32 0.0, %v1986
      %v1988 = vpop.f32.mrf.mxu0
      %1989 = vmatprep.mubr.bf16.mxu0 %v1688
      %1990 = vmatmul.mubr.bf16.gmra.mxu0 %v1687
      %v1991 = vpop.f32.mrf.mxu0
      %v1992 = vadd.f32 0.0, %v1991
      %v1993 = vpop.f32.mrf.mxu0
      %v1994 = vpop.f32.mrf.mxu0
      %v1995 = vadd.f32 0.0, %v1994
      %v1996 = vpop.f32.mrf.mxu0
      %1997 = vmatprep.mubr.bf16.mxu0 %v1691
      %1998 = vmatmul.mubr.bf16.gmra.mxu0 %v1690
      %v1999 = vpop.f32.mrf.mxu0
      %v2000 = vadd.f32 0.0, %v1999
      %v2001 = vpop.f32.mrf.mxu0
      %v2002 = vpop.f32.mrf.mxu0
      %v2003 = vadd.f32 0.0, %v2002
      %v2004 = vpop.f32.mrf.mxu0
      %2005 = vmatprep.mubr.bf16.mxu0 %v1694
      %2006 = vmatmul.mubr.bf16.gmra.mxu0 %v1693
      %v2007 = vpop.f32.mrf.mxu0
      %v2008 = vadd.f32 0.0, %v2007
      %v2009 = vpop.f32.mrf.mxu0
      %v2010 = vpop.f32.mrf.mxu0
      %v2011 = vadd.f32 0.0, %v2010
      %v2012 = vpop.f32.mrf.mxu0
      %2013 = vmatprep.mubr.bf16.mxu0 %v1697
      %2014 = vmatmul.mubr.bf16.gmra.mxu0 %v1696
      %v2015 = vpop.f32.mrf.mxu0
      %v2016 = vadd.f32 0.0, %v2015
      %v2017 = vpop.f32.mrf.mxu0
      %v2018 = vpop.f32.mrf.mxu0
      %v2019 = vadd.f32 0.0, %v2018
      %v2020 = vpop.f32.mrf.mxu0
      %2021 = vmatprep.mubr.bf16.mxu0 %v1700
      %2022 = vmatmul.mubr.bf16.gmra.mxu0 %v1699
      %v2023 = vpop.f32.mrf.mxu0
      %v2024 = vadd.f32 0.0, %v2023
      %v2025 = vpop.f32.mrf.mxu0
      %v2026 = vpop.f32.mrf.mxu0
      %v2027 = vadd.f32 0.0, %v2026
      %v2028 = vpop.f32.mrf.mxu0
      %2029 = vmatprep.mubr.bf16.mxu0 %v1703
      %2030 = vmatmul.mubr.bf16.gmra.mxu0 %v1702
      %v2031 = vpop.f32.mrf.mxu0
      %v2032 = vadd.f32 0.0, %v2031
      %v2033 = vpop.f32.mrf.mxu0
      %v2034 = vpop.f32.mrf.mxu0
      %v2035 = vadd.f32 0.0, %v2034
      %v2036 = vpop.f32.mrf.mxu0
      %2037 = vmatprep.mubr.bf16.mxu0 %v1706
      %2038 = vmatmul.mubr.bf16.gmra.mxu0 %v1705
      %v2039 = vpop.f32.mrf.mxu0
      %v2040 = vadd.f32 0.0, %v2039
      %v2041 = vpop.f32.mrf.mxu0
      %v2042 = vpop.f32.mrf.mxu0
      %v2043 = vadd.f32 0.0, %v2042
      %v2044 = vpop.f32.mrf.mxu0
      %2045 = vmatprep.mubr.bf16.mxu0 %v1709
      %2046 = vmatmul.mubr.bf16.gmra.mxu0 %v1708
      %v2047 = vpop.f32.mrf.mxu0
      %v2048 = vadd.f32 0.0, %v2047
      %v2049 = vpop.f32.mrf.mxu0
      %v2050 = vpop.f32.mrf.mxu0
      %v2051 = vadd.f32 0.0, %v2050
      %v2052 = vpop.f32.mrf.mxu0
      %2053 = vmatprep.mubr.bf16.mxu0 %v1712
      %2054 = vmatmul.mubr.bf16.gmra.mxu0 %v1711
      %v2055 = vpop.f32.mrf.mxu0
      %v2056 = vadd.f32 0.0, %v2055
      %v2057 = vpop.f32.mrf.mxu0
      %v2058 = vpop.f32.mrf.mxu0
      %v2059 = vadd.f32 0.0, %v2058
      %v2060 = vpop.f32.mrf.mxu0
      %2061 = vmatprep.mubr.bf16.mxu0 %v1715
      %2062 = vmatmul.mubr.bf16.gmra.mxu0 %v1714
      %v2063 = vpop.f32.mrf.mxu0
      %v2064 = vadd.f32 0.0, %v2063
      %v2065 = vpop.f32.mrf.mxu0
      %v2066 = vpop.f32.mrf.mxu0
      %v2067 = vadd.f32 0.0, %v2066
      %v2068 = vpop.f32.mrf.mxu0
      %2069 = vdwg.mxu0
      %2070 = vmatprep.subr.bf16.mxu0 0
      %2071 = vmatpush1.bf16.msra.mxu0 %v1884
      %2072 = vmatprep.subr.bf16.mxu0 0
      %2073 = vmatpush1.bf16.msra.mxu0 %v1883
      %2074 = vmatprep.subr.bf16.mxu0 0
      %2075 = vmatpush1.bf16.msra.mxu0 %v1882
      %2076 = vmatprep.subr.bf16.mxu0 0
      %2077 = vmatpush1.bf16.msra.mxu0 %v1881
      %2078 = vmatprep.subr.bf16.mxu0 0
      %2079 = vmatpush1.bf16.msra.mxu0 %v1880
      %2080 = vmatprep.subr.bf16.mxu0 0
      %2081 = vmatpush1.bf16.msra.mxu0 %v1879
      %2082 = vmatprep.subr.bf16.mxu0 0
      %2083 = vmatpush1.bf16.msra.mxu0 %v1878
      %2084 = vmatprep.subr.bf16.mxu0 0
      %2085 = vmatpush1.bf16.msra.mxu0 %v1877
      %2086 = vmatprep.subr.bf16.mxu0 0
      %2087 = vmatpush2.bf16.msra.mxu0 0
      %2088 = vmatprep.subr.bf16.mxu0 0
      %2089 = vmatpush2.bf16.msra.mxu0 0
      %2090 = vmatprep.subr.bf16.mxu0 0
      %2091 = vmatpush2.bf16.msra.mxu0 0
      %2092 = vmatprep.subr.bf16.mxu0 0
      %2093 = vmatpush2.bf16.msra.mxu0 0
      %2094 = vmatprep.subr.bf16.mxu0 0
      %2095 = vmatpush2.bf16.msra.mxu0 0
      %2096 = vmatprep.subr.bf16.mxu0 0
      %2097 = vmatpush2.bf16.msra.mxu0 0
      %2098 = vmatprep.subr.bf16.mxu0 0
      %2099 = vmatpush2.bf16.msra.mxu0 0
      %2100 = vmatprep.subr.bf16.mxu0 0
      %2101 = vmatpush2.bf16.msra.mxu0 0
      %2102 = vmatprep.mubr.bf16.mxu0 0
      %2103 = vmatmul.mubr.bf16.gmra.mxu0 %v1671
      %v2104 = vpop.f32.mrf.mxu0
      %v2105 = vadd.f32 %v1944, %v2104
      %v2106 = vpop.f32.mrf.mxu0
      %v2107 = vpop.f32.mrf.mxu0
      %v2108 = vadd.f32 %v1947, %v2107
      %v2109 = vpop.f32.mrf.mxu0
      %2110 = vmatprep.mubr.bf16.mxu0 0
      %2111 = vmatmul.mubr.bf16.gmra.mxu0 %v1674
      %v2112 = vpop.f32.mrf.mxu0
      %v2113 = vadd.f32 %v1952, %v2112
      %v2114 = vpop.f32.mrf.mxu0
      %v2115 = vpop.f32.mrf.mxu0
      %v2116 = vadd.f32 %v1955, %v2115
      %v2117 = vpop.f32.mrf.mxu0
      %2118 = vmatprep.mubr.bf16.mxu0 0
      %2119 = vmatmul.mubr.bf16.gmra.mxu0 %v1677
      %v2120 = vpop.f32.mrf.mxu0
      %v2121 = vadd.f32 %v1960, %v2120
      %v2122 = vpop.f32.mrf.mxu0
      %v2123 = vpop.f32.mrf.mxu0
      %v2124 = vadd.f32 %v1963, %v2123
      %v2125 = vpop.f32.mrf.mxu0
      %2126 = vmatprep.mubr.bf16.mxu0 0
      %2127 = vmatmul.mubr.bf16.gmra.mxu0 %v1680
      %v2128 = vpop.f32.mrf.mxu0
      %v2129 = vadd.f32 %v1968, %v2128
      %v2130 = vpop.f32.mrf.mxu0
      %v2131 = vpop.f32.mrf.mxu0
      %v2132 = vadd.f32 %v1971, %v2131
      %v2133 = vpop.f32.mrf.mxu0
      %2134 = vmatprep.mubr.bf16.mxu0 0
      %2135 = vmatmul.mubr.bf16.gmra.mxu0 %v1683
      %v2136 = vpop.f32.mrf.mxu0
      %v2137 = vadd.f32 %v1976, %v2136
      %v2138 = vpop.f32.mrf.mxu0
      %v2139 = vpop.f32.mrf.mxu0
      %v2140 = vadd.f32 %v1979, %v2139
      %v2141 = vpop.f32.mrf.mxu0
      %2142 = vmatprep.mubr.bf16.mxu0 0
      %2143 = vmatmul.mubr.bf16.gmra.mxu0 %v1686
      %v2144 = vpop.f32.mrf.mxu0
      %v2145 = vadd.f32 %v1984, %v2144
      %v2146 = vpop.f32.mrf.mxu0
      %v2147 = vpop.f32.mrf.mxu0
      %v2148 = vadd.f32 %v1987, %v2147
      %v2149 = vpop.f32.mrf.mxu0
      %2150 = vmatprep.mubr.bf16.mxu0 0
      %2151 = vmatmul.mubr.bf16.gmra.mxu0 %v1689
      %v2152 = vpop.f32.mrf.mxu0
      %v2153 = vadd.f32 %v1992, %v2152
      %v2154 = vpop.f32.mrf.mxu0
      %v2155 = vpop.f32.mrf.mxu0
      %v2156 = vadd.f32 %v1995, %v2155
      %v2157 = vpop.f32.mrf.mxu0
      %2158 = vmatprep.mubr.bf16.mxu0 0
      %2159 = vmatmul.mubr.bf16.gmra.mxu0 %v1692
      %v2160 = vpop.f32.mrf.mxu0
      %v2161 = vadd.f32 %v2000, %v2160
      %v2162 = vpop.f32.mrf.mxu0
      %v2163 = vpop.f32.mrf.mxu0
      %v2164 = vadd.f32 %v2003, %v2163
      %v2165 = vpop.f32.mrf.mxu0
      %2166 = vmatprep.mubr.bf16.mxu0 0
      %2167 = vmatmul.mubr.bf16.gmra.mxu0 %v1695
      %v2168 = vpop.f32.mrf.mxu0
      %v2169 = vadd.f32 %v2008, %v2168
      %v2170 = vpop.f32.mrf.mxu0
      %v2171 = vpop.f32.mrf.mxu0
      %v2172 = vadd.f32 %v2011, %v2171
      %v2173 = vpop.f32.mrf.mxu0
      %2174 = vmatprep.mubr.bf16.mxu0 0
      %2175 = vmatmul.mubr.bf16.gmra.mxu0 %v1698
      %v2176 = vpop.f32.mrf.mxu0
      %v2177 = vadd.f32 %v2016, %v2176
      %v2178 = vpop.f32.mrf.mxu0
      %v2179 = vpop.f32.mrf.mxu0
      %v2180 = vadd.f32 %v2019, %v2179
      %v2181 = vpop.f32.mrf.mxu0
      %2182 = vmatprep.mubr.bf16.mxu0 0
      %2183 = vmatmul.mubr.bf16.gmra.mxu0 %v1701
      %v2184 = vpop.f32.mrf.mxu0
      %v2185 = vadd.f32 %v2024, %v2184
      %v2186 = vpop.f32.mrf.mxu0
      %v2187 = vpop.f32.mrf.mxu0
      %v2188 = vadd.f32 %v2027, %v2187
      %v2189 = vpop.f32.mrf.mxu0
      %2190 = vmatprep.mubr.bf16.mxu0 0
      %2191 = vmatmul.mubr.bf16.gmra.mxu0 %v1704
      %v2192 = vpop.f32.mrf.mxu0
      %v2193 = vadd.f32 %v2032, %v2192
      %v2194 = vpop.f32.mrf.mxu0
      %v2195 = vpop.f32.mrf.mxu0
      %v2196 = vadd.f32 %v2035, %v2195
      %v2197 = vpop.f32.mrf.mxu0
      %2198 = vmatprep.mubr.bf16.mxu0 0
      %2199 = vmatmul.mubr.bf16.gmra.mxu0 %v1707
      %v2200 = vpop.f32.mrf.mxu0
      %v2201 = vadd.f32 %v2040, %v2200
      %v2202 = vpop.f32.mrf.mxu0
      %v2203 = vpop.f32.mrf.mxu0
      %v2204 = vadd.f32 %v2043, %v2203
      %v2205 = vpop.f32.mrf.mxu0
      %2206 = vmatprep.mubr.bf16.mxu0 0
      %2207 = vmatmul.mubr.bf16.gmra.mxu0 %v1710
      %v2208 = vpop.f32.mrf.mxu0
      %v2209 = vadd.f32 %v2048, %v2208
      %v2210 = vpop.f32.mrf.mxu0
      %v2211 = vpop.f32.mrf.mxu0
      %v2212 = vadd.f32 %v2051, %v2211
      %v2213 = vpop.f32.mrf.mxu0
      %2214 = vmatprep.mubr.bf16.mxu0 0
      %2215 = vmatmul.mubr.bf16.gmra.mxu0 %v1713
      %v2216 = vpop.f32.mrf.mxu0
      %v2217 = vadd.f32 %v2056, %v2216
      %v2218 = vpop.f32.mrf.mxu0
      %v2219 = vpop.f32.mrf.mxu0
      %v2220 = vadd.f32 %v2059, %v2219
      %v2221 = vpop.f32.mrf.mxu0
      %2222 = vmatprep.mubr.bf16.mxu0 0
      %2223 = vmatmul.mubr.bf16.gmra.mxu0 %v1716
      %v2224 = vpop.f32.mrf.mxu0
      %v2225 = vadd.f32 %v2064, %v2224
      %v2226 = vpop.f32.mrf.mxu0
      %v2227 = vpop.f32.mrf.mxu0
      %v2228 = vadd.f32 %v2067, %v2227
      %v2229 = vpop.f32.mrf.mxu0
      %2230 = vdwg.mxu0
      %v2295 = vunpack.c.l.b16 %v1283
      %v2296 = vunpack.c.h.b16 %v1283
      %v2297 = vunpack.c.l.b16 %v1284
      %v2298 = vunpack.c.l.b16 %v1285
      %v2299 = vunpack.c.h.b16 %v1285
      %v2300 = vunpack.c.l.b16 %v1286
      %v2301 = vunpack.c.l.b16 %v1287
      %v2302 = vunpack.c.h.b16 %v1287
      %v2303 = vunpack.c.l.b16 %v1288
      %v2304 = vunpack.c.l.b16 %v1289
      %v2305 = vunpack.c.h.b16 %v1289
      %v2306 = vunpack.c.l.b16 %v1290
      %v2307 = vunpack.c.l.b16 %v1291
      %v2308 = vunpack.c.h.b16 %v1291
      %v2309 = vunpack.c.l.b16 %v1292
      %v2310 = vunpack.c.l.b16 %v1293
      %v2311 = vunpack.c.h.b16 %v1293
      %v2312 = vunpack.c.l.b16 %v1294
      %v2313 = vunpack.c.l.b16 %v1295
      %v2314 = vunpack.c.h.b16 %v1295
      %v2315 = vunpack.c.l.b16 %v1296
      %v2316 = vunpack.c.l.b16 %v1297
      %v2317 = vunpack.c.h.b16 %v1297
      %v2318 = vunpack.c.l.b16 %v1298
      %v2319 = vunpack.c.l.b16 %v1299
      %v2320 = vunpack.c.h.b16 %v1299
      %v2321 = vunpack.c.l.b16 %v1300
      %v2322 = vunpack.c.l.b16 %v1301
      %v2323 = vunpack.c.h.b16 %v1301
      %v2324 = vunpack.c.l.b16 %v1302
      %v2325 = vunpack.c.l.b16 %v1303
      %v2326 = vunpack.c.h.b16 %v1303
      %v2327 = vunpack.c.l.b16 %v1304
      %v2328 = vunpack.c.l.b16 %v1305
      %v2329 = vunpack.c.h.b16 %v1305
      %v2330 = vunpack.c.l.b16 %v1306
      %v2331 = vunpack.c.l.b16 %v1307
      %v2332 = vunpack.c.h.b16 %v1307
      %v2333 = vunpack.c.l.b16 %v1308
      %v2334 = vunpack.c.l.b16 %v1309
      %v2335 = vunpack.c.h.b16 %v1309
      %v2336 = vunpack.c.l.b16 %v1310
      %v2337 = vunpack.c.l.b16 %v1311
      %v2338 = vunpack.c.h.b16 %v1311
      %v2339 = vunpack.c.l.b16 %v1312
      %v2340 = vunpack.c.l.b16 %v1313
      %v2341 = vunpack.c.h.b16 %v1313
      %v2342 = vunpack.c.l.b16 %v1314
      %v2343 = vunpack.c.l.b16 %v1315
      %v2344 = vunpack.c.h.b16 %v1315
      %v2345 = vunpack.c.l.b16 %v1316
      %v2346 = vunpack.c.l.b16 %v1317
      %v2347 = vunpack.c.h.b16 %v1317
      %v2348 = vunpack.c.l.b16 %v1318
      %v2349 = vunpack.c.l.b16 %v1319
      %v2350 = vunpack.c.h.b16 %v1319
      %v2351 = vunpack.c.l.b16 %v1320
      %v2352 = vunpack.c.l.b16 %v1321
      %v2353 = vunpack.c.h.b16 %v1321
      %v2354 = vunpack.c.l.b16 %v1322
      %v2355 = vunpack.c.l.b16 %v1323
      %v2356 = vunpack.c.h.b16 %v1323
      %v2357 = vunpack.c.l.b16 %v1324
      %v2358 = vunpack.c.l.b16 %v1325
      %v2359 = vunpack.c.h.b16 %v1325
      %v2360 = vunpack.c.l.b16 %v1326
      %v2361 = vunpack.c.l.b16 %v1327
      %v2362 = vunpack.c.h.b16 %v1327
      %v2363 = vunpack.c.l.b16 %v1328
      %v2364 = vunpack.c.l.b16 %v1329
      %v2365 = vunpack.c.h.b16 %v1329
      %v2366 = vunpack.c.l.b16 %v1330
      %v2367 = vunpack.c.l.b16 %v1331
      %v2368 = vunpack.c.h.b16 %v1331
      %v2369 = vunpack.c.l.b16 %v1332
      %v2370 = vunpack.c.l.b16 %v1333
      %v2371 = vunpack.c.h.b16 %v1333
      %v2372 = vunpack.c.l.b16 %v1334
      %v2373 = vunpack.c.l.b16 %v1335
      %v2374 = vunpack.c.h.b16 %v1335
      %v2375 = vunpack.c.l.b16 %v1336
      %v2376 = vunpack.c.l.b16 %v1337
      %v2377 = vunpack.c.h.b16 %v1337
      %v2378 = vunpack.c.l.b16 %v1338
      %v2379 = vunpack.c.l.b16 %v1339
      %v2380 = vunpack.c.h.b16 %v1339
      %v2381 = vunpack.c.l.b16 %v1340
      %v2382 = vunpack.c.l.b16 %v1341
      %v2383 = vunpack.c.h.b16 %v1341
      %v2384 = vunpack.c.l.b16 %v1342
      %v2385 = vunpack.c.l.b16 %v1343
      %v2386 = vunpack.c.h.b16 %v1343
      %v2387 = vunpack.c.l.b16 %v1344
      %v2388 = vunpack.c.l.b16 %v1345
      %v2389 = vunpack.c.h.b16 %v1345
      %v2390 = vunpack.c.l.b16 %v1346
      %v2391 = vpack.c.b16 %v2298, %v2295
      %v2392 = vpack.c.b16 %v2299, %v2296
      %v2393 = vpack.c.b16 %v2300, %v2297
      %v2394 = vpack.c.b16 %v2304, %v2301
      %v2395 = vpack.c.b16 %v2305, %v2302
      %v2396 = vpack.c.b16 %v2306, %v2303
      %v2397 = vpack.c.b16 %v2310, %v2307
      %v2398 = vpack.c.b16 %v2311, %v2308
      %v2399 = vpack.c.b16 %v2312, %v2309
      %v2400 = vpack.c.b16 %v2316, %v2313
      %v2401 = vpack.c.b16 %v2317, %v2314
      %v2402 = vpack.c.b16 %v2318, %v2315
      %v2403 = vpack.c.b16 %v2322, %v2319
      %v2404 = vpack.c.b16 %v2323, %v2320
      %v2405 = vpack.c.b16 %v2324, %v2321
      %v2406 = vpack.c.b16 %v2328, %v2325
      %v2407 = vpack.c.b16 %v2329, %v2326
      %v2408 = vpack.c.b16 %v2330, %v2327
      %v2409 = vpack.c.b16 %v2334, %v2331
      %v2410 = vpack.c.b16 %v2335, %v2332
      %v2411 = vpack.c.b16 %v2336, %v2333
      %v2412 = vpack.c.b16 %v2340, %v2337
      %v2413 = vpack.c.b16 %v2341, %v2338
      %v2414 = vpack.c.b16 %v2342, %v2339
      %v2415 = vpack.c.b16 %v2346, %v2343
      %v2416 = vpack.c.b16 %v2347, %v2344
      %v2417 = vpack.c.b16 %v2348, %v2345
      %v2418 = vpack.c.b16 %v2352, %v2349
      %v2419 = vpack.c.b16 %v2353, %v2350
      %v2420 = vpack.c.b16 %v2354, %v2351
      %v2421 = vpack.c.b16 %v2358, %v2355
      %v2422 = vpack.c.b16 %v2359, %v2356
      %v2423 = vpack.c.b16 %v2360, %v2357
      %v2424 = vpack.c.b16 %v2364, %v2361
      %v2425 = vpack.c.b16 %v2365, %v2362
      %v2426 = vpack.c.b16 %v2366, %v2363
      %v2427 = vpack.c.b16 %v2370, %v2367
      %v2428 = vpack.c.b16 %v2371, %v2368
      %v2429 = vpack.c.b16 %v2372, %v2369
      %v2430 = vpack.c.b16 %v2376, %v2373
      %v2431 = vpack.c.b16 %v2377, %v2374
      %v2432 = vpack.c.b16 %v2378, %v2375
      %v2433 = vpack.c.b16 %v2382, %v2379
      %v2434 = vpack.c.b16 %v2383, %v2380
      %v2435 = vpack.c.b16 %v2384, %v2381
      %v2436 = vpack.c.b16 %v2388, %v2385
      %v2437 = vpack.c.b16 %v2389, %v2386
      %v2438 = vpack.c.b16 %v2390, %v2387
      %v2535 = vunpack.c.l.b16 %v1347
      %v2536 = vunpack.c.l.b16 %v1348
      %v2537 = vunpack.c.l.b16 %v1349
      %v2538 = vunpack.c.l.b16 %v1350
      %v2539 = vunpack.c.l.b16 %v1351
      %v2540 = vunpack.c.l.b16 %v1352
      %v2541 = vunpack.c.l.b16 %v1353
      %v2542 = vunpack.c.l.b16 %v1354
      %v2543 = vunpack.c.l.b16 %v1355
      %v2544 = vunpack.c.l.b16 %v1356
      %v2545 = vunpack.c.l.b16 %v1357
      %v2546 = vunpack.c.l.b16 %v1358
      %v2547 = vunpack.c.l.b16 %v1359
      %v2548 = vunpack.c.l.b16 %v1360
      %v2549 = vunpack.c.l.b16 %v1361
      %v2550 = vunpack.c.l.b16 %v1362
      %v2551 = vunpack.c.l.b16 %v1363
      %v2552 = vunpack.c.l.b16 %v1364
      %v2553 = vunpack.c.l.b16 %v1365
      %v2554 = vunpack.c.l.b16 %v1366
      %v2555 = vunpack.c.l.b16 %v1367
      %v2556 = vunpack.c.l.b16 %v1368
      %v2557 = vunpack.c.l.b16 %v1369
      %v2558 = vunpack.c.l.b16 %v1370
      %v2559 = vunpack.c.l.b16 %v1371
      %v2560 = vunpack.c.l.b16 %v1372
      %v2561 = vunpack.c.l.b16 %v1373
      %v2562 = vunpack.c.l.b16 %v1374
      %v2563 = vunpack.c.l.b16 %v1375
      %v2564 = vunpack.c.l.b16 %v1376
      %v2565 = vunpack.c.l.b16 %v1377
      %v2566 = vunpack.c.l.b16 %v1378
      %v2567 = vunpack.c.l.b16 %v1379
      %v2568 = vunpack.c.l.b16 %v1380
      %v2569 = vunpack.c.l.b16 %v1381
      %v2570 = vunpack.c.l.b16 %v1382
      %v2571 = vunpack.c.l.b16 %v1383
      %v2572 = vunpack.c.l.b16 %v1384
      %v2573 = vunpack.c.l.b16 %v1385
      %v2574 = vunpack.c.l.b16 %v1386
      %v2575 = vunpack.c.l.b16 %v1387
      %v2576 = vunpack.c.l.b16 %v1388
      %v2577 = vunpack.c.l.b16 %v1389
      %v2578 = vunpack.c.l.b16 %v1390
      %v2579 = vunpack.c.l.b16 %v1391
      %v2580 = vunpack.c.l.b16 %v1392
      %v2581 = vunpack.c.l.b16 %v1393
      %v2582 = vunpack.c.l.b16 %v1394
      %v2583 = vpack.c.b16 %v2536, %v2535
      %v2584 = vpack.c.b16 %v2538, %v2537
      %v2585 = vpack.c.b16 %v2540, %v2539
      %v2586 = vpack.c.b16 %v2542, %v2541
      %v2587 = vpack.c.b16 %v2544, %v2543
      %v2588 = vpack.c.b16 %v2546, %v2545
      %v2589 = vpack.c.b16 %v2548, %v2547
      %v2590 = vpack.c.b16 %v2550, %v2549
      %v2591 = vpack.c.b16 %v2552, %v2551
      %v2592 = vpack.c.b16 %v2554, %v2553
      %v2593 = vpack.c.b16 %v2556, %v2555
      %v2594 = vpack.c.b16 %v2558, %v2557
      %v2595 = vpack.c.b16 %v2560, %v2559
      %v2596 = vpack.c.b16 %v2562, %v2561
      %v2597 = vpack.c.b16 %v2564, %v2563
      %v2598 = vpack.c.b16 %v2566, %v2565
      %v2599 = vpack.c.b16 %v2568, %v2567
      %v2600 = vpack.c.b16 %v2570, %v2569
      %v2601 = vpack.c.b16 %v2572, %v2571
      %v2602 = vpack.c.b16 %v2574, %v2573
      %v2603 = vpack.c.b16 %v2576, %v2575
      %v2604 = vpack.c.b16 %v2578, %v2577
      %v2605 = vpack.c.b16 %v2580, %v2579
      %v2606 = vpack.c.b16 %v2582, %v2581
      %2631 = vmatprep.subr.bf16.mxu0 0
      %2632 = vmatpush1.bf16.msra.mxu0 %v2590
      %2633 = vmatprep.subr.bf16.mxu0 0
      %2634 = vmatpush1.bf16.msra.mxu0 %v2589
      %2635 = vmatprep.subr.bf16.mxu0 0
      %2636 = vmatpush1.bf16.msra.mxu0 %v2588
      %2637 = vmatprep.subr.bf16.mxu0 0
      %2638 = vmatpush1.bf16.msra.mxu0 %v2587
      %2639 = vmatprep.subr.bf16.mxu0 0
      %2640 = vmatpush1.bf16.msra.mxu0 %v2586
      %2641 = vmatprep.subr.bf16.mxu0 0
      %2642 = vmatpush1.bf16.msra.mxu0 %v2585
      %2643 = vmatprep.subr.bf16.mxu0 0
      %2644 = vmatpush1.bf16.msra.mxu0 %v2584
      %2645 = vmatprep.subr.bf16.mxu0 0
      %2646 = vmatpush1.bf16.msra.mxu0 %v2583
      %2647 = vmatprep.subr.bf16.mxu0 0
      %2648 = vmatpush2.bf16.msra.mxu0 %v2598
      %2649 = vmatprep.subr.bf16.mxu0 0
      %2650 = vmatpush2.bf16.msra.mxu0 %v2597
      %2651 = vmatprep.subr.bf16.mxu0 0
      %2652 = vmatpush2.bf16.msra.mxu0 %v2596
      %2653 = vmatprep.subr.bf16.mxu0 0
      %2654 = vmatpush2.bf16.msra.mxu0 %v2595
      %2655 = vmatprep.subr.bf16.mxu0 0
      %2656 = vmatpush2.bf16.msra.mxu0 %v2594
      %2657 = vmatprep.subr.bf16.mxu0 0
      %2658 = vmatpush2.bf16.msra.mxu0 %v2593
      %2659 = vmatprep.subr.bf16.mxu0 0
      %2660 = vmatpush2.bf16.msra.mxu0 %v2592
      %2661 = vmatprep.subr.bf16.mxu0 0
      %2662 = vmatpush2.bf16.msra.mxu0 %v2591
      %2663 = vmatprep.mubr.bf16.mxu0 %v2392
      %2664 = vmatmul.mubr.bf16.gmra.mxu0 %v2391
      %v2665 = vpop.f32.mrf.mxu0
      %v2666 = vadd.f32 %v2105, %v2665
      %v2667 = vpop.f32.mrf.mxu0
      %v2668 = vpop.f32.mrf.mxu0
      %v2669 = vadd.f32 %v2108, %v2668
      %v2670 = vpop.f32.mrf.mxu0
      %2671 = vmatprep.mubr.bf16.mxu0 %v2395
      %2672 = vmatmul.mubr.bf16.gmra.mxu0 %v2394
      %v2673 = vpop.f32.mrf.mxu0
      %v2674 = vadd.f32 %v2113, %v2673
      %v2675 = vpop.f32.mrf.mxu0
      %v2676 = vpop.f32.mrf.mxu0
      %v2677 = vadd.f32 %v2116, %v2676
      %v2678 = vpop.f32.mrf.mxu0
      %2679 = vmatprep.mubr.bf16.mxu0 %v2398
      %2680 = vmatmul.mubr.bf16.gmra.mxu0 %v2397
      %v2681 = vpop.f32.mrf.mxu0
      %v2682 = vadd.f32 %v2121, %v2681
      %v2683 = vpop.f32.mrf.mxu0
      %v2684 = vpop.f32.mrf.mxu0
      %v2685 = vadd.f32 %v2124, %v2684
      %v2686 = vpop.f32.mrf.mxu0
      %2687 = vmatprep.mubr.bf16.mxu0 %v2401
      %2688 = vmatmul.mubr.bf16.gmra.mxu0 %v2400
      %v2689 = vpop.f32.mrf.mxu0
      %v2690 = vadd.f32 %v2129, %v2689
      %v2691 = vpop.f32.mrf.mxu0
      %v2692 = vpop.f32.mrf.mxu0
      %v2693 = vadd.f32 %v2132, %v2692
      %v2694 = vpop.f32.mrf.mxu0
      %2695 = vmatprep.mubr.bf16.mxu0 %v2404
      %2696 = vmatmul.mubr.bf16.gmra.mxu0 %v2403
      %v2697 = vpop.f32.mrf.mxu0
      %v2698 = vadd.f32 %v2137, %v2697
      %v2699 = vpop.f32.mrf.mxu0
      %v2700 = vpop.f32.mrf.mxu0
      %v2701 = vadd.f32 %v2140, %v2700
      %v2702 = vpop.f32.mrf.mxu0
      %2703 = vmatprep.mubr.bf16.mxu0 %v2407
      %2704 = vmatmul.mubr.bf16.gmra.mxu0 %v2406
      %v2705 = vpop.f32.mrf.mxu0
      %v2706 = vadd.f32 %v2145, %v2705
      %v2707 = vpop.f32.mrf.mxu0
      %v2708 = vpop.f32.mrf.mxu0
      %v2709 = vadd.f32 %v2148, %v2708
      %v2710 = vpop.f32.mrf.mxu0
      %2711 = vmatprep.mubr.bf16.mxu0 %v2410
      %2712 = vmatmul.mubr.bf16.gmra.mxu0 %v2409
      %v2713 = vpop.f32.mrf.mxu0
      %v2714 = vadd.f32 %v2153, %v2713
      %v2715 = vpop.f32.mrf.mxu0
      %v2716 = vpop.f32.mrf.mxu0
      %v2717 = vadd.f32 %v2156, %v2716
      %v2718 = vpop.f32.mrf.mxu0
      %2719 = vmatprep.mubr.bf16.mxu0 %v2413
      %2720 = vmatmul.mubr.bf16.gmra.mxu0 %v2412
      %v2721 = vpop.f32.mrf.mxu0
      %v2722 = vadd.f32 %v2161, %v2721
      %v2723 = vpop.f32.mrf.mxu0
      %v2724 = vpop.f32.mrf.mxu0
      %v2725 = vadd.f32 %v2164, %v2724
      %v2726 = vpop.f32.mrf.mxu0
      %2727 = vmatprep.mubr.bf16.mxu0 %v2416
      %2728 = vmatmul.mubr.bf16.gmra.mxu0 %v2415
      %v2729 = vpop.f32.mrf.mxu0
      %v2730 = vadd.f32 %v2169, %v2729
      %v2731 = vpop.f32.mrf.mxu0
      %v2732 = vpop.f32.mrf.mxu0
      %v2733 = vadd.f32 %v2172, %v2732
      %v2734 = vpop.f32.mrf.mxu0
      %2735 = vmatprep.mubr.bf16.mxu0 %v2419
      %2736 = vmatmul.mubr.bf16.gmra.mxu0 %v2418
      %v2737 = vpop.f32.mrf.mxu0
      %v2738 = vadd.f32 %v2177, %v2737
      %v2739 = vpop.f32.mrf.mxu0
      %v2740 = vpop.f32.mrf.mxu0
      %v2741 = vadd.f32 %v2180, %v2740
      %v2742 = vpop.f32.mrf.mxu0
      %2743 = vmatprep.mubr.bf16.mxu0 %v2422
      %2744 = vmatmul.mubr.bf16.gmra.mxu0 %v2421
      %v2745 = vpop.f32.mrf.mxu0
      %v2746 = vadd.f32 %v2185, %v2745
      %v2747 = vpop.f32.mrf.mxu0
      %v2748 = vpop.f32.mrf.mxu0
      %v2749 = vadd.f32 %v2188, %v2748
      %v2750 = vpop.f32.mrf.mxu0
      %2751 = vmatprep.mubr.bf16.mxu0 %v2425
      %2752 = vmatmul.mubr.bf16.gmra.mxu0 %v2424
      %v2753 = vpop.f32.mrf.mxu0
      %v2754 = vadd.f32 %v2193, %v2753
      %v2755 = vpop.f32.mrf.mxu0
      %v2756 = vpop.f32.mrf.mxu0
      %v2757 = vadd.f32 %v2196, %v2756
      %v2758 = vpop.f32.mrf.mxu0
      %2759 = vmatprep.mubr.bf16.mxu0 %v2428
      %2760 = vmatmul.mubr.bf16.gmra.mxu0 %v2427
      %v2761 = vpop.f32.mrf.mxu0
      %v2762 = vadd.f32 %v2201, %v2761
      %v2763 = vpop.f32.mrf.mxu0
      %v2764 = vpop.f32.mrf.mxu0
      %v2765 = vadd.f32 %v2204, %v2764
      %v2766 = vpop.f32.mrf.mxu0
      %2767 = vmatprep.mubr.bf16.mxu0 %v2431
      %2768 = vmatmul.mubr.bf16.gmra.mxu0 %v2430
      %v2769 = vpop.f32.mrf.mxu0
      %v2770 = vadd.f32 %v2209, %v2769
      %v2771 = vpop.f32.mrf.mxu0
      %v2772 = vpop.f32.mrf.mxu0
      %v2773 = vadd.f32 %v2212, %v2772
      %v2774 = vpop.f32.mrf.mxu0
      %2775 = vmatprep.mubr.bf16.mxu0 %v2434
      %2776 = vmatmul.mubr.bf16.gmra.mxu0 %v2433
      %v2777 = vpop.f32.mrf.mxu0
      %v2778 = vadd.f32 %v2217, %v2777
      %v2779 = vpop.f32.mrf.mxu0
      %v2780 = vpop.f32.mrf.mxu0
      %v2781 = vadd.f32 %v2220, %v2780
      %v2782 = vpop.f32.mrf.mxu0
      %2783 = vmatprep.mubr.bf16.mxu0 %v2437
      %2784 = vmatmul.mubr.bf16.gmra.mxu0 %v2436
      %v2785 = vpop.f32.mrf.mxu0
      %v2786 = vadd.f32 %v2225, %v2785
      %v2787 = vpop.f32.mrf.mxu0
      %v2788 = vpop.f32.mrf.mxu0
      %v2789 = vadd.f32 %v2228, %v2788
      %v2790 = vpop.f32.mrf.mxu0
      %2791 = vdwg.mxu0
      %2792 = vmatprep.subr.bf16.mxu0 0
      %2793 = vmatpush1.bf16.msra.mxu0 %v2606
      %2794 = vmatprep.subr.bf16.mxu0 0
      %2795 = vmatpush1.bf16.msra.mxu0 %v2605
      %2796 = vmatprep.subr.bf16.mxu0 0
      %2797 = vmatpush1.bf16.msra.mxu0 %v2604
      %2798 = vmatprep.subr.bf16.mxu0 0
      %2799 = vmatpush1.bf16.msra.mxu0 %v2603
      %2800 = vmatprep.subr.bf16.mxu0 0
      %2801 = vmatpush1.bf16.msra.mxu0 %v2602
      %2802 = vmatprep.subr.bf16.mxu0 0
      %2803 = vmatpush1.bf16.msra.mxu0 %v2601
      %2804 = vmatprep.subr.bf16.mxu0 0
      %2805 = vmatpush1.bf16.msra.mxu0 %v2600
      %2806 = vmatprep.subr.bf16.mxu0 0
      %2807 = vmatpush1.bf16.msra.mxu0 %v2599
      %2808 = vmatprep.subr.bf16.mxu0 0
      %2809 = vmatpush2.bf16.msra.mxu0 0
      %2810 = vmatprep.subr.bf16.mxu0 0
      %2811 = vmatpush2.bf16.msra.mxu0 0
      %2812 = vmatprep.subr.bf16.mxu0 0
      %2813 = vmatpush2.bf16.msra.mxu0 0
      %2814 = vmatprep.subr.bf16.mxu0 0
      %2815 = vmatpush2.bf16.msra.mxu0 0
      %2816 = vmatprep.subr.bf16.mxu0 0
      %2817 = vmatpush2.bf16.msra.mxu0 0
      %2818 = vmatprep.subr.bf16.mxu0 0
      %2819 = vmatpush2.bf16.msra.mxu0 0
      %2820 = vmatprep.subr.bf16.mxu0 0
      %2821 = vmatpush2.bf16.msra.mxu0 0
      %2822 = vmatprep.subr.bf16.mxu0 0
      %2823 = vmatpush2.bf16.msra.mxu0 0
      %2824 = vmatprep.mubr.bf16.mxu0 0
      %2825 = vmatmul.mubr.bf16.gmra.mxu0 %v2393
      %v2826 = vpop.f32.mrf.mxu0
      %v2827 = vadd.f32 %v2666, %v2826
      %v2828 = vpop.f32.mrf.mxu0
      %v2829 = vpop.f32.mrf.mxu0
      %v2830 = vadd.f32 %v2669, %v2829
      %v2831 = vpop.f32.mrf.mxu0
      %2832 = vmatprep.mubr.bf16.mxu0 0
      %2833 = vmatmul.mubr.bf16.gmra.mxu0 %v2396
      %v2834 = vpop.f32.mrf.mxu0
      %v2835 = vadd.f32 %v2674, %v2834
      %v2836 = vpop.f32.mrf.mxu0
      %v2837 = vpop.f32.mrf.mxu0
      %v2838 = vadd.f32 %v2677, %v2837
      %v2839 = vpop.f32.mrf.mxu0
      %2840 = vmatprep.mubr.bf16.mxu0 0
      %2841 = vmatmul.mubr.bf16.gmra.mxu0 %v2399
      %v2842 = vpop.f32.mrf.mxu0
      %v2843 = vadd.f32 %v2682, %v2842
      %v2844 = vpop.f32.mrf.mxu0
      %v2845 = vpop.f32.mrf.mxu0
      %v2846 = vadd.f32 %v2685, %v2845
      %v2847 = vpop.f32.mrf.mxu0
      %2848 = vmatprep.mubr.bf16.mxu0 0
      %2849 = vmatmul.mubr.bf16.gmra.mxu0 %v2402
      %v2850 = vpop.f32.mrf.mxu0
      %v2851 = vadd.f32 %v2690, %v2850
      %v2852 = vpop.f32.mrf.mxu0
      %v2853 = vpop.f32.mrf.mxu0
      %v2854 = vadd.f32 %v2693, %v2853
      %v2855 = vpop.f32.mrf.mxu0
      %2856 = vmatprep.mubr.bf16.mxu0 0
      %2857 = vmatmul.mubr.bf16.gmra.mxu0 %v2405
      %v2858 = vpop.f32.mrf.mxu0
      %v2859 = vadd.f32 %v2698, %v2858
      %v2860 = vpop.f32.mrf.mxu0
      %v2861 = vpop.f32.mrf.mxu0
      %v2862 = vadd.f32 %v2701, %v2861
      %v2863 = vpop.f32.mrf.mxu0
      %2864 = vmatprep.mubr.bf16.mxu0 0
      %2865 = vmatmul.mubr.bf16.gmra.mxu0 %v2408
      %v2866 = vpop.f32.mrf.mxu0
      %v2867 = vadd.f32 %v2706, %v2866
      %v2868 = vpop.f32.mrf.mxu0
      %v2869 = vpop.f32.mrf.mxu0
      %v2870 = vadd.f32 %v2709, %v2869
      %v2871 = vpop.f32.mrf.mxu0
      %2872 = vmatprep.mubr.bf16.mxu0 0
      %2873 = vmatmul.mubr.bf16.gmra.mxu0 %v2411
      %v2874 = vpop.f32.mrf.mxu0
      %v2875 = vadd.f32 %v2714, %v2874
      %v2876 = vpop.f32.mrf.mxu0
      %v2877 = vpop.f32.mrf.mxu0
      %v2878 = vadd.f32 %v2717, %v2877
      %v2879 = vpop.f32.mrf.mxu0
      %2880 = vmatprep.mubr.bf16.mxu0 0
      %2881 = vmatmul.mubr.bf16.gmra.mxu0 %v2414
      %v2882 = vpop.f32.mrf.mxu0
      %v2883 = vadd.f32 %v2722, %v2882
      %v2884 = vpop.f32.mrf.mxu0
      %v2885 = vpop.f32.mrf.mxu0
      %v2886 = vadd.f32 %v2725, %v2885
      %v2887 = vpop.f32.mrf.mxu0
      %2888 = vmatprep.mubr.bf16.mxu0 0
      %2889 = vmatmul.mubr.bf16.gmra.mxu0 %v2417
      %v2890 = vpop.f32.mrf.mxu0
      %v2891 = vadd.f32 %v2730, %v2890
      %v2892 = vpop.f32.mrf.mxu0
      %v2893 = vpop.f32.mrf.mxu0
      %v2894 = vadd.f32 %v2733, %v2893
      %v2895 = vpop.f32.mrf.mxu0
      %2896 = vmatprep.mubr.bf16.mxu0 0
      %2897 = vmatmul.mubr.bf16.gmra.mxu0 %v2420
      %v2898 = vpop.f32.mrf.mxu0
      %v2899 = vadd.f32 %v2738, %v2898
      %v2900 = vpop.f32.mrf.mxu0
      %v2901 = vpop.f32.mrf.mxu0
      %v2902 = vadd.f32 %v2741, %v2901
      %v2903 = vpop.f32.mrf.mxu0
      %2904 = vmatprep.mubr.bf16.mxu0 0
      %2905 = vmatmul.mubr.bf16.gmra.mxu0 %v2423
      %v2906 = vpop.f32.mrf.mxu0
      %v2907 = vadd.f32 %v2746, %v2906
      %v2908 = vpop.f32.mrf.mxu0
      %v2909 = vpop.f32.mrf.mxu0
      %v2910 = vadd.f32 %v2749, %v2909
      %v2911 = vpop.f32.mrf.mxu0
      %2912 = vmatprep.mubr.bf16.mxu0 0
      %2913 = vmatmul.mubr.bf16.gmra.mxu0 %v2426
      %v2914 = vpop.f32.mrf.mxu0
      %v2915 = vadd.f32 %v2754, %v2914
      %v2916 = vpop.f32.mrf.mxu0
      %v2917 = vpop.f32.mrf.mxu0
      %v2918 = vadd.f32 %v2757, %v2917
      %v2919 = vpop.f32.mrf.mxu0
      %2920 = vmatprep.mubr.bf16.mxu0 0
      %2921 = vmatmul.mubr.bf16.gmra.mxu0 %v2429
      %v2922 = vpop.f32.mrf.mxu0
      %v2923 = vadd.f32 %v2762, %v2922
      %v2924 = vpop.f32.mrf.mxu0
      %v2925 = vpop.f32.mrf.mxu0
      %v2926 = vadd.f32 %v2765, %v2925
      %v2927 = vpop.f32.mrf.mxu0
      %2928 = vmatprep.mubr.bf16.mxu0 0
      %2929 = vmatmul.mubr.bf16.gmra.mxu0 %v2432
      %v2930 = vpop.f32.mrf.mxu0
      %v2931 = vadd.f32 %v2770, %v2930
      %v2932 = vpop.f32.mrf.mxu0
      %v2933 = vpop.f32.mrf.mxu0
      %v2934 = vadd.f32 %v2773, %v2933
      %v2935 = vpop.f32.mrf.mxu0
      %2936 = vmatprep.mubr.bf16.mxu0 0
      %2937 = vmatmul.mubr.bf16.gmra.mxu0 %v2435
      %v2938 = vpop.f32.mrf.mxu0
      %v2939 = vadd.f32 %v2778, %v2938
      %v2940 = vpop.f32.mrf.mxu0
      %v2941 = vpop.f32.mrf.mxu0
      %v2942 = vadd.f32 %v2781, %v2941
      %v2943 = vpop.f32.mrf.mxu0
      %2944 = vmatprep.mubr.bf16.mxu0 0
      %2945 = vmatmul.mubr.bf16.gmra.mxu0 %v2438
      %v2946 = vpop.f32.mrf.mxu0
      %v2947 = vadd.f32 %v2786, %v2946
      %v2948 = vpop.f32.mrf.mxu0
      %v2949 = vpop.f32.mrf.mxu0
      %v2950 = vadd.f32 %v2789, %v2949
      %v2951 = vpop.f32.mrf.mxu0
      %2952 = vdwg.mxu0
      %s2953 = scalar_lea.vmem [#allocation2], 48
      %v2954 = vld [vmem:[%s2953] sm:$0xff]
      %v2955 = vld [vmem:[%s2953 + $0x8] sm:$0xf]
      %v2956 = vld [vmem:[%s2953 + $0xc] sm:$0xff]
      %v2957 = vld [vmem:[%s2953 + $0x14] sm:$0xf]
      %v2958 = vld [vmem:[%s2953 + $0x18] sm:$0xff]
      %v2959 = vld [vmem:[%s2953 + $0x20] sm:$0xf]
      %v2960 = vld [vmem:[%s2953 + $0x24] sm:$0xff]
      %v2961 = vld [vmem:[%s2953 + $0x2c] sm:$0xf]
      %v2962 = vld [vmem:[%s2953 + $0x30] sm:$0xff]
      %v2963 = vld [vmem:[%s2953 + $0x38] sm:$0xf]
      %v2964 = vld [vmem:[%s2953 + $0x3c] sm:$0xff]
      %v2965 = vld [vmem:[%s2953 + $0x44] sm:$0xf]
      %v2966 = vld [vmem:[%s2953 + $0x48] sm:$0xff]
      %v2967 = vld [vmem:[%s2953 + $0x50] sm:$0xf]
      %v2968 = vld [vmem:[%s2953 + $0x54] sm:$0xff]
      %v2969 = vld [vmem:[%s2953 + $0x5c] sm:$0xf]
      %v2970 = vld [vmem:[%s2953 + $0x60] sm:$0xff]
      %v2971 = vld [vmem:[%s2953 + $0x68] sm:$0xf]
      %v2972 = vld [vmem:[%s2953 + $0x6c] sm:$0xff]
      %v2973 = vld [vmem:[%s2953 + $0x74] sm:$0xf]
      %v2974 = vld [vmem:[%s2953 + $0x78] sm:$0xff]
      %v2975 = vld [vmem:[%s2953 + $0x80] sm:$0xf]
      %v2976 = vld [vmem:[%s2953 + $0x84] sm:$0xff]
      %v2977 = vld [vmem:[%s2953 + $0x8c] sm:$0xf]
      %v2978 = vld [vmem:[%s2953 + $0x90] sm:$0xff]
      %v2979 = vld [vmem:[%s2953 + $0x98] sm:$0xf]
      %v2980 = vld [vmem:[%s2953 + $0x9c] sm:$0xff]
      %v2981 = vld [vmem:[%s2953 + $0xa4] sm:$0xf]
      %v2982 = vld [vmem:[%s2953 + $0xa8] sm:$0xff]
      %v2983 = vld [vmem:[%s2953 + $0xb0] sm:$0xf]
      %v2984 = vld [vmem:[%s2953 + $0xb4] sm:$0xff]
      %v2985 = vld [vmem:[%s2953 + $0xbc] sm:$0xf]
      %v2986 = vld [vmem:[%s2953 + $0xc0] sm:$0xff]
      %v2987 = vld [vmem:[%s2953 + $0xc8] sm:$0xf]
      %v2988 = vld [vmem:[%s2953 + $0xcc] sm:$0xff]
      %v2989 = vld [vmem:[%s2953 + $0xd4] sm:$0xf]
      %v2990 = vld [vmem:[%s2953 + $0xd8] sm:$0xff]
      %v2991 = vld [vmem:[%s2953 + $0xe0] sm:$0xf]
      %v2992 = vld [vmem:[%s2953 + $0xe4] sm:$0xff]
      %v2993 = vld [vmem:[%s2953 + $0xec] sm:$0xf]
      %v2994 = vld [vmem:[%s2953 + $0xf0] sm:$0xff]
      %v2995 = vld [vmem:[%s2953 + $0xf8] sm:$0xf]
      %v2996 = vld [vmem:[%s2953 + $0xfc] sm:$0xff]
      %v2997 = vld [vmem:[%s2953 + $0x104] sm:$0xf]
      %v2998 = vld [vmem:[%s2953 + $0x108] sm:$0xff]
      %v2999 = vld [vmem:[%s2953 + $0x110] sm:$0xf]
      %v3000 = vld [vmem:[%s2953 + $0x114] sm:$0xff]
      %v3001 = vld [vmem:[%s2953 + $0x11c] sm:$0xf]
      %v3002 = vld [vmem:[%s2953 + $0x120] sm:$0xff]
      %v3003 = vld [vmem:[%s2953 + $0x128] sm:$0xf]
      %v3004 = vld [vmem:[%s2953 + $0x12c] sm:$0xff]
      %v3005 = vld [vmem:[%s2953 + $0x134] sm:$0xf]
      %v3006 = vld [vmem:[%s2953 + $0x138] sm:$0xff]
      %v3007 = vld [vmem:[%s2953 + $0x140] sm:$0xf]
      %v3008 = vld [vmem:[%s2953 + $0x144] sm:$0xff]
      %v3009 = vld [vmem:[%s2953 + $0x14c] sm:$0xf]
      %v3010 = vld [vmem:[%s2953 + $0x150] sm:$0xff]
      %v3011 = vld [vmem:[%s2953 + $0x158] sm:$0xf]
      %v3012 = vld [vmem:[%s2953 + $0x15c] sm:$0xff]
      %v3013 = vld [vmem:[%s2953 + $0x164] sm:$0xf]
      %v3014 = vld [vmem:[%s2953 + $0x168] sm:$0xff]
      %v3015 = vld [vmem:[%s2953 + $0x170] sm:$0xf]
      %v3016 = vld [vmem:[%s2953 + $0x174] sm:$0xff]
      %v3017 = vld [vmem:[%s2953 + $0x17c] sm:$0xf]
      %s3018 = scalar_lea.vmem %s2, 384
      %v3019 = vld [vmem:[%s3018] sm:$0xf]
      %v3020 = vld [vmem:[%s3018 + $0x4] sm:$0xf]
      %v3021 = vld [vmem:[%s3018 + $0x8] sm:$0xf]
      %v3022 = vld [vmem:[%s3018 + $0xc] sm:$0xf]
      %v3023 = vld [vmem:[%s3018 + $0x10] sm:$0xf]
      %v3024 = vld [vmem:[%s3018 + $0x14] sm:$0xf]
      %v3025 = vld [vmem:[%s3018 + $0x18] sm:$0xf]
      %v3026 = vld [vmem:[%s3018 + $0x1c] sm:$0xf]
      %v3027 = vld [vmem:[%s3018 + $0x20] sm:$0xf]
      %v3028 = vld [vmem:[%s3018 + $0x24] sm:$0xf]
      %v3029 = vld [vmem:[%s3018 + $0x28] sm:$0xf]
      %v3030 = vld [vmem:[%s3018 + $0x2c] sm:$0xf]
      %v3031 = vld [vmem:[%s3018 + $0x30] sm:$0xf]
      %v3032 = vld [vmem:[%s3018 + $0x34] sm:$0xf]
      %v3033 = vld [vmem:[%s3018 + $0x38] sm:$0xf]
      %v3034 = vld [vmem:[%s3018 + $0x3c] sm:$0xf]
      %v3035 = vld [vmem:[%s3018 + $0x40] sm:$0xf]
      %v3036 = vld [vmem:[%s3018 + $0x44] sm:$0xf]
      %v3037 = vld [vmem:[%s3018 + $0x48] sm:$0xf]
      %v3038 = vld [vmem:[%s3018 + $0x4c] sm:$0xf]
      %v3039 = vld [vmem:[%s3018 + $0x50] sm:$0xf]
      %v3040 = vld [vmem:[%s3018 + $0x54] sm:$0xf]
      %v3041 = vld [vmem:[%s3018 + $0x58] sm:$0xf]
      %v3042 = vld [vmem:[%s3018 + $0x5c] sm:$0xf]
      %v3043 = vld [vmem:[%s3018 + $0x60] sm:$0xf]
      %v3044 = vld [vmem:[%s3018 + $0x64] sm:$0xf]
      %v3045 = vld [vmem:[%s3018 + $0x68] sm:$0xf]
      %v3046 = vld [vmem:[%s3018 + $0x6c] sm:$0xf]
      %v3047 = vld [vmem:[%s3018 + $0x70] sm:$0xf]
      %v3048 = vld [vmem:[%s3018 + $0x74] sm:$0xf]
      %v3049 = vld [vmem:[%s3018 + $0x78] sm:$0xf]
      %v3050 = vld [vmem:[%s3018 + $0x7c] sm:$0xf]
      %v3051 = vld [vmem:[%s3018 + $0x80] sm:$0xf]
      %v3052 = vld [vmem:[%s3018 + $0x84] sm:$0xf]
      %v3053 = vld [vmem:[%s3018 + $0x88] sm:$0xf]
      %v3054 = vld [vmem:[%s3018 + $0x8c] sm:$0xf]
      %v3055 = vld [vmem:[%s3018 + $0x90] sm:$0xf]
      %v3056 = vld [vmem:[%s3018 + $0x94] sm:$0xf]
      %v3057 = vld [vmem:[%s3018 + $0x98] sm:$0xf]
      %v3058 = vld [vmem:[%s3018 + $0x9c] sm:$0xf]
      %v3059 = vld [vmem:[%s3018 + $0xa0] sm:$0xf]
      %v3060 = vld [vmem:[%s3018 + $0xa4] sm:$0xf]
      %v3061 = vld [vmem:[%s3018 + $0xa8] sm:$0xf]
      %v3062 = vld [vmem:[%s3018 + $0xac] sm:$0xf]
      %v3063 = vld [vmem:[%s3018 + $0xb0] sm:$0xf]
      %v3064 = vld [vmem:[%s3018 + $0xb4] sm:$0xf]
      %v3065 = vld [vmem:[%s3018 + $0xb8] sm:$0xf]
      %v3066 = vld [vmem:[%s3018 + $0xbc] sm:$0xf]
      %v3131 = vunpack.c.l.b16 %v2954
      %v3132 = vunpack.c.h.b16 %v2954
      %v3133 = vunpack.c.l.b16 %v2955
      %v3134 = vunpack.c.l.b16 %v2956
      %v3135 = vunpack.c.h.b16 %v2956
      %v3136 = vunpack.c.l.b16 %v2957
      %v3137 = vunpack.c.l.b16 %v2958
      %v3138 = vunpack.c.h.b16 %v2958
      %v3139 = vunpack.c.l.b16 %v2959
      %v3140 = vunpack.c.l.b16 %v2960
      %v3141 = vunpack.c.h.b16 %v2960
      %v3142 = vunpack.c.l.b16 %v2961
      %v3143 = vunpack.c.l.b16 %v2962
      %v3144 = vunpack.c.h.b16 %v2962
      %v3145 = vunpack.c.l.b16 %v2963
      %v3146 = vunpack.c.l.b16 %v2964
      %v3147 = vunpack.c.h.b16 %v2964
      %v3148 = vunpack.c.l.b16 %v2965
      %v3149 = vunpack.c.l.b16 %v2966
      %v3150 = vunpack.c.h.b16 %v2966
      %v3151 = vunpack.c.l.b16 %v2967
      %v3152 = vunpack.c.l.b16 %v2968
      %v3153 = vunpack.c.h.b16 %v2968
      %v3154 = vunpack.c.l.b16 %v2969
      %v3155 = vunpack.c.l.b16 %v2970
      %v3156 = vunpack.c.h.b16 %v2970
      %v3157 = vunpack.c.l.b16 %v2971
      %v3158 = vunpack.c.l.b16 %v2972
      %v3159 = vunpack.c.h.b16 %v2972
      %v3160 = vunpack.c.l.b16 %v2973
      %v3161 = vunpack.c.l.b16 %v2974
      %v3162 = vunpack.c.h.b16 %v2974
      %v3163 = vunpack.c.l.b16 %v2975
      %v3164 = vunpack.c.l.b16 %v2976
      %v3165 = vunpack.c.h.b16 %v2976
      %v3166 = vunpack.c.l.b16 %v2977
      %v3167 = vunpack.c.l.b16 %v2978
      %v3168 = vunpack.c.h.b16 %v2978
      %v3169 = vunpack.c.l.b16 %v2979
      %v3170 = vunpack.c.l.b16 %v2980
      %v3171 = vunpack.c.h.b16 %v2980
      %v3172 = vunpack.c.l.b16 %v2981
      %v3173 = vunpack.c.l.b16 %v2982
      %v3174 = vunpack.c.h.b16 %v2982
      %v3175 = vunpack.c.l.b16 %v2983
      %v3176 = vunpack.c.l.b16 %v2984
      %v3177 = vunpack.c.h.b16 %v2984
      %v3178 = vunpack.c.l.b16 %v2985
      %v3179 = vunpack.c.l.b16 %v2986
      %v3180 = vunpack.c.h.b16 %v2986
      %v3181 = vunpack.c.l.b16 %v2987
      %v3182 = vunpack.c.l.b16 %v2988
      %v3183 = vunpack.c.h.b16 %v2988
      %v3184 = vunpack.c.l.b16 %v2989
      %v3185 = vunpack.c.l.b16 %v2990
      %v3186 = vunpack.c.h.b16 %v2990
      %v3187 = vunpack.c.l.b16 %v2991
      %v3188 = vunpack.c.l.b16 %v2992
      %v3189 = vunpack.c.h.b16 %v2992
      %v3190 = vunpack.c.l.b16 %v2993
      %v3191 = vunpack.c.l.b16 %v2994
      %v3192 = vunpack.c.h.b16 %v2994
      %v3193 = vunpack.c.l.b16 %v2995
      %v3194 = vunpack.c.l.b16 %v2996
      %v3195 = vunpack.c.h.b16 %v2996
      %v3196 = vunpack.c.l.b16 %v2997
      %v3197 = vunpack.c.l.b16 %v2998
      %v3198 = vunpack.c.h.b16 %v2998
      %v3199 = vunpack.c.l.b16 %v2999
      %v3200 = vunpack.c.l.b16 %v3000
      %v3201 = vunpack.c.h.b16 %v3000
      %v3202 = vunpack.c.l.b16 %v3001
      %v3203 = vunpack.c.l.b16 %v3002
      %v3204 = vunpack.c.h.b16 %v3002
      %v3205 = vunpack.c.l.b16 %v3003
      %v3206 = vunpack.c.l.b16 %v3004
      %v3207 = vunpack.c.h.b16 %v3004
      %v3208 = vunpack.c.l.b16 %v3005
      %v3209 = vunpack.c.l.b16 %v3006
      %v3210 = vunpack.c.h.b16 %v3006
      %v3211 = vunpack.c.l.b16 %v3007
      %v3212 = vunpack.c.l.b16 %v3008
      %v3213 = vunpack.c.h.b16 %v3008
      %v3214 = vunpack.c.l.b16 %v3009
      %v3215 = vunpack.c.l.b16 %v3010
      %v3216 = vunpack.c.h.b16 %v3010
      %v3217 = vunpack.c.l.b16 %v3011
      %v3218 = vunpack.c.l.b16 %v3012
      %v3219 = vunpack.c.h.b16 %v3012
      %v3220 = vunpack.c.l.b16 %v3013
      %v3221 = vunpack.c.l.b16 %v3014
      %v3222 = vunpack.c.h.b16 %v3014
      %v3223 = vunpack.c.l.b16 %v3015
      %v3224 = vunpack.c.l.b16 %v3016
      %v3225 = vunpack.c.h.b16 %v3016
      %v3226 = vunpack.c.l.b16 %v3017
      %v3227 = vpack.c.b16 %v3134, %v3131
      %v3228 = vpack.c.b16 %v3135, %v3132
      %v3229 = vpack.c.b16 %v3136, %v3133
      %v3230 = vpack.c.b16 %v3140, %v3137
      %v3231 = vpack.c.b16 %v3141, %v3138
      %v3232 = vpack.c.b16 %v3142, %v3139
      %v3233 = vpack.c.b16 %v3146, %v3143
      %v3234 = vpack.c.b16 %v3147, %v3144
      %v3235 = vpack.c.b16 %v3148, %v3145
      %v3236 = vpack.c.b16 %v3152, %v3149
      %v3237 = vpack.c.b16 %v3153, %v3150
      %v3238 = vpack.c.b16 %v3154, %v3151
      %v3239 = vpack.c.b16 %v3158, %v3155
      %v3240 = vpack.c.b16 %v3159, %v3156
      %v3241 = vpack.c.b16 %v3160, %v3157
      %v3242 = vpack.c.b16 %v3164, %v3161
      %v3243 = vpack.c.b16 %v3165, %v3162
      %v3244 = vpack.c.b16 %v3166, %v3163
      %v3245 = vpack.c.b16 %v3170, %v3167
      %v3246 = vpack.c.b16 %v3171, %v3168
      %v3247 = vpack.c.b16 %v3172, %v3169
      %v3248 = vpack.c.b16 %v3176, %v3173
      %v3249 = vpack.c.b16 %v3177, %v3174
      %v3250 = vpack.c.b16 %v3178, %v3175
      %v3251 = vpack.c.b16 %v3182, %v3179
      %v3252 = vpack.c.b16 %v3183, %v3180
      %v3253 = vpack.c.b16 %v3184, %v3181
      %v3254 = vpack.c.b16 %v3188, %v3185
      %v3255 = vpack.c.b16 %v3189, %v3186
      %v3256 = vpack.c.b16 %v3190, %v3187
      %v3257 = vpack.c.b16 %v3194, %v3191
      %v3258 = vpack.c.b16 %v3195, %v3192
      %v3259 = vpack.c.b16 %v3196, %v3193
      %v3260 = vpack.c.b16 %v3200, %v3197
      %v3261 = vpack.c.b16 %v3201, %v3198
      %v3262 = vpack.c.b16 %v3202, %v3199
      %v3263 = vpack.c.b16 %v3206, %v3203
      %v3264 = vpack.c.b16 %v3207, %v3204
      %v3265 = vpack.c.b16 %v3208, %v3205
      %v3266 = vpack.c.b16 %v3212, %v3209
      %v3267 = vpack.c.b16 %v3213, %v3210
      %v3268 = vpack.c.b16 %v3214, %v3211
      %v3269 = vpack.c.b16 %v3218, %v3215
      %v3270 = vpack.c.b16 %v3219, %v3216
      %v3271 = vpack.c.b16 %v3220, %v3217
      %v3272 = vpack.c.b16 %v3224, %v3221
      %v3273 = vpack.c.b16 %v3225, %v3222
      %v3274 = vpack.c.b16 %v3226, %v3223
      %v3371 = vunpack.c.l.b16 %v3019
      %v3372 = vunpack.c.l.b16 %v3020
      %v3373 = vunpack.c.l.b16 %v3021
      %v3374 = vunpack.c.l.b16 %v3022
      %v3375 = vunpack.c.l.b16 %v3023
      %v3376 = vunpack.c.l.b16 %v3024
      %v3377 = vunpack.c.l.b16 %v3025
      %v3378 = vunpack.c.l.b16 %v3026
      %v3379 = vunpack.c.l.b16 %v3027
      %v3380 = vunpack.c.l.b16 %v3028
      %v3381 = vunpack.c.l.b16 %v3029
      %v3382 = vunpack.c.l.b16 %v3030
      %v3383 = vunpack.c.l.b16 %v3031
      %v3384 = vunpack.c.l.b16 %v3032
      %v3385 = vunpack.c.l.b16 %v3033
      %v3386 = vunpack.c.l.b16 %v3034
      %v3387 = vunpack.c.l.b16 %v3035
      %v3388 = vunpack.c.l.b16 %v3036
      %v3389 = vunpack.c.l.b16 %v3037
      %v3390 = vunpack.c.l.b16 %v3038
      %v3391 = vunpack.c.l.b16 %v3039
      %v3392 = vunpack.c.l.b16 %v3040
      %v3393 = vunpack.c.l.b16 %v3041
      %v3394 = vunpack.c.l.b16 %v3042
      %v3395 = vunpack.c.l.b16 %v3043
      %v3396 = vunpack.c.l.b16 %v3044
      %v3397 = vunpack.c.l.b16 %v3045
      %v3398 = vunpack.c.l.b16 %v3046
      %v3399 = vunpack.c.l.b16 %v3047
      %v3400 = vunpack.c.l.b16 %v3048
      %v3401 = vunpack.c.l.b16 %v3049
      %v3402 = vunpack.c.l.b16 %v3050
      %v3403 = vunpack.c.l.b16 %v3051
      %v3404 = vunpack.c.l.b16 %v3052
      %v3405 = vunpack.c.l.b16 %v3053
      %v3406 = vunpack.c.l.b16 %v3054
      %v3407 = vunpack.c.l.b16 %v3055
      %v3408 = vunpack.c.l.b16 %v3056
      %v3409 = vunpack.c.l.b16 %v3057
      %v3410 = vunpack.c.l.b16 %v3058
      %v3411 = vunpack.c.l.b16 %v3059
      %v3412 = vunpack.c.l.b16 %v3060
      %v3413 = vunpack.c.l.b16 %v3061
      %v3414 = vunpack.c.l.b16 %v3062
      %v3415 = vunpack.c.l.b16 %v3063
      %v3416 = vunpack.c.l.b16 %v3064
      %v3417 = vunpack.c.l.b16 %v3065
      %v3418 = vunpack.c.l.b16 %v3066
      %v3419 = vpack.c.b16 %v3372, %v3371
      %v3420 = vpack.c.b16 %v3374, %v3373
      %v3421 = vpack.c.b16 %v3376, %v3375
      %v3422 = vpack.c.b16 %v3378, %v3377
      %v3423 = vpack.c.b16 %v3380, %v3379
      %v3424 = vpack.c.b16 %v3382, %v3381
      %v3425 = vpack.c.b16 %v3384, %v3383
      %v3426 = vpack.c.b16 %v3386, %v3385
      %v3427 = vpack.c.b16 %v3388, %v3387
      %v3428 = vpack.c.b16 %v3390, %v3389
      %v3429 = vpack.c.b16 %v3392, %v3391
      %v3430 = vpack.c.b16 %v3394, %v3393
      %v3431 = vpack.c.b16 %v3396, %v3395
      %v3432 = vpack.c.b16 %v3398, %v3397
      %v3433 = vpack.c.b16 %v3400, %v3399
      %v3434 = vpack.c.b16 %v3402, %v3401
      %v3435 = vpack.c.b16 %v3404, %v3403
      %v3436 = vpack.c.b16 %v3406, %v3405
      %v3437 = vpack.c.b16 %v3408, %v3407
      %v3438 = vpack.c.b16 %v3410, %v3409
      %v3439 = vpack.c.b16 %v3412, %v3411
      %v3440 = vpack.c.b16 %v3414, %v3413
      %v3441 = vpack.c.b16 %v3416, %v3415
      %v3442 = vpack.c.b16 %v3418, %v3417
      %3467 = vmatprep.subr.bf16.mxu0 0
      %3468 = vmatpush1.bf16.msra.mxu0 %v3426
      %3469 = vmatprep.subr.bf16.mxu0 0
      %3470 = vmatpush1.bf16.msra.mxu0 %v3425
      %3471 = vmatprep.subr.bf16.mxu0 0
      %3472 = vmatpush1.bf16.msra.mxu0 %v3424
      %3473 = vmatprep.subr.bf16.mxu0 0
      %3474 = vmatpush1.bf16.msra.mxu0 %v3423
      %3475 = vmatprep.subr.bf16.mxu0 0
      %3476 = vmatpush1.bf16.msra.mxu0 %v3422
      %3477 = vmatprep.subr.bf16.mxu0 0
      %3478 = vmatpush1.bf16.msra.mxu0 %v3421
      %3479 = vmatprep.subr.bf16.mxu0 0
      %3480 = vmatpush1.bf16.msra.mxu0 %v3420
      %3481 = vmatprep.subr.bf16.mxu0 0
      %3482 = vmatpush1.bf16.msra.mxu0 %v3419
      %3483 = vmatprep.subr.bf16.mxu0 0
      %3484 = vmatpush2.bf16.msra.mxu0 %v3434
      %3485 = vmatprep.subr.bf16.mxu0 0
      %3486 = vmatpush2.bf16.msra.mxu0 %v3433
      %3487 = vmatprep.subr.bf16.mxu0 0
      %3488 = vmatpush2.bf16.msra.mxu0 %v3432
      %3489 = vmatprep.subr.bf16.mxu0 0
      %3490 = vmatpush2.bf16.msra.mxu0 %v3431
      %3491 = vmatprep.subr.bf16.mxu0 0
      %3492 = vmatpush2.bf16.msra.mxu0 %v3430
      %3493 = vmatprep.subr.bf16.mxu0 0
      %3494 = vmatpush2.bf16.msra.mxu0 %v3429
      %3495 = vmatprep.subr.bf16.mxu0 0
      %3496 = vmatpush2.bf16.msra.mxu0 %v3428
      %3497 = vmatprep.subr.bf16.mxu0 0
      %3498 = vmatpush2.bf16.msra.mxu0 %v3427
      %3499 = vmatprep.mubr.bf16.mxu0 %v3228
      %3500 = vmatmul.mubr.bf16.gmra.mxu0 %v3227
      %v3501 = vpop.f32.mrf.mxu0
      %v3502 = vadd.f32 0.0, %v3501
      %v3503 = vpop.f32.mrf.mxu0
      %v3504 = vpop.f32.mrf.mxu0
      %v3505 = vadd.f32 0.0, %v3504
      %v3506 = vpop.f32.mrf.mxu0
      %3507 = vmatprep.mubr.bf16.mxu0 %v3231
      %3508 = vmatmul.mubr.bf16.gmra.mxu0 %v3230
      %v3509 = vpop.f32.mrf.mxu0
      %v3510 = vadd.f32 0.0, %v3509
      %v3511 = vpop.f32.mrf.mxu0
      %v3512 = vpop.f32.mrf.mxu0
      %v3513 = vadd.f32 0.0, %v3512
      %v3514 = vpop.f32.mrf.mxu0
      %3515 = vmatprep.mubr.bf16.mxu0 %v3234
      %3516 = vmatmul.mubr.bf16.gmra.mxu0 %v3233
      %v3517 = vpop.f32.mrf.mxu0
      %v3518 = vadd.f32 0.0, %v3517
      %v3519 = vpop.f32.mrf.mxu0
      %v3520 = vpop.f32.mrf.mxu0
      %v3521 = vadd.f32 0.0, %v3520
      %v3522 = vpop.f32.mrf.mxu0
      %3523 = vmatprep.mubr.bf16.mxu0 %v3237
      %3524 = vmatmul.mubr.bf16.gmra.mxu0 %v3236
      %v3525 = vpop.f32.mrf.mxu0
      %v3526 = vadd.f32 0.0, %v3525
      %v3527 = vpop.f32.mrf.mxu0
      %v3528 = vpop.f32.mrf.mxu0
      %v3529 = vadd.f32 0.0, %v3528
      %v3530 = vpop.f32.mrf.mxu0
      %3531 = vmatprep.mubr.bf16.mxu0 %v3240
      %3532 = vmatmul.mubr.bf16.gmra.mxu0 %v3239
      %v3533 = vpop.f32.mrf.mxu0
      %v3534 = vadd.f32 0.0, %v3533
      %v3535 = vpop.f32.mrf.mxu0
      %v3536 = vpop.f32.mrf.mxu0
      %v3537 = vadd.f32 0.0, %v3536
      %v3538 = vpop.f32.mrf.mxu0
      %3539 = vmatprep.mubr.bf16.mxu0 %v3243
      %3540 = vmatmul.mubr.bf16.gmra.mxu0 %v3242
      %v3541 = vpop.f32.mrf.mxu0
      %v3542 = vadd.f32 0.0, %v3541
      %v3543 = vpop.f32.mrf.mxu0
      %v3544 = vpop.f32.mrf.mxu0
      %v3545 = vadd.f32 0.0, %v3544
      %v3546 = vpop.f32.mrf.mxu0
      %3547 = vmatprep.mubr.bf16.mxu0 %v3246
      %3548 = vmatmul.mubr.bf16.gmra.mxu0 %v3245
      %v3549 = vpop.f32.mrf.mxu0
      %v3550 = vadd.f32 0.0, %v3549
      %v3551 = vpop.f32.mrf.mxu0
      %v3552 = vpop.f32.mrf.mxu0
      %v3553 = vadd.f32 0.0, %v3552
      %v3554 = vpop.f32.mrf.mxu0
      %3555 = vmatprep.mubr.bf16.mxu0 %v3249
      %3556 = vmatmul.mubr.bf16.gmra.mxu0 %v3248
      %v3557 = vpop.f32.mrf.mxu0
      %v3558 = vadd.f32 0.0, %v3557
      %v3559 = vpop.f32.mrf.mxu0
      %v3560 = vpop.f32.mrf.mxu0
      %v3561 = vadd.f32 0.0, %v3560
      %v3562 = vpop.f32.mrf.mxu0
      %3563 = vmatprep.mubr.bf16.mxu0 %v3252
      %3564 = vmatmul.mubr.bf16.gmra.mxu0 %v3251
      %v3565 = vpop.f32.mrf.mxu0
      %v3566 = vadd.f32 0.0, %v3565
      %v3567 = vpop.f32.mrf.mxu0
      %v3568 = vpop.f32.mrf.mxu0
      %v3569 = vadd.f32 0.0, %v3568
      %v3570 = vpop.f32.mrf.mxu0
      %3571 = vmatprep.mubr.bf16.mxu0 %v3255
      %3572 = vmatmul.mubr.bf16.gmra.mxu0 %v3254
      %v3573 = vpop.f32.mrf.mxu0
      %v3574 = vadd.f32 0.0, %v3573
      %v3575 = vpop.f32.mrf.mxu0
      %v3576 = vpop.f32.mrf.mxu0
      %v3577 = vadd.f32 0.0, %v3576
      %v3578 = vpop.f32.mrf.mxu0
      %3579 = vmatprep.mubr.bf16.mxu0 %v3258
      %3580 = vmatmul.mubr.bf16.gmra.mxu0 %v3257
      %v3581 = vpop.f32.mrf.mxu0
      %v3582 = vadd.f32 0.0, %v3581
      %v3583 = vpop.f32.mrf.mxu0
      %v3584 = vpop.f32.mrf.mxu0
      %v3585 = vadd.f32 0.0, %v3584
      %v3586 = vpop.f32.mrf.mxu0
      %3587 = vmatprep.mubr.bf16.mxu0 %v3261
      %3588 = vmatmul.mubr.bf16.gmra.mxu0 %v3260
      %v3589 = vpop.f32.mrf.mxu0
      %v3590 = vadd.f32 0.0, %v3589
      %v3591 = vpop.f32.mrf.mxu0
      %v3592 = vpop.f32.mrf.mxu0
      %v3593 = vadd.f32 0.0, %v3592
      %v3594 = vpop.f32.mrf.mxu0
      %3595 = vmatprep.mubr.bf16.mxu0 %v3264
      %3596 = vmatmul.mubr.bf16.gmra.mxu0 %v3263
      %v3597 = vpop.f32.mrf.mxu0
      %v3598 = vadd.f32 0.0, %v3597
      %v3599 = vpop.f32.mrf.mxu0
      %v3600 = vpop.f32.mrf.mxu0
      %v3601 = vadd.f32 0.0, %v3600
      %v3602 = vpop.f32.mrf.mxu0
      %3603 = vmatprep.mubr.bf16.mxu0 %v3267
      %3604 = vmatmul.mubr.bf16.gmra.mxu0 %v3266
      %v3605 = vpop.f32.mrf.mxu0
      %v3606 = vadd.f32 0.0, %v3605
      %v3607 = vpop.f32.mrf.mxu0
      %v3608 = vpop.f32.mrf.mxu0
      %v3609 = vadd.f32 0.0, %v3608
      %v3610 = vpop.f32.mrf.mxu0
      %3611 = vmatprep.mubr.bf16.mxu0 %v3270
      %3612 = vmatmul.mubr.bf16.gmra.mxu0 %v3269
      %v3613 = vpop.f32.mrf.mxu0
      %v3614 = vadd.f32 0.0, %v3613
      %v3615 = vpop.f32.mrf.mxu0
      %v3616 = vpop.f32.mrf.mxu0
      %v3617 = vadd.f32 0.0, %v3616
      %v3618 = vpop.f32.mrf.mxu0
      %3619 = vmatprep.mubr.bf16.mxu0 %v3273
      %3620 = vmatmul.mubr.bf16.gmra.mxu0 %v3272
      %v3621 = vpop.f32.mrf.mxu0
      %v3622 = vadd.f32 0.0, %v3621
      %v3623 = vpop.f32.mrf.mxu0
      %v3624 = vpop.f32.mrf.mxu0
      %v3625 = vadd.f32 0.0, %v3624
      %v3626 = vpop.f32.mrf.mxu0
      %3627 = vdwg.mxu0
      %3628 = vmatprep.subr.bf16.mxu0 0
      %3629 = vmatpush1.bf16.msra.mxu0 %v3442
      %3630 = vmatprep.subr.bf16.mxu0 0
      %3631 = vmatpush1.bf16.msra.mxu0 %v3441
      %3632 = vmatprep.subr.bf16.mxu0 0
      %3633 = vmatpush1.bf16.msra.mxu0 %v3440
      %3634 = vmatprep.subr.bf16.mxu0 0
      %3635 = vmatpush1.bf16.msra.mxu0 %v3439
      %3636 = vmatprep.subr.bf16.mxu0 0
      %3637 = vmatpush1.bf16.msra.mxu0 %v3438
      %3638 = vmatprep.subr.bf16.mxu0 0
      %3639 = vmatpush1.bf16.msra.mxu0 %v3437
      %3640 = vmatprep.subr.bf16.mxu0 0
      %3641 = vmatpush1.bf16.msra.mxu0 %v3436
      %3642 = vmatprep.subr.bf16.mxu0 0
      %3643 = vmatpush1.bf16.msra.mxu0 %v3435
      %3644 = vmatprep.subr.bf16.mxu0 0
      %3645 = vmatpush2.bf16.msra.mxu0 0
      %3646 = vmatprep.subr.bf16.mxu0 0
      %3647 = vmatpush2.bf16.msra.mxu0 0
      %3648 = vmatprep.subr.bf16.mxu0 0
      %3649 = vmatpush2.bf16.msra.mxu0 0
      %3650 = vmatprep.subr.bf16.mxu0 0
      %3651 = vmatpush2.bf16.msra.mxu0 0
      %3652 = vmatprep.subr.bf16.mxu0 0
      %3653 = vmatpush2.bf16.msra.mxu0 0
      %3654 = vmatprep.subr.bf16.mxu0 0
      %3655 = vmatpush2.bf16.msra.mxu0 0
      %3656 = vmatprep.subr.bf16.mxu0 0
      %3657 = vmatpush2.bf16.msra.mxu0 0
      %3658 = vmatprep.subr.bf16.mxu0 0
      %3659 = vmatpush2.bf16.msra.mxu0 0
      %3660 = vmatprep.mubr.bf16.mxu0 0
      %3661 = vmatmul.mubr.bf16.gmra.mxu0 %v3229
      %v3662 = vpop.f32.mrf.mxu0
      %v3663 = vadd.f32 %v3502, %v3662
      %v3664 = vpop.f32.mrf.mxu0
      %v3665 = vpop.f32.mrf.mxu0
      %v3666 = vadd.f32 %v3505, %v3665
      %v3667 = vpop.f32.mrf.mxu0
      %3668 = vmatprep.mubr.bf16.mxu0 0
      %3669 = vmatmul.mubr.bf16.gmra.mxu0 %v3232
      %v3670 = vpop.f32.mrf.mxu0
      %v3671 = vadd.f32 %v3510, %v3670
      %v3672 = vpop.f32.mrf.mxu0
      %v3673 = vpop.f32.mrf.mxu0
      %v3674 = vadd.f32 %v3513, %v3673
      %v3675 = vpop.f32.mrf.mxu0
      %3676 = vmatprep.mubr.bf16.mxu0 0
      %3677 = vmatmul.mubr.bf16.gmra.mxu0 %v3235
      %v3678 = vpop.f32.mrf.mxu0
      %v3679 = vadd.f32 %v3518, %v3678
      %v3680 = vpop.f32.mrf.mxu0
      %v3681 = vpop.f32.mrf.mxu0
      %v3682 = vadd.f32 %v3521, %v3681
      %v3683 = vpop.f32.mrf.mxu0
      %3684 = vmatprep.mubr.bf16.mxu0 0
      %3685 = vmatmul.mubr.bf16.gmra.mxu0 %v3238
      %v3686 = vpop.f32.mrf.mxu0
      %v3687 = vadd.f32 %v3526, %v3686
      %v3688 = vpop.f32.mrf.mxu0
      %v3689 = vpop.f32.mrf.mxu0
      %v3690 = vadd.f32 %v3529, %v3689
      %v3691 = vpop.f32.mrf.mxu0
      %3692 = vmatprep.mubr.bf16.mxu0 0
      %3693 = vmatmul.mubr.bf16.gmra.mxu0 %v3241
      %v3694 = vpop.f32.mrf.mxu0
      %v3695 = vadd.f32 %v3534, %v3694
      %v3696 = vpop.f32.mrf.mxu0
      %v3697 = vpop.f32.mrf.mxu0
      %v3698 = vadd.f32 %v3537, %v3697
      %v3699 = vpop.f32.mrf.mxu0
      %3700 = vmatprep.mubr.bf16.mxu0 0
      %3701 = vmatmul.mubr.bf16.gmra.mxu0 %v3244
      %v3702 = vpop.f32.mrf.mxu0
      %v3703 = vadd.f32 %v3542, %v3702
      %v3704 = vpop.f32.mrf.mxu0
      %v3705 = vpop.f32.mrf.mxu0
      %v3706 = vadd.f32 %v3545, %v3705
      %v3707 = vpop.f32.mrf.mxu0
      %3708 = vmatprep.mubr.bf16.mxu0 0
      %3709 = vmatmul.mubr.bf16.gmra.mxu0 %v3247
      %v3710 = vpop.f32.mrf.mxu0
      %v3711 = vadd.f32 %v3550, %v3710
      %v3712 = vpop.f32.mrf.mxu0
      %v3713 = vpop.f32.mrf.mxu0
      %v3714 = vadd.f32 %v3553, %v3713
      %v3715 = vpop.f32.mrf.mxu0
      %3716 = vmatprep.mubr.bf16.mxu0 0
      %3717 = vmatmul.mubr.bf16.gmra.mxu0 %v3250
      %v3718 = vpop.f32.mrf.mxu0
      %v3719 = vadd.f32 %v3558, %v3718
      %v3720 = vpop.f32.mrf.mxu0
      %v3721 = vpop.f32.mrf.mxu0
      %v3722 = vadd.f32 %v3561, %v3721
      %v3723 = vpop.f32.mrf.mxu0
      %3724 = vmatprep.mubr.bf16.mxu0 0
      %3725 = vmatmul.mubr.bf16.gmra.mxu0 %v3253
      %v3726 = vpop.f32.mrf.mxu0
      %v3727 = vadd.f32 %v3566, %v3726
      %v3728 = vpop.f32.mrf.mxu0
      %v3729 = vpop.f32.mrf.mxu0
      %v3730 = vadd.f32 %v3569, %v3729
      %v3731 = vpop.f32.mrf.mxu0
      %3732 = vmatprep.mubr.bf16.mxu0 0
      %3733 = vmatmul.mubr.bf16.gmra.mxu0 %v3256
      %v3734 = vpop.f32.mrf.mxu0
      %v3735 = vadd.f32 %v3574, %v3734
      %v3736 = vpop.f32.mrf.mxu0
      %v3737 = vpop.f32.mrf.mxu0
      %v3738 = vadd.f32 %v3577, %v3737
      %v3739 = vpop.f32.mrf.mxu0
      %3740 = vmatprep.mubr.bf16.mxu0 0
      %3741 = vmatmul.mubr.bf16.gmra.mxu0 %v3259
      %v3742 = vpop.f32.mrf.mxu0
      %v3743 = vadd.f32 %v3582, %v3742
      %v3744 = vpop.f32.mrf.mxu0
      %v3745 = vpop.f32.mrf.mxu0
      %v3746 = vadd.f32 %v3585, %v3745
      %v3747 = vpop.f32.mrf.mxu0
      %3748 = vmatprep.mubr.bf16.mxu0 0
      %3749 = vmatmul.mubr.bf16.gmra.mxu0 %v3262
      %v3750 = vpop.f32.mrf.mxu0
      %v3751 = vadd.f32 %v3590, %v3750
      %v3752 = vpop.f32.mrf.mxu0
      %v3753 = vpop.f32.mrf.mxu0
      %v3754 = vadd.f32 %v3593, %v3753
      %v3755 = vpop.f32.mrf.mxu0
      %3756 = vmatprep.mubr.bf16.mxu0 0
      %3757 = vmatmul.mubr.bf16.gmra.mxu0 %v3265
      %v3758 = vpop.f32.mrf.mxu0
      %v3759 = vadd.f32 %v3598, %v3758
      %v3760 = vpop.f32.mrf.mxu0
      %v3761 = vpop.f32.mrf.mxu0
      %v3762 = vadd.f32 %v3601, %v3761
      %v3763 = vpop.f32.mrf.mxu0
      %3764 = vmatprep.mubr.bf16.mxu0 0
      %3765 = vmatmul.mubr.bf16.gmra.mxu0 %v3268
      %v3766 = vpop.f32.mrf.mxu0
      %v3767 = vadd.f32 %v3606, %v3766
      %v3768 = vpop.f32.mrf.mxu0
      %v3769 = vpop.f32.mrf.mxu0
      %v3770 = vadd.f32 %v3609, %v3769
      %v3771 = vpop.f32.mrf.mxu0
      %3772 = vmatprep.mubr.bf16.mxu0 0
      %3773 = vmatmul.mubr.bf16.gmra.mxu0 %v3271
      %v3774 = vpop.f32.mrf.mxu0
      %v3775 = vadd.f32 %v3614, %v3774
      %v3776 = vpop.f32.mrf.mxu0
      %v3777 = vpop.f32.mrf.mxu0
      %v3778 = vadd.f32 %v3617, %v3777
      %v3779 = vpop.f32.mrf.mxu0
      %3780 = vmatprep.mubr.bf16.mxu0 0
      %3781 = vmatmul.mubr.bf16.gmra.mxu0 %v3274
      %v3782 = vpop.f32.mrf.mxu0
      %v3783 = vadd.f32 %v3622, %v3782
      %v3784 = vpop.f32.mrf.mxu0
      %v3785 = vpop.f32.mrf.mxu0
      %v3786 = vadd.f32 %v3625, %v3785
      %v3787 = vpop.f32.mrf.mxu0
      %3788 = vdwg.mxu0
      %v3789 = vadd.f32 %v2827, %v3663
      %v3790 = vadd.f32 %v2830, %v3666
      %v3791 = vadd.f32 %v2835, %v3671
      %v3792 = vadd.f32 %v2838, %v3674
      %v3793 = vadd.f32 %v2843, %v3679
      %v3794 = vadd.f32 %v2846, %v3682
      %v3795 = vadd.f32 %v2851, %v3687
      %v3796 = vadd.f32 %v2854, %v3690
      %v3797 = vadd.f32 %v2859, %v3695
      %v3798 = vadd.f32 %v2862, %v3698
      %v3799 = vadd.f32 %v2867, %v3703
      %v3800 = vadd.f32 %v2870, %v3706
      %v3801 = vadd.f32 %v2875, %v3711
      %v3802 = vadd.f32 %v2878, %v3714
      %v3803 = vadd.f32 %v2883, %v3719
      %v3804 = vadd.f32 %v2886, %v3722
      %v3805 = vadd.f32 %v2891, %v3727
      %v3806 = vadd.f32 %v2894, %v3730
      %v3807 = vadd.f32 %v2899, %v3735
      %v3808 = vadd.f32 %v2902, %v3738
      %v3809 = vadd.f32 %v2907, %v3743
      %v3810 = vadd.f32 %v2910, %v3746
      %v3811 = vadd.f32 %v2915, %v3751
      %v3812 = vadd.f32 %v2918, %v3754
      %v3813 = vadd.f32 %v2923, %v3759
      %v3814 = vadd.f32 %v2926, %v3762
      %v3815 = vadd.f32 %v2931, %v3767
      %v3816 = vadd.f32 %v2934, %v3770
      %v3817 = vadd.f32 %v2939, %v3775
      %v3818 = vadd.f32 %v2942, %v3778
      %v3819 = vadd.f32 %v2947, %v3783
      %v3820 = vadd.f32 %v2950, %v3786
      %3821 = vst [vmem:[%s330] sm:$0xff] %v3789
      %3822 = vst [vmem:[%s330 + $0x8] sm:$0xff] %v3790
      %3823 = vst [vmem:[%s330 + $0x10] sm:$0xff] %v3791
      %3824 = vst [vmem:[%s330 + $0x18] sm:$0xff] %v3792
      %3825 = vst [vmem:[%s330 + $0x20] sm:$0xff] %v3793
      %3826 = vst [vmem:[%s330 + $0x28] sm:$0xff] %v3794
      %3827 = vst [vmem:[%s330 + $0x30] sm:$0xff] %v3795
      %3828 = vst [vmem:[%s330 + $0x38] sm:$0xff] %v3796
      %3829 = vst [vmem:[%s330 + $0x40] sm:$0xff] %v3797
      %3830 = vst [vmem:[%s330 + $0x48] sm:$0xff] %v3798
      %3831 = vst [vmem:[%s330 + $0x50] sm:$0xff] %v3799
      %3832 = vst [vmem:[%s330 + $0x58] sm:$0xff] %v3800
      %3833 = vst [vmem:[%s330 + $0x60] sm:$0xff] %v3801
      %3834 = vst [vmem:[%s330 + $0x68] sm:$0xff] %v3802
      %3835 = vst [vmem:[%s330 + $0x70] sm:$0xff] %v3803
      %3836 = vst [vmem:[%s330 + $0x78] sm:$0xff] %v3804
      %3837 = vst [vmem:[%s330 + $0x80] sm:$0xff] %v3805
      %3838 = vst [vmem:[%s330 + $0x88] sm:$0xff] %v3806
      %3839 = vst [vmem:[%s330 + $0x90] sm:$0xff] %v3807
      %3840 = vst [vmem:[%s330 + $0x98] sm:$0xff] %v3808
      %3841 = vst [vmem:[%s330 + $0xa0] sm:$0xff] %v3809
      %3842 = vst [vmem:[%s330 + $0xa8] sm:$0xff] %v3810
      %3843 = vst [vmem:[%s330 + $0xb0] sm:$0xff] %v3811
      %3844 = vst [vmem:[%s330 + $0xb8] sm:$0xff] %v3812
      %3845 = vst [vmem:[%s330 + $0xc0] sm:$0xff] %v3813
      %3846 = vst [vmem:[%s330 + $0xc8] sm:$0xff] %v3814
      %3847 = vst [vmem:[%s330 + $0xd0] sm:$0xff] %v3815
      %3848 = vst [vmem:[%s330 + $0xd8] sm:$0xff] %v3816
      %3849 = vst [vmem:[%s330 + $0xe0] sm:$0xff] %v3817
      %3850 = vst [vmem:[%s330 + $0xe8] sm:$0xff] %v3818
      %3851 = vst [vmem:[%s330 + $0xf0] sm:$0xff] %v3819
      %3852 = vst [vmem:[%s330 + $0xf8] sm:$0xff] %v3820
      %v3853 = vadd.f32 %v3789, %v3790
      %v3854 = vadd.f32 %v3853, %v3791
      %v3855 = vadd.f32 %v3854, %v3792
      %v3856 = vadd.f32 %v3855, %v3793
      %v3857 = vadd.f32 %v3856, %v3794
      %v3858 = vadd.f32 %v3857, %v3795
      %v3859 = vadd.f32 %v3858, %v3796
      %v3860 = vadd.f32 %v3859, %v3797
      %v3861 = vadd.f32 %v3860, %v3798
      %v3862 = vadd.f32 %v3861, %v3799
      %v3863 = vadd.f32 %v3862, %v3800
      %v3864 = vadd.f32 %v3863, %v3801
      %v3865 = vadd.f32 %v3864, %v3802
      %v3866 = vadd.f32 %v3865, %v3803
      %v3867 = vadd.f32 %v3866, %v3804
      %v3868 = vadd.f32 %v3867, %v3805
      %v3869 = vadd.f32 %v3868, %v3806
      %v3870 = vadd.f32 %v3869, %v3807
      %v3871 = vadd.f32 %v3870, %v3808
      %v3872 = vadd.f32 %v3871, %v3809
      %v3873 = vadd.f32 %v3872, %v3810
      %v3874 = vadd.f32 %v3873, %v3811
      %v3875 = vadd.f32 %v3874, %v3812
      %v3876 = vadd.f32 %v3875, %v3813
      %v3877 = vadd.f32 %v3876, %v3814
      %v3878 = vadd.f32 %v3877, %v3815
      %v3879 = vadd.f32 %v3878, %v3816
      %v3880 = vadd.f32 %v3879, %v3817
      %v3881 = vadd.f32 %v3880, %v3818
      %v3882 = vadd.f32 %v3881, %v3819
      %v3883 = vadd.f32 %v3882, %v3820
      %v3884 = vrot.slane %v3883, 4
      %v3885 = vadd.f32 %v3883, %v3884
      %v3886 = vrot.slane %v3885, 2
      %v3887 = vadd.f32 %v3885, %v3886
      %v3888 = vrot.slane %v3887, 1
      %v3889 = vadd.f32 %v3887, %v3888
      %3890 = vst [vmem:[%s338] sm:$0x1] %v3889
      %v3891 = vmul.f32 %v3789, %v3789
      %v3892 = vmul.f32 %v3790, %v3790
      %v3893 = vmul.f32 %v3791, %v3791
      %v3894 = vmul.f32 %v3792, %v3792
      %v3895 = vmul.f32 %v3793, %v3793
      %v3896 = vmul.f32 %v3794, %v3794
      %v3897 = vmul.f32 %v3795, %v3795
      %v3898 = vmul.f32 %v3796, %v3796
      %v3899 = vmul.f32 %v3797, %v3797
      %v3900 = vmul.f32 %v3798, %v3798
      %v3901 = vmul.f32 %v3799, %v3799
      %v3902 = vmul.f32 %v3800, %v3800
      %v3903 = vmul.f32 %v3801, %v3801
      %v3904 = vmul.f32 %v3802, %v3802
      %v3905 = vmul.f32 %v3803, %v3803
      %v3906 = vmul.f32 %v3804, %v3804
      %v3907 = vmul.f32 %v3805, %v3805
      %v3908 = vmul.f32 %v3806, %v3806
      %v3909 = vmul.f32 %v3807, %v3807
      %v3910 = vmul.f32 %v3808, %v3808
      %v3911 = vmul.f32 %v3809, %v3809
      %v3912 = vmul.f32 %v3810, %v3810
      %v3913 = vmul.f32 %v3811, %v3811
      %v3914 = vmul.f32 %v3812, %v3812
      %v3915 = vmul.f32 %v3813, %v3813
      %v3916 = vmul.f32 %v3814, %v3814
      %v3917 = vmul.f32 %v3815, %v3815
      %v3918 = vmul.f32 %v3816, %v3816
      %v3919 = vmul.f32 %v3817, %v3817
      %v3920 = vmul.f32 %v3818, %v3818
      %v3921 = vmul.f32 %v3819, %v3819
      %v3922 = vmul.f32 %v3820, %v3820
      %v3923 = vadd.f32 %v3891, %v3892
      %v3924 = vadd.f32 %v3923, %v3893
      %v3925 = vadd.f32 %v3924, %v3894
      %v3926 = vadd.f32 %v3925, %v3895
      %v3927 = vadd.f32 %v3926, %v3896
      %v3928 = vadd.f32 %v3927, %v3897
      %v3929 = vadd.f32 %v3928, %v3898
      %v3930 = vadd.f32 %v3929, %v3899
      %v3931 = vadd.f32 %v3930, %v3900
      %v3932 = vadd.f32 %v3931, %v3901
      %v3933 = vadd.f32 %v3932, %v3902
      %v3934 = vadd.f32 %v3933, %v3903
      %v3935 = vadd.f32 %v3934, %v3904
      %v3936 = vadd.f32 %v3935, %v3905
      %v3937 = vadd.f32 %v3936, %v3906
      %v3938 = vadd.f32 %v3937, %v3907
      %v3939 = vadd.f32 %v3938, %v3908
      %v3940 = vadd.f32 %v3939, %v3909
      %v3941 = vadd.f32 %v3940, %v3910
      %v3942 = vadd.f32 %v3941, %v3911
      %v3943 = vadd.f32 %v3942, %v3912
      %v3944 = vadd.f32 %v3943, %v3913
      %v3945 = vadd.f32 %v3944, %v3914
      %v3946 = vadd.f32 %v3945, %v3915
      %v3947 = vadd.f32 %v3946, %v3916
      %v3948 = vadd.f32 %v3947, %v3917
      %v3949 = vadd.f32 %v3948, %v3918
      %v3950 = vadd.f32 %v3949, %v3919
      %v3951 = vadd.f32 %v3950, %v3920
      %v3952 = vadd.f32 %v3951, %v3921
      %v3953 = vadd.f32 %v3952, %v3922
      %v3954 = vrot.slane %v3953, 4
      %v3955 = vadd.f32 %v3953, %v3954
      %v3956 = vrot.slane %v3955, 2
      %v3957 = vadd.f32 %v3955, %v3956
      %v3958 = vrot.slane %v3957, 1
      %v3959 = vadd.f32 %v3957, %v3958
      %3960 = vst [vmem:[%s338 + $0x1] sm:$0x1] %v3959
      %s3961 = smul.u32 16, %s21
      %p3962 = scmp.lt.s32.totalorder %s20, 1
      %s3963 = scalar_select %p3962, %s20, 1
      %p3964 = scmp.lt.s32.totalorder %s3961, 15
      %s3965 = scalar_select %p3964, %s3961, 15
      %s3966 = smul.addr %s3965, 2
      %s3967 = smul.addr %s3963, 32
      %s3968 = sadd.s32 %s3966, %s3967
      %s3969 = smul.addr %s3968, 8
      %s3970 = scalar_lea.vmem %s3, %s3969
      %p3971 = scmp.lt.s32.totalorder %s20, 1
      %s3972 = scalar_select %p3971, %s20, 1
      %p3973 = scmp.lt.s32.totalorder %s21, 0
      %s3974 = scalar_select %p3973, %s21, 0
      %s3975 = sadd.s32 %s3974, %s3972
      %s3976 = smul.addr %s3975, 2
      %s3977 = scalar_lea.vmem %s4, %s3976
      // Predicated region
      $region33: #{double_conv_forward.4} parent=31 // pred_check
        %p3978 = pneg %p129
      $region34: #{double_conv_forward.4} parent=31 // pred_check_branch
        %3980 = sbr.rel (%p3978) target = $region36
      $region35: #{double_conv_forward.4} parent=31 // pred_region
        %s3981 = smul.u32 16, %s21
      $region36: #{double_conv_forward.4} parent=31 // pred_fallthru
        _
      // Predicated region
      $region37: #{double_conv_forward.4} parent=31 // pred_check
        %p3982 = pneg %p157
      $region38: #{double_conv_forward.4} parent=31 // pred_check_branch
        %3984 = sbr.rel (%p3982) target = $region40
      $region39: #{double_conv_forward.4} parent=31 // pred_region
        _
      $region40: #{double_conv_forward.4} parent=31 // pred_fallthru
        _
    $region32: #{double_conv_forward.4} parent=5 // pred_fallthru
      _
    %p3985 = scmp.le.s32.totalorder 2, %s11
    // Predicated region
    $region41: #{double_conv_forward.4} parent=5 // pred_check
      %p3986 = pneg %p3985
    $region42: #{double_conv_forward.4} parent=5 // pred_check_branch
      %3988 = sbr.rel (%p3986) target = $region44
    $region43: #{double_conv_forward.4} parent=5 // pred_region
      %s3989 = ssub.s32 %s11, 2
      // Predicated region
      $region45: #{double_conv_forward.4} parent=43 // pred_check
        %p3990 = pneg %p135
      $region46: #{double_conv_forward.4} parent=43 // pred_check_branch
        %3992 = sbr.rel (%p3990) target = $region48
      $region47: #{double_conv_forward.4} parent=43 // pred_region
        %s3993 = smul.u32 16, %s23
        %p3994 = scmp.lt.s32.totalorder %s22, 1
        %s3995 = scalar_select %p3994, %s22, 1
        %p3996 = scmp.lt.s32.totalorder %s3993, 15
        %s3997 = scalar_select %p3996, %s3993, 15
        %s3998 = smul.addr %s3997, 2
        %s3999 = smul.addr %s3995, 32
        %s4000 = sadd.s32 %s3998, %s3999
        %s4001 = smul.addr %s4000, 8
        %s4002 = scalar_lea.vmem %s3, %s4001
      $region48: #{double_conv_forward.4} parent=43 // pred_fallthru
        _
      // Predicated region
      $region49: #{double_conv_forward.4} parent=43 // pred_check
        %p4003 = pneg %p163
      $region50: #{double_conv_forward.4} parent=43 // pred_check_branch
        %4005 = sbr.rel (%p4003) target = $region52
      $region51: #{double_conv_forward.4} parent=43 // pred_region
        %p4006 = scmp.lt.s32.totalorder %s22, 1
        %s4007 = scalar_select %p4006, %s22, 1
        %p4008 = scmp.lt.s32.totalorder %s23, 0
        %s4009 = scalar_select %p4008, %s23, 0
        %s4010 = sadd.s32 %s4009, %s4007
        %s4011 = smul.addr %s4010, 2
        %s4012 = scalar_lea.vmem %s4, %s4011
      $region52: #{double_conv_forward.4} parent=43 // pred_fallthru
        _
    $region44: #{double_conv_forward.4} parent=5 // pred_fallthru
      _
  $region6: #{double_conv_forward.4} parent=0 // loop_footer
    %s15 = sadd.s32 1, %s11
  $region7: #{double_conv_forward.4} parent=0 // loop_footer_branch
    %10 = sbr.rel target = $region3
  $region8: #{double_conv_forward.4} parent=0 // loop_exit
    _

</llo_original>
